<compile_context>
chip_gen: v7x
topology: tpu7x:2x2x1
jax: 0.10.0
libtpu: 0.0.40
codegen_flags: <defaults>
</compile_context>

<pallas_src>
import functools

import jax
import jax.numpy as jnp
from jax.experimental import pallas as pl
from jax.experimental.pallas import tpu as pltpu

BN_EPS = 1e-5
VMEM_LIMIT = 64 * 1024 * 1024


def _largest_divisor(n, cap):
    t = min(n, cap)
    while n % t:
        t -= 1
    return t


# --------------------------------------------------------------------------
# 1) Hoisted LSTM input projection, written directly in (D, S*B, 4H) layout.
#    bf16 operands, f32 accumulate/output.
# --------------------------------------------------------------------------
def _proj_kernel(x_ref, w_ref, b_ref, o_ref):
    o_ref[...] = (jnp.dot(x_ref[...], w_ref[...],
                          preferred_element_type=jnp.float32) + b_ref[...])


def input_projection(x_flat_bf16, w_bf16, b_f32):
    M, E = x_flat_bf16.shape
    D, _, N = w_bf16.shape
    tm = _largest_divisor(M, 1024)
    return pl.pallas_call(
        _proj_kernel,
        out_shape=jax.ShapeDtypeStruct((D, M, N), jnp.float32),
        grid=(M // tm, D),
        in_specs=[pl.BlockSpec((tm, E), lambda i, d: (i, 0)),
                  pl.BlockSpec((None, E, N), lambda i, d: (d, 0, 0)),
                  pl.BlockSpec((None, 1, N), lambda i, d: (d, 0, 0))],
        out_specs=pl.BlockSpec((None, tm, N), lambda i, d: (d, i, 0)),
        compiler_params=pltpu.CompilerParams(
            dimension_semantics=("parallel", "arbitrary"),
            vmem_limit_bytes=VMEM_LIMIT),
    )(x_flat_bf16, w_bf16, b_f32)


# --------------------------------------------------------------------------
# 2) Recurrent LSTM, both directions in one kernel, time reversal for the
#    backward direction folded into index_map + in-kernel reversed row reads.
#    Pooled variant (last layer): max/sum accumulated in VMEM scratch.
# --------------------------------------------------------------------------
def _lstm_pool_kernel(gx_ref, whh_ref, max_ref, avg_ref,
                      h_scr, c_scr, m_scr, s_scr, *, inv_len):
    d = pl.program_id(0)
    tb = pl.program_id(1)
    nb = pl.num_programs(1)
    T = gx_ref.shape[0]
    H = whh_ref.shape[0]

    @pl.when(tb == 0)
    def _init():
        h_scr[...] = jnp.zeros_like(h_scr)
        c_scr[...] = jnp.zeros_like(c_scr)
        m_scr[...] = jnp.full_like(m_scr, -jnp.inf)
        s_scr[...] = jnp.zeros_like(s_scr)

    whh = whh_ref[...]

    def step(j, carry):
        h, c, m, s = carry
        idx = j + d * (T - 1 - 2 * j)     # d==0: j ; d==1: T-1-j (reversed time)
        gates = gx_ref[idx] + jnp.dot(h, whh, preferred_element_type=jnp.float32)
        i = jax.nn.sigmoid(gates[:, 0 * H:1 * H])
        f = jax.nn.sigmoid(gates[:, 1 * H:2 * H])
        g = jnp.tanh(gates[:, 2 * H:3 * H])
        o = jax.nn.sigmoid(gates[:, 3 * H:4 * H])
        c = f * c + i * g
        h = o * jnp.tanh(c)
        return h, c, jnp.maximum(m, h), s + h

    h, c, m, s = jax.lax.fori_loop(
        0, T, step,
        (h_scr[...], c_scr[...], m_scr[...], s_scr[...]),
        unroll=min(T, 8))
    h_scr[...] = h
    c_scr[...] = c
    m_scr[...] = m
    s_scr[...] = s

    @pl.when(tb == nb - 1)
    def _emit():
        max_ref[...] = m
        avg_ref[...] = s * inv_len


def _lstm_seq_kernel(gx_ref, whh_ref, out_ref, h_scr, c_scr):
    # Sequence-output variant (only needed for non-final layers, num_layers>1).
    d = pl.program_id(0)
    tb = pl.program_id(1)
    T = gx_ref.shape[0]
    H = whh_ref.shape[0]

    @pl.when(tb == 0)
    def _init():
        h_scr[...] = jnp.zeros_like(h_scr)
        c_scr[...] = jnp.zeros_like(c_scr)

    whh = whh_ref[...]

    def step(j, carry):
        h, c = carry
        idx = j + d * (T - 1 - 2 * j)
        gates = gx_ref[idx] + jnp.dot(h, whh, preferred_element_type=jnp.float32)
        i = jax.nn.sigmoid(gates[:, 0 * H:1 * H])
        f = jax.nn.sigmoid(gates[:, 1 * H:2 * H])
        g = jnp.tanh(gates[:, 2 * H:3 * H])
        o = jax.nn.sigmoid(gates[:, 3 * H:4 * H])
        c = f * c + i * g
        h = o * jnp.tanh(c)
        out_ref[idx] = h                  # natural time order within block
        return h, c

    h, c = jax.lax.fori_loop(0, T, step, (h_scr[...], c_scr[...]),
                             unroll=min(T, 8))
    h_scr[...] = h
    c_scr[...] = c


def _layer_gates(h_seq, layer):
    """Hoisted input projection for all directions, output (D, S, B, 4H)."""
    S, B, Ein = h_seq.shape
    D = 2 if 'wih_1' in layer else 1
    H = layer['whh_0'].shape[0]
    wih = jnp.stack([layer[f'wih_{d}'] for d in range(D)], 0).astype(jnp.bfloat16)
    bias = jnp.stack([layer[f'b_{d}'] for d in range(D)], 0)          # (D,1,4H) f32
    x_flat = h_seq.reshape(S * B, Ein).astype(jnp.bfloat16)
    gx = input_projection(x_flat, wih, bias)                          # (D, S*B, 4H)
    gxd = gx.reshape(D, S, B, 4 * H)                                  # free reshape
    whh = jnp.stack([layer[f'whh_{d}'] for d in range(D)], 0)         # (D, H, 4H) f32
    return gxd, whh, D, H


def _gx_index_map(nb):
    # Backward direction (d==1) consumes time blocks in reverse order.
    return lambda d, t: (d, t + d * (nb - 1 - 2 * t), 0, 0)


def lstm_pooled(gxd, whh):
    D, S, B, G = gxd.shape
    H = whh.shape[1]
    T = _largest_divisor(S, 32)
    NB = S // T
    kern = functools.partial(_lstm_pool_kernel, inv_len=1.0 / S)
    return pl.pallas_call(
        kern,
        out_shape=(jax.ShapeDtypeStruct((D, B, H), jnp.float32),
                   jax.ShapeDtypeStruct((D, B, H), jnp.float32)),
        grid_spec=pltpu.PrefetchScalarGridSpec(
            num_scalar_prefetch=0,
            grid=(D, NB),
            in_specs=[pl.BlockSpec((None, T, B, G), _gx_index_map(NB)),
                      pl.BlockSpec((None, H, G), lambda d, t: (d, 0, 0))],
            out_specs=[pl.BlockSpec((None, B, H), lambda d, t: (d, 0, 0)),
                       pl.BlockSpec((None, B, H), lambda d, t: (d, 0, 0))],
            scratch_shapes=[pltpu.VMEM((B, H), jnp.float32)] * 4),
        compiler_params=pltpu.CompilerParams(
            dimension_semantics=("parallel", "arbitrary"),
            vmem_limit_bytes=VMEM_LIMIT),
    )(gxd, whh)


def lstm_seq(gxd, whh):
    D, S, B, G = gxd.shape
    H = whh.shape[1]
    T = _largest_divisor(S, 32)
    NB = S // T
    return pl.pallas_call(
        _lstm_seq_kernel,
        out_shape=jax.ShapeDtypeStruct((D, S, B, H), jnp.float32),
        grid_spec=pltpu.PrefetchScalarGridSpec(
            num_scalar_prefetch=0,
            grid=(D, NB),
            in_specs=[pl.BlockSpec((None, T, B, G), _gx_index_map(NB)),
                      pl.BlockSpec((None, H, G), lambda d, t: (d, 0, 0))],
            out_specs=pl.BlockSpec((None, T, B, H), _gx_index_map(NB)),
            scratch_shapes=[pltpu.VMEM((B, H), jnp.float32)] * 2),
        compiler_params=pltpu.CompilerParams(
            dimension_semantics=("parallel", "arbitrary"),
            vmem_limit_bytes=VMEM_LIMIT),
    )(gxd, whh)


# --------------------------------------------------------------------------
# 3) Tiled ConvBlock (im2col matmul + folded BN + ReLU + running max over
#    Hout in VMEM scratch) + head (concat + folded BN1d/linear1 + residual +
#    linear_out) on the last grid step.
# --------------------------------------------------------------------------
def _conv_head_kernel(p_ref, cw_ref, cb_ref, zmax_ref, zavg_ref,
                      w1_ref, b1_ref, wo_ref, bo_ref, out_ref,
                      cmax_scr, *, rows_per_step):
    j = pl.program_id(0)
    nj = pl.num_programs(0)
    B = out_ref.shape[0]

    @pl.when(j == 0)
    def _init():
        cmax_scr[...] = jnp.zeros_like(cmax_scr)      # conv output is post-ReLU >= 0

    # bf16 x bf16 -> f32 im2col conv matmul, BN already folded into cw/cb.
    y = jnp.dot(p_ref[...], cw_ref[...],
                preferred_element_type=jnp.float32) + cb_ref[...]
    y = jnp.maximum(y, 0.0)
    # Pairwise-tree max over the rows_per_step Hout positions in this block
    # (patches are j-major: row = j*B + b), static contiguous slices only.
    parts = [y[r * B:(r + 1) * B] for r in range(rows_per_step)]
    while len(parts) > 1:
        nxt = [jnp.maximum(parts[i], parts[i + 1])
               for i in range(0, len(parts) - 1, 2)]
        if len(parts) % 2:
            nxt.append(parts[-1])
        parts = nxt
    cmax_scr[...] = jnp.maximum(cmax_scr[...], parts[0])

    @pl.when(j == nj - 1)
    def _head():
        D = zmax_ref.shape[0]
        # concat(max_pool, avg_pool) with per-pool feature order [fwd | bwd].
        cat = jnp.concatenate([zmax_ref[dd] for dd in range(D)]
                              + [zavg_ref[dd] for dd in range(D)], axis=1)
        r = jnp.maximum(cat, 0.0)
        lin1 = jnp.dot(r.astype(w1_ref.dtype), w1_ref[...],
                       preferred_element_type=jnp.float32) + b1_ref[...]
        hidden = cat + lin1 + cmax_scr[...]
        out_ref[...] = (jnp.dot(hidden.astype(wo_ref.dtype), wo_ref[...],
                                preferred_element_type=jnp.float32) + bo_ref[...])


def conv_head(x_sbe, zmax, zavg, p):
    # x_sbe: time-major embeddings (S, B, E) — shared with the LSTM path, so
    # no extra transpose is needed to build j-major patches.
    S, B, E = x_sbe.shape
    Hout = (S + 2 - 3) // 3 + 1
    K = 3 * (E - 1)
    xp = jnp.pad(x_sbe, ((1, 1), (0, 0), (0, 0)))
    # im2col via 3 strided row slices; width padding/stride means only
    # x[..., :E-1] meets the (pre-folded) effective weight columns 1..E-1.
    cols = [xp[dh::3, :, :E - 1][:Hout] for dh in range(3)]          # (Hout,B,E-1)
    patches = (jnp.concatenate(cols, axis=-1)
               .reshape(Hout * B, K).astype(jnp.bfloat16))           # j-major

    TJ = _largest_divisor(Hout, 64)       # Hout rows per grid step
    NJ = Hout // TJ
    C2 = p['conv_wf'].shape[1]
    F4 = p['w1f'].shape[0]
    O = p['wo'].shape[1]
    D, _, H = zmax.shape

    kern = functools.partial(_conv_head_kernel, rows_per_step=TJ)
    return pl.pallas_call(
        kern,
        out_shape=jax.ShapeDtypeStruct((B, O), jnp.float32),
        grid_spec=pltpu.PrefetchScalarGridSpec(
            num_scalar_prefetch=0,
            grid=(NJ,),
            in_specs=[pl.BlockSpec((TJ * B, K), lambda j: (j, 0)),
                      pl.BlockSpec((K, C2), lambda j: (0, 0)),
                      pl.BlockSpec((1, C2), lambda j: (0, 0)),
                      pl.BlockSpec((D, B, H), lambda j: (0, 0, 0)),
                      pl.BlockSpec((D, B, H), lambda j: (0, 0, 0)),
                      pl.BlockSpec((F4, F4), lambda j: (0, 0)),
                      pl.BlockSpec((1, F4), lambda j: (0, 0)),
                      pl.BlockSpec((F4, O), lambda j: (0, 0)),
                      pl.BlockSpec((1, O), lambda j: (0, 0))],
            out_specs=pl.BlockSpec((B, O), lambda j: (0, 0)),
            scratch_shapes=[pltpu.VMEM((B, C2), jnp.float32)]),
        compiler_params=pltpu.CompilerParams(
            dimension_semantics=("arbitrary",),
            vmem_limit_bytes=VMEM_LIMIT),
    )(patches, p['conv_wf'].astype(jnp.bfloat16), p['conv_bf'],
      zmax, zavg,
      p['w1f'].astype(jnp.bfloat16), p['b1f'],
      p['wo'].astype(jnp.bfloat16), p['bo'])


# --------------------------------------------------------------------------
# Full forward pass (BertLstmCNN2).
# --------------------------------------------------------------------------
def bert_lstm_cnn2_forward(params, input_ids, token_type_ids=None,
                           attention_mask=None, labels=None):
    # TODO(synk): pretrained 'kykim/bert-kor-base' encoder replaced by a
    # deterministic embedding lookup stand-in (no checkpoint / transformer);
    # token_type_ids / attention_mask / labels accepted but unused here.
    x = params['embed'][input_ids].astype(jnp.float32)     # (B, S, E)
    xt = jnp.transpose(x, (1, 0, 2))                        # (S, B, E) time-major

    h_seq = xt
    n_layers = len(params['lstm'])
    zmax = zavg = None
    for li, layer in enumerate(params['lstm']):
        gxd, whh, D, H = _layer_gates(h_seq, layer)
        if li == n_layers - 1:
            zmax, zavg = lstm_pooled(gxd, whh)              # (D,B,H) each
        else:
            hs = lstm_seq(gxd, whh)                         # (D,S,B,H), natural order
            h_seq = (jnp.concatenate([hs[0], hs[1]], axis=-1)
                     if D == 2 else hs[0])

    return conv_head(xt, zmax, zavg, params)


# --------------------------------------------------------------------------
# Deterministic parameter construction (with folded BN) + pure-JAX reference.
# --------------------------------------------------------------------------
def init_params(key, *, E, H, C, O, num_layers, bidirectional, vocab):
    keys = iter(jax.random.split(key, 128))

    def rnd(shape, scale=0.1):
        return scale * jax.random.normal(next(keys), shape, jnp.float32)

    p = {'embed': rnd((vocab, E), 1.0)}
    dirs = 2 if bidirectional else 1
    layers, in_dim = [], E
    for _ in range(num_layers):
        layer = {}
        for d in range(dirs):
            layer[f'wih_{d}'] = rnd((in_dim, 4 * H))
            layer[f'whh_{d}'] = rnd((H, 4 * H))
            # NOTE: single combined bias (b_ih + b_hh pre-summed).
            layer[f'b_{d}'] = rnd((1, 4 * H))
        layers.append(layer)
        in_dim = dirs * H
    p['lstm'] = layers

    # Conv2d weights (C,1,3,E) per branch; only columns 1..E-1 touch real data
    # (width padding=1, kernel width=E, single output column).
    w1c, w2c = rnd((C, 3, E)), rnd((C, 3, E))
    w_eff = jnp.concatenate([w1c[:, :, 1:], w2c[:, :, 1:]], axis=0)  # (2C,3,E-1)
    p['conv_w'] = jnp.transpose(w_eff.reshape(2 * C, 3 * (E - 1)))   # (K, 2C)
    p['conv_b'] = rnd((1, 2 * C))
    p['conv_bn_gamma'] = 1.0 + rnd((1, 2 * C))
    p['conv_bn_beta'] = rnd((1, 2 * C))
    p['conv_bn_mean'] = jnp.zeros((1, 2 * C), jnp.float32)
    p['conv_bn_var'] = jnp.ones((1, 2 * C), jnp.float32)

    F4 = 4 * H
    p['bn1_gamma'] = 1.0 + rnd((1, F4))
    p['bn1_beta'] = rnd((1, F4))
    p['bn1_mean'] = jnp.zeros((1, F4), jnp.float32)
    p['bn1_var'] = jnp.ones((1, F4), jnp.float32)
    p['w1'], p['b1'] = rnd((F4, F4)), rnd((1, F4))
    p['wo'], p['bo'] = rnd((F4, O)), rnd((1, O))

    # --- fold eval-mode BatchNorm into adjacent matmuls (host-side, once) ---
    a_c = p['conv_bn_gamma'] * jax.lax.rsqrt(p['conv_bn_var'] + BN_EPS)
    p['conv_wf'] = p['conv_w'] * a_c                                  # (K, 2C)
    p['conv_bf'] = (p['conv_b'] - p['conv_bn_mean']) * a_c + p['conv_bn_beta']
    a1 = p['bn1_gamma'] * jax.lax.rsqrt(p['bn1_var'] + BN_EPS)       # (1, F4)
    d1 = p['bn1_beta'] - p['bn1_mean'] * a1
    p['w1f'] = a1.reshape(-1, 1) * p['w1']                            # scale rows
    p['b1f'] = d1 @ p['w1'] + p['b1']
    return p


def _ref_lstm_dir(x_sbe, wih, whh, b, reverse):
    S, B, _ = x_sbe.shape
    H = whh.shape[0]
    h = jnp.zeros((B, H), jnp.float32)
    c = jnp.zeros((B, H), jnp.float32)
    out = [None] * S
    order = range(S - 1, -1, -1) if reverse else range(S)
    for t in order:
        gates = x_sbe[t] @ wih + h @ whh + b
        i = jax.nn.sigmoid(gates[:, 0 * H:1 * H])
        f = jax.nn.sigmoid(gates[:, 1 * H:2 * H])
        g = jnp.tanh(gates[:, 2 * H:3 * H])
        o = jax.nn.sigmoid(gates[:, 3 * H:4 * H])
        c = f * c + i * g
        h = o * jnp.tanh(c)
        out[t] = h
    return jnp.stack(out, axis=0)


def reference_forward(params, input_ids):
    x = params['embed'][input_ids].astype(jnp.float32)
    B, S, E = x.shape
    h = jnp.transpose(x, (1, 0, 2))
    for layer in params['lstm']:
        fwd = _ref_lstm_dir(h, layer['wih_0'], layer['whh_0'], layer['b_0'], False)
        if 'wih_1' in layer:
            bwd = _ref_lstm_dir(h, layer['wih_1'], layer['whh_1'], layer['b_1'], True)
            h = jnp.concatenate([fwd, bwd], axis=-1)
        else:
            h = fwd
    z = h
    max_pool, avg_pool = jnp.max(z, axis=0), jnp.mean(z, axis=0)

    Hout = (S - 1) // 3 + 1
    xp = jnp.pad(x, ((0, 0), (1, 1), (0, 0)))
    rows = jnp.arange(Hout) * 3
    patches = jnp.stack([xp[:, rows + dh, :E - 1] for dh in range(3)],
                        axis=2).reshape(B, Hout, -1)
    y = jnp.einsum('bjk,kc->bjc', patches, params['conv_w']) + params['conv_b']
    y = ((y - params['conv_bn_mean'])
         / jnp.sqrt(params['conv_bn_var'] + BN_EPS)
         * params['conv_bn_gamma'] + params['conv_bn_beta'])
    conv = jnp.max(jnp.maximum(y, 0.0), axis=1)

    cat = jnp.concatenate([max_pool, avg_pool], axis=1)
    r = jnp.maximum(cat, 0.0)
    bn = ((r - params['bn1_mean']) / jnp.sqrt(params['bn1_var'] + BN_EPS)
          * params['bn1_gamma'] + params['bn1_beta'])
    lin1 = bn @ params['w1'] + params['b1']
    hidden = cat + lin1 + conv
    return hidden @ params['wo'] + params['bo']


if __name__ == "__main__":
    # Small shapes consistent with the module (conv gives 2*C features which
    # must equal hidden_size*4 for the residual add, as in the original where
    # hidden_size=64 and out_channels=128).
    batch, seq_len = 2, 8
    embed_dim = 32
    hidden_size = 8
    conv_channels = 16
    output_size = 3
    num_layers = 1
    bidirectional = True
    vocab = 50
    assert 2 * conv_channels == 4 * hidden_size

    params = init_params(jax.random.PRNGKey(42), E=embed_dim, H=hidden_size,
                         C=conv_channels, O=output_size, num_layers=num_layers,
                         bidirectional=bidirectional, vocab=vocab)

    key = jax.random.PRNGKey(0)
    input_ids = jax.random.randint(key, (batch, seq_len), 0, vocab)
    token_type_ids = jnp.zeros((batch, seq_len), jnp.int32)
    attention_mask = jnp.ones((batch, seq_len), jnp.int32)

    fwd = jax.jit(bert_lstm_cnn2_forward)
    y = fwd(params, input_ids, token_type_ids, attention_mask)
    y = jax.block_until_ready(y)

    y_ref = reference_forward(params, input_ids)
    assert y.shape == (batch, output_size)
    assert bool(jnp.all(jnp.isfinite(y)))
    # Tolerance re-validated for the bf16 MXU operands (f32 accumulate).
    assert bool(jnp.allclose(y, y_ref, atol=3e-2, rtol=3e-2)), \
        f"max abs diff {float(jnp.max(jnp.abs(y - y_ref)))}"
    print("KERNEL_OK")
</pallas_src>

<mosaic_0001>
module attributes {stable_mosaic.version = 11 : i64} {
  func.func @_proj_kernel(%arg0: i32, %arg1: i32, %arg2: memref<16x32xbf16, #tpu.memory_space<vmem>>, %arg3: memref<1x32x32xbf16, #tpu.memory_space<vmem>>, %arg4: memref<1x1x32xf32, #tpu.memory_space<vmem>>, %arg5: memref<1x16x32xf32, #tpu.memory_space<vmem>>) attributes {dimension_semantics = [#tpu.dimension_semantics<parallel>, #tpu.dimension_semantics<arbitrary>], iteration_bounds = array<i64: 1, 2>, scalar_prefetch = 0 : i64, scratch_operands = 0 : i64, tpu.core_type = #tpu.core_type<tc>, window_params = [{transform_indices = @transform_0, window_bounds = array<i64: 16, 32>}, {transform_indices = @transform_1, window_bounds = array<i64: 1, 32, 32>}, {transform_indices = @transform_2, window_bounds = array<i64: 1, 1, 32>}, {transform_indices = @transform_3, window_bounds = array<i64: 1, 16, 32>}]} {
    %c0 = arith.constant 0 : index
    %c0_0 = arith.constant 0 : index
    %0 = vector.load %arg2[%c0, %c0_0] : memref<16x32xbf16, #tpu.memory_space<vmem>>, vector<16x32xbf16>
    %c0_1 = arith.constant 0 : index
    %c0_2 = arith.constant 0 : index
    %c0_3 = arith.constant 0 : index
    %1 = vector.load %arg3[%c0_1, %c0_2, %c0_3] : memref<1x32x32xbf16, #tpu.memory_space<vmem>>, vector<1x32x32xbf16>
    %2 = vector.shape_cast %1 : vector<1x32x32xbf16> to vector<32x32xbf16>
    %cst = arith.constant dense<0.000000e+00> : vector<16x32xf32>
    %3 = tpu.matmul %0, %2, %cst {dimension_numbers = #tpu.dot_dimension_numbers<[1], [0], [0], [1], [0, 0, 1, 1], [], []>} : vector<16x32xbf16>, vector<32x32xbf16>, vector<16x32xf32> -> vector<16x32xf32>
    %c0_4 = arith.constant 0 : index
    %c0_5 = arith.constant 0 : index
    %c0_6 = arith.constant 0 : index
    %4 = vector.load %arg4[%c0_4, %c0_5, %c0_6] : memref<1x1x32xf32, #tpu.memory_space<vmem>>, vector<1x1x32xf32>
    %5 = vector.shape_cast %4 : vector<1x1x32xf32> to vector<1x32xf32>
    %6 = vector.broadcast %5 : vector<1x32xf32> to vector<16x32xf32>
    %7 = arith.addf %3, %6 : vector<16x32xf32>
    %c0_7 = arith.constant 0 : index
    %c0_8 = arith.constant 0 : index
    %c0_9 = arith.constant 0 : index
    %8 = vector.load %arg5[%c0_7, %c0_8, %c0_9] : memref<1x16x32xf32, #tpu.memory_space<vmem>>, vector<1x16x32xf32>
    %9 = vector.shape_cast %8 : vector<1x16x32xf32> to vector<16x32xf32>
    %10 = vector.shape_cast %7 : vector<16x32xf32> to vector<1x16x32xf32>
    tpu.vector_store %arg5[%c0_7, %c0_8, %c0_9], %10 {strides = array<i32>} : memref<1x16x32xf32, #tpu.memory_space<vmem>>, vector<1x16x32xf32>,
    return
  }
  func.func @transform_0(%arg0: i32, %arg1: i32) -> (i32, i32) {
    %c0_i32 = arith.constant 0 : i32
    %c0_i32_0 = arith.constant 0 : i32
    return %arg0, %c0_i32 : i32, i32
  }
  func.func @transform_1(%arg0: i32, %arg1: i32) -> (i32, i32, i32) {
    %c0_i32 = arith.constant 0 : i32
    %c0_i32_0 = arith.constant 0 : i32
    %c0_i32_1 = arith.constant 0 : i32
    return %arg1, %c0_i32, %c0_i32_0 : i32, i32, i32
  }
  func.func @transform_2(%arg0: i32, %arg1: i32) -> (i32, i32, i32) {
    %c0_i32 = arith.constant 0 : i32
    %c0_i32_0 = arith.constant 0 : i32
    %c0_i32_1 = arith.constant 0 : i32
    return %arg1, %c0_i32, %c0_i32_0 : i32, i32, i32
  }
  func.func @transform_3(%arg0: i32, %arg1: i32) -> (i32, i32, i32) {
    %c0_i32 = arith.constant 0 : i32
    %c0_i32_0 = arith.constant 0 : i32
    return %arg1, %arg0, %c0_i32 : i32, i32, i32
  }
}

module attributes {stable_mosaic.version = 11 : i64} {
  func.func @_lstm_pool_kernel(%arg0: i32, %arg1: i32, %arg2: memref<1x8x2x32xf32, #tpu.memory_space<vmem>>, %arg3: memref<1x8x32xf32, #tpu.memory_space<vmem>>, %arg4: memref<1x2x8xf32, #tpu.memory_space<vmem>>, %arg5: memref<1x2x8xf32, #tpu.memory_space<vmem>>, %arg6: memref<2x8xf32, #tpu.memory_space<vmem>>, %arg7: memref<2x8xf32, #tpu.memory_space<vmem>>, %arg8: memref<2x8xf32, #tpu.memory_space<vmem>>, %arg9: memref<2x8xf32, #tpu.memory_space<vmem>>) attributes {dimension_semantics = [#tpu.dimension_semantics<parallel>, #tpu.dimension_semantics<arbitrary>], iteration_bounds = array<i64: 2, 1>, scalar_prefetch = 0 : i64, scratch_operands = 4 : i64, tpu.core_type = #tpu.core_type<tc>, window_params = [{transform_indices = @transform_0, window_bounds = array<i64: 1, 8, 2, 32>}, {transform_indices = @transform_1, window_bounds = array<i64: 1, 8, 32>}, {transform_indices = @transform_2, window_bounds = array<i64: 1, 2, 8>}, {transform_indices = @transform_3, window_bounds = array<i64: 1, 2, 8>}]} {
    %c0_i32 = arith.constant 0 : i32
    %0 = arith.cmpi eq, %arg1, %c0_i32 : i32
    %1 = arith.extui %0 : i1 to i32
    %c0_i32_0 = arith.constant 0 : i32
    %2 = arith.cmpi ne, %1, %c0_i32_0 : i32
    scf.if %2 {
      %cst_93 = arith.constant 0.000000e+00 : f32
      %304 = vector.broadcast %cst_93 : f32 to vector<2x8xf32>
      %c0_94 = arith.constant 0 : index
      %c0_95 = arith.constant 0 : index
      %305 = vector.load %arg6[%c0_94, %c0_95] : memref<2x8xf32, #tpu.memory_space<vmem>>, vector<2x8xf32>
      tpu.vector_store %arg6[%c0_94, %c0_95], %304 {strides = array<i32>} : memref<2x8xf32, #tpu.memory_space<vmem>>, vector<2x8xf32>,
      %cst_96 = arith.constant 0.000000e+00 : f32
      %306 = vector.broadcast %cst_96 : f32 to vector<2x8xf32>
      %c0_97 = arith.constant 0 : index
      %c0_98 = arith.constant 0 : index
      %307 = vector.load %arg7[%c0_97, %c0_98] : memref<2x8xf32, #tpu.memory_space<vmem>>, vector<2x8xf32>
      tpu.vector_store %arg7[%c0_97, %c0_98], %306 {strides = array<i32>} : memref<2x8xf32, #tpu.memory_space<vmem>>, vector<2x8xf32>,
      %cst_99 = arith.constant 0xFF800000 : f32
      %308 = vector.broadcast %cst_99 : f32 to vector<2x8xf32>
      %c0_100 = arith.constant 0 : index
      %c0_101 = arith.constant 0 : index
      %309 = vector.load %arg8[%c0_100, %c0_101] : memref<2x8xf32, #tpu.memory_space<vmem>>, vector<2x8xf32>
      tpu.vector_store %arg8[%c0_100, %c0_101], %308 {strides = array<i32>} : memref<2x8xf32, #tpu.memory_space<vmem>>, vector<2x8xf32>,
      %cst_102 = arith.constant 0.000000e+00 : f32
      %310 = vector.broadcast %cst_102 : f32 to vector<2x8xf32>
      %c0_103 = arith.constant 0 : index
      %c0_104 = arith.constant 0 : index
      %311 = vector.load %arg9[%c0_103, %c0_104] : memref<2x8xf32, #tpu.memory_space<vmem>>, vector<2x8xf32>
      tpu.vector_store %arg9[%c0_103, %c0_104], %310 {strides = array<i32>} : memref<2x8xf32, #tpu.memory_space<vmem>>, vector<2x8xf32>,
    } else {
    }
    %c0 = arith.constant 0 : index
    %c0_1 = arith.constant 0 : index
    %c0_2 = arith.constant 0 : index
    %3 = vector.load %arg3[%c0, %c0_1, %c0_2] : memref<1x8x32xf32, #tpu.memory_space<vmem>>, vector<1x8x32xf32>
    %4 = vector.shape_cast %3 : vector<1x8x32xf32> to vector<8x32xf32>
    %c0_3 = arith.constant 0 : index
    %c0_4 = arith.constant 0 : index
    %5 = vector.load %arg6[%c0_3, %c0_4] : memref<2x8xf32, #tpu.memory_space<vmem>>, vector<2x8xf32>
    %c0_5 = arith.constant 0 : index
    %c0_6 = arith.constant 0 : index
    %6 = vector.load %arg7[%c0_5, %c0_6] : memref<2x8xf32, #tpu.memory_space<vmem>>, vector<2x8xf32>
    %c0_7 = arith.constant 0 : index
    %c0_8 = arith.constant 0 : index
    %7 = vector.load %arg8[%c0_7, %c0_8] : memref<2x8xf32, #tpu.memory_space<vmem>>, vector<2x8xf32>
    %c0_9 = arith.constant 0 : index
    %c0_10 = arith.constant 0 : index
    %8 = vector.load %arg9[%c0_9, %c0_10] : memref<2x8xf32, #tpu.memory_space<vmem>>, vector<2x8xf32>
    %c0_i32_11 = arith.constant 0 : i32
    %c2_i32 = arith.constant 2 : i32
    %9 = arith.muli %c2_i32, %c0_i32_11 : i32
    %c7_i32 = arith.constant 7 : i32
    %10 = arith.subi %c7_i32, %9 : i32
    %11 = arith.muli %arg0, %10 : i32
    %12 = arith.addi %c0_i32_11, %11 : i32
    %c0_12 = arith.constant 0 : index
    %13 = arith.index_cast %12 : i32 to index
    %c0_13 = arith.constant 0 : index
    %c0_14 = arith.constant 0 : index
    %14 = vector.load %arg2[%c0_12, %13, %c0_13, %c0_14] : memref<1x8x2x32xf32, #tpu.memory_space<vmem>>, vector<1x1x2x32xf32>
    %15 = vector.shape_cast %14 : vector<1x1x2x32xf32> to vector<2x32xf32>
    %cst = arith.constant dense<0.000000e+00> : vector<2x32xf32>
    %16 = tpu.matmul %5, %4, %cst {dimension_numbers = #tpu.dot_dimension_numbers<[1], [0], [0], [1], [0, 0, 1, 1], [], []>} : vector<2x8xf32>, vector<8x32xf32>, vector<2x32xf32> -> vector<2x32xf32>
    %17 = arith.addf %15, %16 : vector<2x32xf32>
    %18 = vector.extract_strided_slice %17 {offsets = [0, 0], sizes = [2, 8], strides = [1, 1]} : vector<2x32xf32> to vector<2x8xf32>
    %19 = arith.negf %18 : vector<2x8xf32>
    %20 = math.exp %19 : vector<2x8xf32>
    %cst_15 = arith.constant 1.000000e+00 : f32
    %21 = vector.broadcast %cst_15 : f32 to vector<2x8xf32>
    %22 = arith.addf %21, %20 : vector<2x8xf32>
    %23 = arith.divf %21, %22 : vector<2x8xf32>
    %24 = vector.extract_strided_slice %17 {offsets = [0, 8], sizes = [2, 8], strides = [1, 1]} : vector<2x32xf32> to vector<2x8xf32>
    %25 = arith.negf %24 : vector<2x8xf32>
    %26 = math.exp %25 : vector<2x8xf32>
    %cst_16 = arith.constant 1.000000e+00 : f32
    %27 = vector.broadcast %cst_16 : f32 to vector<2x8xf32>
    %28 = arith.addf %27, %26 : vector<2x8xf32>
    %29 = arith.divf %27, %28 : vector<2x8xf32>
    %30 = vector.extract_strided_slice %17 {offsets = [0, 16], sizes = [2, 8], strides = [1, 1]} : vector<2x32xf32> to vector<2x8xf32>
    %31 = math.tanh %30 : vector<2x8xf32>
    %32 = vector.extract_strided_slice %17 {offsets = [0, 24], sizes = [2, 8], strides = [1, 1]} : vector<2x32xf32> to vector<2x8xf32>
    %33 = arith.negf %32 : vector<2x8xf32>
    %34 = math.exp %33 : vector<2x8xf32>
    %cst_17 = arith.constant 1.000000e+00 : f32
    %35 = vector.broadcast %cst_17 : f32 to vector<2x8xf32>
    %36 = arith.addf %35, %34 : vector<2x8xf32>
    %37 = arith.divf %35, %36 : vector<2x8xf32>
    %38 = arith.mulf %29, %6 : vector<2x8xf32>
    %39 = arith.mulf %23, %31 : vector<2x8xf32>
    %40 = arith.addf %38, %39 : vector<2x8xf32>
    %41 = math.tanh %40 : vector<2x8xf32>
    %42 = arith.mulf %37, %41 : vector<2x8xf32>
    %43 = arith.maximumf %7, %42 : vector<2x8xf32>
    %44 = arith.addf %8, %42 : vector<2x8xf32>
    %c1_i32 = arith.constant 1 : i32
    %c2_i32_18 = arith.constant 2 : i32
    %45 = arith.muli %c2_i32_18, %c1_i32 : i32
    %c7_i32_19 = arith.constant 7 : i32
    %46 = arith.subi %c7_i32_19, %45 : i32
    %47 = arith.muli %arg0, %46 : i32
    %48 = arith.addi %c1_i32, %47 : i32
    %c0_20 = arith.constant 0 : index
    %49 = arith.index_cast %48 : i32 to index
    %c0_21 = arith.constant 0 : index
    %c0_22 = arith.constant 0 : index
    %50 = vector.load %arg2[%c0_20, %49, %c0_21, %c0_22] : memref<1x8x2x32xf32, #tpu.memory_space<vmem>>, vector<1x1x2x32xf32>
    %51 = vector.shape_cast %50 : vector<1x1x2x32xf32> to vector<2x32xf32>
    %cst_23 = arith.constant dense<0.000000e+00> : vector<2x32xf32>
    %52 = tpu.matmul %42, %4, %cst_23 {dimension_numbers = #tpu.dot_dimension_numbers<[1], [0], [0], [1], [0, 0, 1, 1], [], []>} : vector<2x8xf32>, vector<8x32xf32>, vector<2x32xf32> -> vector<2x32xf32>
    %53 = arith.addf %51, %52 : vector<2x32xf32>
    %54 = vector.extract_strided_slice %53 {offsets = [0, 0], sizes = [2, 8], strides = [1, 1]} : vector<2x32xf32> to vector<2x8xf32>
    %55 = arith.negf %54 : vector<2x8xf32>
    %56 = math.exp %55 : vector<2x8xf32>
    %cst_24 = arith.constant 1.000000e+00 : f32
    %57 = vector.broadcast %cst_24 : f32 to vector<2x8xf32>
    %58 = arith.addf %57, %56 : vector<2x8xf32>
    %59 = arith.divf %57, %58 : vector<2x8xf32>
    %60 = vector.extract_strided_slice %53 {offsets = [0, 8], sizes = [2, 8], strides = [1, 1]} : vector<2x32xf32> to vector<2x8xf32>
    %61 = arith.negf %60 : vector<2x8xf32>
    %62 = math.exp %61 : vector<2x8xf32>
    %cst_25 = arith.constant 1.000000e+00 : f32
    %63 = vector.broadcast %cst_25 : f32 to vector<2x8xf32>
    %64 = arith.addf %63, %62 : vector<2x8xf32>
    %65 = arith.divf %63, %64 : vector<2x8xf32>
    %66 = vector.extract_strided_slice %53 {offsets = [0, 16], sizes = [2, 8], strides = [1, 1]} : vector<2x32xf32> to vector<2x8xf32>
    %67 = math.tanh %66 : vector<2x8xf32>
    %68 = vector.extract_strided_slice %53 {offsets = [0, 24], sizes = [2, 8], strides = [1, 1]} : vector<2x32xf32> to vector<2x8xf32>
    %69 = arith.negf %68 : vector<2x8xf32>
    %70 = math.exp %69 : vector<2x8xf32>
    %cst_26 = arith.constant 1.000000e+00 : f32
    %71 = vector.broadcast %cst_26 : f32 to vector<2x8xf32>
    %72 = arith.addf %71, %70 : vector<2x8xf32>
    %73 = arith.divf %71, %72 : vector<2x8xf32>
    %74 = arith.mulf %65, %40 : vector<2x8xf32>
    %75 = arith.mulf %59, %67 : vector<2x8xf32>
    %76 = arith.addf %74, %75 : vector<2x8xf32>
    %77 = math.tanh %76 : vector<2x8xf32>
    %78 = arith.mulf %73, %77 : vector<2x8xf32>
    %79 = arith.maximumf %43, %78 : vector<2x8xf32>
    %80 = arith.addf %44, %78 : vector<2x8xf32>
    %c2_i32_27 = arith.constant 2 : i32
    %c2_i32_28 = arith.constant 2 : i32
    %81 = arith.muli %c2_i32_28, %c2_i32_27 : i32
    %c7_i32_29 = arith.constant 7 : i32
    %82 = arith.subi %c7_i32_29, %81 : i32
    %83 = arith.muli %arg0, %82 : i32
    %84 = arith.addi %c2_i32_27, %83 : i32
    %c0_30 = arith.constant 0 : index
    %85 = arith.index_cast %84 : i32 to index
    %c0_31 = arith.constant 0 : index
    %c0_32 = arith.constant 0 : index
    %86 = vector.load %arg2[%c0_30, %85, %c0_31, %c0_32] : memref<1x8x2x32xf32, #tpu.memory_space<vmem>>, vector<1x1x2x32xf32>
    %87 = vector.shape_cast %86 : vector<1x1x2x32xf32> to vector<2x32xf32>
    %cst_33 = arith.constant dense<0.000000e+00> : vector<2x32xf32>
    %88 = tpu.matmul %78, %4, %cst_33 {dimension_numbers = #tpu.dot_dimension_numbers<[1], [0], [0], [1], [0, 0, 1, 1], [], []>} : vector<2x8xf32>, vector<8x32xf32>, vector<2x32xf32> -> vector<2x32xf32>
    %89 = arith.addf %87, %88 : vector<2x32xf32>
    %90 = vector.extract_strided_slice %89 {offsets = [0, 0], sizes = [2, 8], strides = [1, 1]} : vector<2x32xf32> to vector<2x8xf32>
    %91 = arith.negf %90 : vector<2x8xf32>
    %92 = math.exp %91 : vector<2x8xf32>
    %cst_34 = arith.constant 1.000000e+00 : f32
    %93 = vector.broadcast %cst_34 : f32 to vector<2x8xf32>
    %94 = arith.addf %93, %92 : vector<2x8xf32>
    %95 = arith.divf %93, %94 : vector<2x8xf32>
    %96 = vector.extract_strided_slice %89 {offsets = [0, 8], sizes = [2, 8], strides = [1, 1]} : vector<2x32xf32> to vector<2x8xf32>
    %97 = arith.negf %96 : vector<2x8xf32>
    %98 = math.exp %97 : vector<2x8xf32>
    %cst_35 = arith.constant 1.000000e+00 : f32
    %99 = vector.broadcast %cst_35 : f32 to vector<2x8xf32>
    %100 = arith.addf %99, %98 : vector<2x8xf32>
    %101 = arith.divf %99, %100 : vector<2x8xf32>
    %102 = vector.extract_strided_slice %89 {offsets = [0, 16], sizes = [2, 8], strides = [1, 1]} : vector<2x32xf32> to vector<2x8xf32>
    %103 = math.tanh %102 : vector<2x8xf32>
    %104 = vector.extract_strided_slice %89 {offsets = [0, 24], sizes = [2, 8], strides = [1, 1]} : vector<2x32xf32> to vector<2x8xf32>
    %105 = arith.negf %104 : vector<2x8xf32>
    %106 = math.exp %105 : vector<2x8xf32>
    %cst_36 = arith.constant 1.000000e+00 : f32
    %107 = vector.broadcast %cst_36 : f32 to vector<2x8xf32>
    %108 = arith.addf %107, %106 : vector<2x8xf32>
    %109 = arith.divf %107, %108 : vector<2x8xf32>
    %110 = arith.mulf %101, %76 : vector<2x8xf32>
    %111 = arith.mulf %95, %103 : vector<2x8xf32>
    %112 = arith.addf %110, %111 : vector<2x8xf32>
    %113 = math.tanh %112 : vector<2x8xf32>
    %114 = arith.mulf %109, %113 : vector<2x8xf32>
    %115 = arith.maximumf %79, %114 : vector<2x8xf32>
    %116 = arith.addf %80, %114 : vector<2x8xf32>
    %c3_i32 = arith.constant 3 : i32
    %c2_i32_37 = arith.constant 2 : i32
    %117 = arith.muli %c2_i32_37, %c3_i32 : i32
    %c7_i32_38 = arith.constant 7 : i32
    %118 = arith.subi %c7_i32_38, %117 : i32
    %119 = arith.muli %arg0, %118 : i32
    %120 = arith.addi %c3_i32, %119 : i32
    %c0_39 = arith.constant 0 : index
    %121 = arith.index_cast %120 : i32 to index
    %c0_40 = arith.constant 0 : index
    %c0_41 = arith.constant 0 : index
    %122 = vector.load %arg2[%c0_39, %121, %c0_40, %c0_41] : memref<1x8x2x32xf32, #tpu.memory_space<vmem>>, vector<1x1x2x32xf32>
    %123 = vector.shape_cast %122 : vector<1x1x2x32xf32> to vector<2x32xf32>
    %cst_42 = arith.constant dense<0.000000e+00> : vector<2x32xf32>
    %124 = tpu.matmul %114, %4, %cst_42 {dimension_numbers = #tpu.dot_dimension_numbers<[1], [0], [0], [1], [0, 0, 1, 1], [], []>} : vector<2x8xf32>, vector<8x32xf32>, vector<2x32xf32> -> vector<2x32xf32>
    %125 = arith.addf %123, %124 : vector<2x32xf32>
    %126 = vector.extract_strided_slice %125 {offsets = [0, 0], sizes = [2, 8], strides = [1, 1]} : vector<2x32xf32> to vector<2x8xf32>
    %127 = arith.negf %126 : vector<2x8xf32>
    %128 = math.exp %127 : vector<2x8xf32>
    %cst_43 = arith.constant 1.000000e+00 : f32
    %129 = vector.broadcast %cst_43 : f32 to vector<2x8xf32>
    %130 = arith.addf %129, %128 : vector<2x8xf32>
    %131 = arith.divf %129, %130 : vector<2x8xf32>
    %132 = vector.extract_strided_slice %125 {offsets = [0, 8], sizes = [2, 8], strides = [1, 1]} : vector<2x32xf32> to vector<2x8xf32>
    %133 = arith.negf %132 : vector<2x8xf32>
    %134 = math.exp %133 : vector<2x8xf32>
    %cst_44 = arith.constant 1.000000e+00 : f32
    %135 = vector.broadcast %cst_44 : f32 to vector<2x8xf32>
    %136 = arith.addf %135, %134 : vector<2x8xf32>
    %137 = arith.divf %135, %136 : vector<2x8xf32>
    %138 = vector.extract_strided_slice %125 {offsets = [0, 16], sizes = [2, 8], strides = [1, 1]} : vector<2x32xf32> to vector<2x8xf32>
    %139 = math.tanh %138 : vector<2x8xf32>
    %140 = vector.extract_strided_slice %125 {offsets = [0, 24], sizes = [2, 8], strides = [1, 1]} : vector<2x32xf32> to vector<2x8xf32>
    %141 = arith.negf %140 : vector<2x8xf32>
    %142 = math.exp %141 : vector<2x8xf32>
    %cst_45 = arith.constant 1.000000e+00 : f32
    %143 = vector.broadcast %cst_45 : f32 to vector<2x8xf32>
    %144 = arith.addf %143, %142 : vector<2x8xf32>
    %145 = arith.divf %143, %144 : vector<2x8xf32>
    %146 = arith.mulf %137, %112 : vector<2x8xf32>
    %147 = arith.mulf %131, %139 : vector<2x8xf32>
    %148 = arith.addf %146, %147 : vector<2x8xf32>
    %149 = math.tanh %148 : vector<2x8xf32>
    %150 = arith.mulf %145, %149 : vector<2x8xf32>
    %151 = arith.maximumf %115, %150 : vector<2x8xf32>
    %152 = arith.addf %116, %150 : vector<2x8xf32>
    %c4_i32 = arith.constant 4 : i32
    %c2_i32_46 = arith.constant 2 : i32
    %153 = arith.muli %c2_i32_46, %c4_i32 : i32
    %c7_i32_47 = arith.constant 7 : i32
    %154 = arith.subi %c7_i32_47, %153 : i32
    %155 = arith.muli %arg0, %154 : i32
    %156 = arith.addi %c4_i32, %155 : i32
    %c0_48 = arith.constant 0 : index
    %157 = arith.index_cast %156 : i32 to index
    %c0_49 = arith.constant 0 : index
    %c0_50 = arith.constant 0 : index
    %158 = vector.load %arg2[%c0_48, %157, %c0_49, %c0_50] : memref<1x8x2x32xf32, #tpu.memory_space<vmem>>, vector<1x1x2x32xf32>
    %159 = vector.shape_cast %158 : vector<1x1x2x32xf32> to vector<2x32xf32>
    %cst_51 = arith.constant dense<0.000000e+00> : vector<2x32xf32>
    %160 = tpu.matmul %150, %4, %cst_51 {dimension_numbers = #tpu.dot_dimension_numbers<[1], [0], [0], [1], [0, 0, 1, 1], [], []>} : vector<2x8xf32>, vector<8x32xf32>, vector<2x32xf32> -> vector<2x32xf32>
    %161 = arith.addf %159, %160 : vector<2x32xf32>
    %162 = vector.extract_strided_slice %161 {offsets = [0, 0], sizes = [2, 8], strides = [1, 1]} : vector<2x32xf32> to vector<2x8xf32>
    %163 = arith.negf %162 : vector<2x8xf32>
    %164 = math.exp %163 : vector<2x8xf32>
    %cst_52 = arith.constant 1.000000e+00 : f32
    %165 = vector.broadcast %cst_52 : f32 to vector<2x8xf32>
    %166 = arith.addf %165, %164 : vector<2x8xf32>
    %167 = arith.divf %165, %166 : vector<2x8xf32>
    %168 = vector.extract_strided_slice %161 {offsets = [0, 8], sizes = [2, 8], strides = [1, 1]} : vector<2x32xf32> to vector<2x8xf32>
    %169 = arith.negf %168 : vector<2x8xf32>
    %170 = math.exp %169 : vector<2x8xf32>
    %cst_53 = arith.constant 1.000000e+00 : f32
    %171 = vector.broadcast %cst_53 : f32 to vector<2x8xf32>
    %172 = arith.addf %171, %170 : vector<2x8xf32>
    %173 = arith.divf %171, %172 : vector<2x8xf32>
    %174 = vector.extract_strided_slice %161 {offsets = [0, 16], sizes = [2, 8], strides = [1, 1]} : vector<2x32xf32> to vector<2x8xf32>
    %175 = math.tanh %174 : vector<2x8xf32>
    %176 = vector.extract_strided_slice %161 {offsets = [0, 24], sizes = [2, 8], strides = [1, 1]} : vector<2x32xf32> to vector<2x8xf32>
    %177 = arith.negf %176 : vector<2x8xf32>
    %178 = math.exp %177 : vector<2x8xf32>
    %cst_54 = arith.constant 1.000000e+00 : f32
    %179 = vector.broadcast %cst_54 : f32 to vector<2x8xf32>
    %180 = arith.addf %179, %178 : vector<2x8xf32>
    %181 = arith.divf %179, %180 : vector<2x8xf32>
    %182 = arith.mulf %173, %148 : vector<2x8xf32>
    %183 = arith.mulf %167, %175 : vector<2x8xf32>
    %184 = arith.addf %182, %183 : vector<2x8xf32>
    %185 = math.tanh %184 : vector<2x8xf32>
    %186 = arith.mulf %181, %185 : vector<2x8xf32>
    %187 = arith.maximumf %151, %186 : vector<2x8xf32>
    %188 = arith.addf %152, %186 : vector<2x8xf32>
    %c5_i32 = arith.constant 5 : i32
    %c2_i32_55 = arith.constant 2 : i32
    %189 = arith.muli %c2_i32_55, %c5_i32 : i32
    %c7_i32_56 = arith.constant 7 : i32
    %190 = arith.subi %c7_i32_56, %189 : i32
    %191 = arith.muli %arg0, %190 : i32
    %192 = arith.addi %c5_i32, %191 : i32
    %c0_57 = arith.constant 0 : index
    %193 = arith.index_cast %192 : i32 to index
    %c0_58 = arith.constant 0 : index
    %c0_59 = arith.constant 0 : index
    %194 = vector.load %arg2[%c0_57, %193, %c0_58, %c0_59] : memref<1x8x2x32xf32, #tpu.memory_space<vmem>>, vector<1x1x2x32xf32>
    %195 = vector.shape_cast %194 : vector<1x1x2x32xf32> to vector<2x32xf32>
    %cst_60 = arith.constant dense<0.000000e+00> : vector<2x32xf32>
    %196 = tpu.matmul %186, %4, %cst_60 {dimension_numbers = #tpu.dot_dimension_numbers<[1], [0], [0], [1], [0, 0, 1, 1], [], []>} : vector<2x8xf32>, vector<8x32xf32>, vector<2x32xf32> -> vector<2x32xf32>
    %197 = arith.addf %195, %196 : vector<2x32xf32>
    %198 = vector.extract_strided_slice %197 {offsets = [0, 0], sizes = [2, 8], strides = [1, 1]} : vector<2x32xf32> to vector<2x8xf32>
    %199 = arith.negf %198 : vector<2x8xf32>
    %200 = math.exp %199 : vector<2x8xf32>
    %cst_61 = arith.constant 1.000000e+00 : f32
    %201 = vector.broadcast %cst_61 : f32 to vector<2x8xf32>
    %202 = arith.addf %201, %200 : vector<2x8xf32>
    %203 = arith.divf %201, %202 : vector<2x8xf32>
    %204 = vector.extract_strided_slice %197 {offsets = [0, 8], sizes = [2, 8], strides = [1, 1]} : vector<2x32xf32> to vector<2x8xf32>
    %205 = arith.negf %204 : vector<2x8xf32>
    %206 = math.exp %205 : vector<2x8xf32>
    %cst_62 = arith.constant 1.000000e+00 : f32
    %207 = vector.broadcast %cst_62 : f32 to vector<2x8xf32>
    %208 = arith.addf %207, %206 : vector<2x8xf32>
    %209 = arith.divf %207, %208 : vector<2x8xf32>
    %210 = vector.extract_strided_slice %197 {offsets = [0, 16], sizes = [2, 8], strides = [1, 1]} : vector<2x32xf32> to vector<2x8xf32>
    %211 = math.tanh %210 : vector<2x8xf32>
    %212 = vector.extract_strided_slice %197 {offsets = [0, 24], sizes = [2, 8], strides = [1, 1]} : vector<2x32xf32> to vector<2x8xf32>
    %213 = arith.negf %212 : vector<2x8xf32>
    %214 = math.exp %213 : vector<2x8xf32>
    %cst_63 = arith.constant 1.000000e+00 : f32
    %215 = vector.broadcast %cst_63 : f32 to vector<2x8xf32>
    %216 = arith.addf %215, %214 : vector<2x8xf32>
    %217 = arith.divf %215, %216 : vector<2x8xf32>
    %218 = arith.mulf %209, %184 : vector<2x8xf32>
    %219 = arith.mulf %203, %211 : vector<2x8xf32>
    %220 = arith.addf %218, %219 : vector<2x8xf32>
    %221 = math.tanh %220 : vector<2x8xf32>
    %222 = arith.mulf %217, %221 : vector<2x8xf32>
    %223 = arith.maximumf %187, %222 : vector<2x8xf32>
    %224 = arith.addf %188, %222 : vector<2x8xf32>
    %c6_i32 = arith.constant 6 : i32
    %c2_i32_64 = arith.constant 2 : i32
    %225 = arith.muli %c2_i32_64, %c6_i32 : i32
    %c7_i32_65 = arith.constant 7 : i32
    %226 = arith.subi %c7_i32_65, %225 : i32
    %227 = arith.muli %arg0, %226 : i32
    %228 = arith.addi %c6_i32, %227 : i32
    %c0_66 = arith.constant 0 : index
    %229 = arith.index_cast %228 : i32 to index
    %c0_67 = arith.constant 0 : index
    %c0_68 = arith.constant 0 : index
    %230 = vector.load %arg2[%c0_66, %229, %c0_67, %c0_68] : memref<1x8x2x32xf32, #tpu.memory_space<vmem>>, vector<1x1x2x32xf32>
    %231 = vector.shape_cast %230 : vector<1x1x2x32xf32> to vector<2x32xf32>
    %cst_69 = arith.constant dense<0.000000e+00> : vector<2x32xf32>
    %232 = tpu.matmul %222, %4, %cst_69 {dimension_numbers = #tpu.dot_dimension_numbers<[1], [0], [0], [1], [0, 0, 1, 1], [], []>} : vector<2x8xf32>, vector<8x32xf32>, vector<2x32xf32> -> vector<2x32xf32>
    %233 = arith.addf %231, %232 : vector<2x32xf32>
    %234 = vector.extract_strided_slice %233 {offsets = [0, 0], sizes = [2, 8], strides = [1, 1]} : vector<2x32xf32> to vector<2x8xf32>
    %235 = arith.negf %234 : vector<2x8xf32>
    %236 = math.exp %235 : vector<2x8xf32>
    %cst_70 = arith.constant 1.000000e+00 : f32
    %237 = vector.broadcast %cst_70 : f32 to vector<2x8xf32>
    %238 = arith.addf %237, %236 : vector<2x8xf32>
    %239 = arith.divf %237, %238 : vector<2x8xf32>
    %240 = vector.extract_strided_slice %233 {offsets = [0, 8], sizes = [2, 8], strides = [1, 1]} : vector<2x32xf32> to vector<2x8xf32>
    %241 = arith.negf %240 : vector<2x8xf32>
    %242 = math.exp %241 : vector<2x8xf32>
    %cst_71 = arith.constant 1.000000e+00 : f32
    %243 = vector.broadcast %cst_71 : f32 to vector<2x8xf32>
    %244 = arith.addf %243, %242 : vector<2x8xf32>
    %245 = arith.divf %243, %244 : vector<2x8xf32>
    %246 = vector.extract_strided_slice %233 {offsets = [0, 16], sizes = [2, 8], strides = [1, 1]} : vector<2x32xf32> to vector<2x8xf32>
    %247 = math.tanh %246 : vector<2x8xf32>
    %248 = vector.extract_strided_slice %233 {offsets = [0, 24], sizes = [2, 8], strides = [1, 1]} : vector<2x32xf32> to vector<2x8xf32>
    %249 = arith.negf %248 : vector<2x8xf32>
    %250 = math.exp %249 : vector<2x8xf32>
    %cst_72 = arith.constant 1.000000e+00 : f32
    %251 = vector.broadcast %cst_72 : f32 to vector<2x8xf32>
    %252 = arith.addf %251, %250 : vector<2x8xf32>
    %253 = arith.divf %251, %252 : vector<2x8xf32>
    %254 = arith.mulf %245, %220 : vector<2x8xf32>
    %255 = arith.mulf %239, %247 : vector<2x8xf32>
    %256 = arith.addf %254, %255 : vector<2x8xf32>
    %257 = math.tanh %256 : vector<2x8xf32>
    %258 = arith.mulf %253, %257 : vector<2x8xf32>
    %259 = arith.maximumf %223, %258 : vector<2x8xf32>
    %260 = arith.addf %224, %258 : vector<2x8xf32>
    %c7_i32_73 = arith.constant 7 : i32
    %c2_i32_74 = arith.constant 2 : i32
    %261 = arith.muli %c2_i32_74, %c7_i32_73 : i32
    %c7_i32_75 = arith.constant 7 : i32
    %262 = arith.subi %c7_i32_75, %261 : i32
    %263 = arith.muli %arg0, %262 : i32
    %264 = arith.addi %c7_i32_73, %263 : i32
    %c0_76 = arith.constant 0 : index
    %265 = arith.index_cast %264 : i32 to index
    %c0_77 = arith.constant 0 : index
    %c0_78 = arith.constant 0 : index
    %266 = vector.load %arg2[%c0_76, %265, %c0_77, %c0_78] : memref<1x8x2x32xf32, #tpu.memory_space<vmem>>, vector<1x1x2x32xf32>
    %267 = vector.shape_cast %266 : vector<1x1x2x32xf32> to vector<2x32xf32>
    %cst_79 = arith.constant dense<0.000000e+00> : vector<2x32xf32>
    %268 = tpu.matmul %258, %4, %cst_79 {dimension_numbers = #tpu.dot_dimension_numbers<[1], [0], [0], [1], [0, 0, 1, 1], [], []>} : vector<2x8xf32>, vector<8x32xf32>, vector<2x32xf32> -> vector<2x32xf32>
    %269 = arith.addf %267, %268 : vector<2x32xf32>
    %270 = vector.extract_strided_slice %269 {offsets = [0, 0], sizes = [2, 8], strides = [1, 1]} : vector<2x32xf32> to vector<2x8xf32>
    %271 = arith.negf %270 : vector<2x8xf32>
    %272 = math.exp %271 : vector<2x8xf32>
    %cst_80 = arith.constant 1.000000e+00 : f32
    %273 = vector.broadcast %cst_80 : f32 to vector<2x8xf32>
    %274 = arith.addf %273, %272 : vector<2x8xf32>
    %275 = arith.divf %273, %274 : vector<2x8xf32>
    %276 = vector.extract_strided_slice %269 {offsets = [0, 8], sizes = [2, 8], strides = [1, 1]} : vector<2x32xf32> to vector<2x8xf32>
    %277 = arith.negf %276 : vector<2x8xf32>
    %278 = math.exp %277 : vector<2x8xf32>
    %cst_81 = arith.constant 1.000000e+00 : f32
    %279 = vector.broadcast %cst_81 : f32 to vector<2x8xf32>
    %280 = arith.addf %279, %278 : vector<2x8xf32>
    %281 = arith.divf %279, %280 : vector<2x8xf32>
    %282 = vector.extract_strided_slice %269 {offsets = [0, 16], sizes = [2, 8], strides = [1, 1]} : vector<2x32xf32> to vector<2x8xf32>
    %283 = math.tanh %282 : vector<2x8xf32>
    %284 = vector.extract_strided_slice %269 {offsets = [0, 24], sizes = [2, 8], strides = [1, 1]} : vector<2x32xf32> to vector<2x8xf32>
    %285 = arith.negf %284 : vector<2x8xf32>
    %286 = math.exp %285 : vector<2x8xf32>
    %cst_82 = arith.constant 1.000000e+00 : f32
    %287 = vector.broadcast %cst_82 : f32 to vector<2x8xf32>
    %288 = arith.addf %287, %286 : vector<2x8xf32>
    %289 = arith.divf %287, %288 : vector<2x8xf32>
    %290 = arith.mulf %281, %256 : vector<2x8xf32>
    %291 = arith.mulf %275, %283 : vector<2x8xf32>
    %292 = arith.addf %290, %291 : vector<2x8xf32>
    %293 = math.tanh %292 : vector<2x8xf32>
    %294 = arith.mulf %289, %293 : vector<2x8xf32>
    %295 = arith.maximumf %259, %294 : vector<2x8xf32>
    %296 = arith.addf %260, %294 : vector<2x8xf32>
    %c8_i32 = arith.constant 8 : i32
    %c0_83 = arith.constant 0 : index
    %c0_84 = arith.constant 0 : index
    %297 = vector.load %arg6[%c0_83, %c0_84] : memref<2x8xf32, #tpu.memory_space<vmem>>, vector<2x8xf32>
    tpu.vector_store %arg6[%c0_83, %c0_84], %294 {strides = array<i32>} : memref<2x8xf32, #tpu.memory_space<vmem>>, vector<2x8xf32>,
    %c0_85 = arith.constant 0 : index
    %c0_86 = arith.constant 0 : index
    %298 = vector.load %arg7[%c0_85, %c0_86] : memref<2x8xf32, #tpu.memory_space<vmem>>, vector<2x8xf32>
    tpu.vector_store %arg7[%c0_85, %c0_86], %292 {strides = array<i32>} : memref<2x8xf32, #tpu.memory_space<vmem>>, vector<2x8xf32>,
    %c0_87 = arith.constant 0 : index
    %c0_88 = arith.constant 0 : index
    %299 = vector.load %arg8[%c0_87, %c0_88] : memref<2x8xf32, #tpu.memory_space<vmem>>, vector<2x8xf32>
    tpu.vector_store %arg8[%c0_87, %c0_88], %295 {strides = array<i32>} : memref<2x8xf32, #tpu.memory_space<vmem>>, vector<2x8xf32>,
    %c0_89 = arith.constant 0 : index
    %c0_90 = arith.constant 0 : index
    %300 = vector.load %arg9[%c0_89, %c0_90] : memref<2x8xf32, #tpu.memory_space<vmem>>, vector<2x8xf32>
    tpu.vector_store %arg9[%c0_89, %c0_90], %296 {strides = array<i32>} : memref<2x8xf32, #tpu.memory_space<vmem>>, vector<2x8xf32>,
    %c0_i32_91 = arith.constant 0 : i32
    %301 = arith.cmpi eq, %arg1, %c0_i32_91 : i32
    %302 = arith.extui %301 : i1 to i32
    %c0_i32_92 = arith.constant 0 : i32
    %303 = arith.cmpi ne, %302, %c0_i32_92 : i32
    scf.if %303 {
      %c0_93 = arith.constant 0 : index
      %c0_94 = arith.constant 0 : index
      %c0_95 = arith.constant 0 : index
      %304 = vector.load %arg4[%c0_93, %c0_94, %c0_95] : memref<1x2x8xf32, #tpu.memory_space<vmem>>, vector<1x2x8xf32>
      %305 = vector.shape_cast %304 : vector<1x2x8xf32> to vector<2x8xf32>
      %306 = vector.shape_cast %295 : vector<2x8xf32> to vector<1x2x8xf32>
      tpu.vector_store %arg4[%c0_93, %c0_94, %c0_95], %306 {strides = array<i32>} : memref<1x2x8xf32, #tpu.memory_space<vmem>>, vector<1x2x8xf32>,
      %cst_96 = arith.constant 1.250000e-01 : f32
      %307 = vector.broadcast %cst_96 : f32 to vector<2x8xf32>
      %308 = arith.mulf %296, %307 : vector<2x8xf32>
      %c0_97 = arith.constant 0 : index
      %c0_98 = arith.constant 0 : index
      %c0_99 = arith.constant 0 : index
      %309 = vector.load %arg5[%c0_97, %c0_98, %c0_99] : memref<1x2x8xf32, #tpu.memory_space<vmem>>, vector<1x2x8xf32>
      %310 = vector.shape_cast %309 : vector<1x2x8xf32> to vector<2x8xf32>
      %311 = vector.shape_cast %308 : vector<2x8xf32> to vector<1x2x8xf32>
      tpu.vector_store %arg5[%c0_97, %c0_98, %c0_99], %311 {strides = array<i32>} : memref<1x2x8xf32, #tpu.memory_space<vmem>>, vector<1x2x8xf32>,
    } else {
    }
    return
  }
  func.func @transform_0(%arg0: i32, %arg1: i32) -> (i32, i32, i32, i32) {
    %c2_i32 = arith.constant 2 : i32
    %0 = arith.muli %c2_i32, %arg1 : i32
    %c0_i32 = arith.constant 0 : i32
    %1 = arith.subi %c0_i32, %0 : i32
    %2 = arith.muli %arg0, %1 : i32
    %3 = arith.addi %arg1, %2 : i32
    %c0_i32_0 = arith.constant 0 : i32
    %c0_i32_1 = arith.constant 0 : i32
    %c0_i32_2 = arith.constant 0 : i32
    return %arg0, %3, %c0_i32_0, %c0_i32_1 : i32, i32, i32, i32
  }
  func.func @transform_1(%arg0: i32, %arg1: i32) -> (i32, i32, i32) {
    %c0_i32 = arith.constant 0 : i32
    %c0_i32_0 = arith.constant 0 : i32
    %c0_i32_1 = arith.constant 0 : i32
    return %arg0, %c0_i32, %c0_i32_0 : i32, i32, i32
  }
  func.func @transform_2(%arg0: i32, %arg1: i32) -> (i32, i32, i32) {
    %c0_i32 = arith.constant 0 : i32
    %c0_i32_0 = arith.constant 0 : i32
    %c0_i32_1 = arith.constant 0 : i32
    return %arg0, %c0_i32, %c0_i32_0 : i32, i32, i32
  }
  func.func @transform_3(%arg0: i32, %arg1: i32) -> (i32, i32, i32) {
    %c0_i32 = arith.constant 0 : i32
    %c0_i32_0 = arith.constant 0 : i32
    %c0_i32_1 = arith.constant 0 : i32
    return %arg0, %c0_i32, %c0_i32_0 : i32, i32, i32
  }
}

module attributes {stable_mosaic.version = 11 : i64} {
  func.func @_conv_head_kernel(%arg0: i32, %arg1: memref<6x93xbf16, #tpu.memory_space<vmem>>, %arg2: memref<93x32xbf16, #tpu.memory_space<vmem>>, %arg3: memref<1x32xf32, #tpu.memory_space<vmem>>, %arg4: memref<2x2x8xf32, #tpu.memory_space<vmem>>, %arg5: memref<2x2x8xf32, #tpu.memory_space<vmem>>, %arg6: memref<32x32xbf16, #tpu.memory_space<vmem>>, %arg7: memref<1x32xf32, #tpu.memory_space<vmem>>, %arg8: memref<32x3xbf16, #tpu.memory_space<vmem>>, %arg9: memref<1x3xf32, #tpu.memory_space<vmem>>, %arg10: memref<2x3xf32, #tpu.memory_space<vmem>>, %arg11: memref<2x32xf32, #tpu.memory_space<vmem>>) attributes {dimension_semantics = [#tpu.dimension_semantics<arbitrary>], iteration_bounds = array<i64: 1>, scalar_prefetch = 0 : i64, scratch_operands = 1 : i64, tpu.core_type = #tpu.core_type<tc>, window_params = [{transform_indices = @transform_0, window_bounds = array<i64: 6, 93>}, {pipeline_mode = #tpu.pipeline_mode<synchronous>, transform_indices = @transform_1, window_bounds = array<i64: 93, 32>}, {pipeline_mode = #tpu.pipeline_mode<synchronous>, transform_indices = @transform_2, window_bounds = array<i64: 1, 32>}, {pipeline_mode = #tpu.pipeline_mode<synchronous>, transform_indices = @transform_3, window_bounds = array<i64: 2, 2, 8>}, {pipeline_mode = #tpu.pipeline_mode<synchronous>, transform_indices = @transform_4, window_bounds = array<i64: 2, 2, 8>}, {pipeline_mode = #tpu.pipeline_mode<synchronous>, transform_indices = @transform_5, window_bounds = array<i64: 32, 32>}, {pipeline_mode = #tpu.pipeline_mode<synchronous>, transform_indices = @transform_6, window_bounds = array<i64: 1, 32>}, {pipeline_mode = #tpu.pipeline_mode<synchronous>, transform_indices = @transform_7, window_bounds = array<i64: 32, 3>}, {pipeline_mode = #tpu.pipeline_mode<synchronous>, transform_indices = @transform_8, window_bounds = array<i64: 1, 3>}, {pipeline_mode = #tpu.pipeline_mode<synchronous>, transform_indices = @transform_9, window_bounds = array<i64: 2, 3>}]} {
    %c0_i32 = arith.constant 0 : i32
    %0 = arith.cmpi eq, %arg0, %c0_i32 : i32
    %1 = arith.extui %0 : i1 to i32
    %c0_i32_0 = arith.constant 0 : i32
    %2 = arith.cmpi ne, %1, %c0_i32_0 : i32
    scf.if %2 {
      %cst_13 = arith.constant 0.000000e+00 : f32
      %22 = vector.broadcast %cst_13 : f32 to vector<2x32xf32>
      %c0_14 = arith.constant 0 : index
      %c0_15 = arith.constant 0 : index
      %23 = vector.load %arg11[%c0_14, %c0_15] : memref<2x32xf32, #tpu.memory_space<vmem>>, vector<2x32xf32>
      tpu.vector_store %arg11[%c0_14, %c0_15], %22 {strides = array<i32>} : memref<2x32xf32, #tpu.memory_space<vmem>>, vector<2x32xf32>,
    } else {
    }
    %c0 = arith.constant 0 : index
    %c0_1 = arith.constant 0 : index
    %3 = vector.load %arg1[%c0, %c0_1] : memref<6x93xbf16, #tpu.memory_space<vmem>>, vector<6x93xbf16>
    %c0_2 = arith.constant 0 : index
    %c0_3 = arith.constant 0 : index
    %4 = vector.load %arg2[%c0_2, %c0_3] : memref<93x32xbf16, #tpu.memory_space<vmem>>, vector<93x32xbf16>
    %cst = arith.constant dense<0.000000e+00> : vector<6x32xf32>
    %5 = tpu.matmul %3, %4, %cst {dimension_numbers = #tpu.dot_dimension_numbers<[1], [0], [0], [1], [0, 0, 1, 1], [], []>} : vector<6x93xbf16>, vector<93x32xbf16>, vector<6x32xf32> -> vector<6x32xf32>
    %c0_4 = arith.constant 0 : index
    %c0_5 = arith.constant 0 : index
    %6 = vector.load %arg3[%c0_4, %c0_5] : memref<1x32xf32, #tpu.memory_space<vmem>>, vector<1x32xf32>
    %7 = vector.broadcast %6 : vector<1x32xf32> to vector<6x32xf32>
    %8 = arith.addf %5, %7 : vector<6x32xf32>
    %cst_6 = arith.constant 0.000000e+00 : f32
    %9 = vector.broadcast %cst_6 : f32 to vector<6x32xf32>
    %10 = arith.maximumf %8, %9 : vector<6x32xf32>
    %11 = vector.extract_strided_slice %10 {offsets = [0, 0], sizes = [2, 32], strides = [1, 1]} : vector<6x32xf32> to vector<2x32xf32>
    %12 = vector.extract_strided_slice %10 {offsets = [2, 0], sizes = [2, 32], strides = [1, 1]} : vector<6x32xf32> to vector<2x32xf32>
    %13 = vector.extract_strided_slice %10 {offsets = [4, 0], sizes = [2, 32], strides = [1, 1]} : vector<6x32xf32> to vector<2x32xf32>
    %14 = arith.maximumf %11, %12 : vector<2x32xf32>
    %15 = arith.maximumf %14, %13 : vector<2x32xf32>
    %c0_7 = arith.constant 0 : index
    %c0_8 = arith.constant 0 : index
    %16 = vector.load %arg11[%c0_7, %c0_8] : memref<2x32xf32, #tpu.memory_space<vmem>>, vector<2x32xf32>
    %17 = arith.maximumf %16, %15 : vector<2x32xf32>
    %c0_9 = arith.constant 0 : index
    %c0_10 = arith.constant 0 : index
    %18 = vector.load %arg11[%c0_9, %c0_10] : memref<2x32xf32, #tpu.memory_space<vmem>>, vector<2x32xf32>
    tpu.vector_store %arg11[%c0_9, %c0_10], %17 {strides = array<i32>} : memref<2x32xf32, #tpu.memory_space<vmem>>, vector<2x32xf32>,
    %c0_i32_11 = arith.constant 0 : i32
    %19 = arith.cmpi eq, %arg0, %c0_i32_11 : i32
    %20 = arith.extui %19 : i1 to i32
    %c0_i32_12 = arith.constant 0 : i32
    %21 = arith.cmpi ne, %20, %c0_i32_12 : i32
    scf.if %21 {
      %c0_13 = arith.constant 0 : index
      %c0_14 = arith.constant 0 : index
      %c0_15 = arith.constant 0 : index
      %22 = vector.load %arg4[%c0_13, %c0_14, %c0_15] : memref<2x2x8xf32, #tpu.memory_space<vmem>>, vector<1x2x8xf32>
      %23 = vector.shape_cast %22 : vector<1x2x8xf32> to vector<2x8xf32>
      %c1 = arith.constant 1 : index
      %c0_16 = arith.constant 0 : index
      %c0_17 = arith.constant 0 : index
      %24 = vector.load %arg4[%c1, %c0_16, %c0_17] : memref<2x2x8xf32, #tpu.memory_space<vmem>>, vector<1x2x8xf32>
      %25 = vector.shape_cast %24 : vector<1x2x8xf32> to vector<2x8xf32>
      %c0_18 = arith.constant 0 : index
      %c0_19 = arith.constant 0 : index
      %c0_20 = arith.constant 0 : index
      %26 = vector.load %arg5[%c0_18, %c0_19, %c0_20] : memref<2x2x8xf32, #tpu.memory_space<vmem>>, vector<1x2x8xf32>
      %27 = vector.shape_cast %26 : vector<1x2x8xf32> to vector<2x8xf32>
      %c1_21 = arith.constant 1 : index
      %c0_22 = arith.constant 0 : index
      %c0_23 = arith.constant 0 : index
      %28 = vector.load %arg5[%c1_21, %c0_22, %c0_23] : memref<2x2x8xf32, #tpu.memory_space<vmem>>, vector<1x2x8xf32>
      %29 = vector.shape_cast %28 : vector<1x2x8xf32> to vector<2x8xf32>
      %30 = tpu.concatenate %23, %25, %27, %29 in 1 : vector<2x8xf32>, vector<2x8xf32>, vector<2x8xf32>, vector<2x8xf32> -> vector<2x32xf32>
      %cst_24 = arith.constant 0.000000e+00 : f32
      %31 = vector.broadcast %cst_24 : f32 to vector<2x32xf32>
      %32 = arith.maximumf %30, %31 : vector<2x32xf32>
      %33 = arith.truncf %32 : vector<2x32xf32> to vector<2x32xbf16>
      %c0_25 = arith.constant 0 : index
      %c0_26 = arith.constant 0 : index
      %34 = vector.load %arg6[%c0_25, %c0_26] : memref<32x32xbf16, #tpu.memory_space<vmem>>, vector<32x32xbf16>
      %cst_27 = arith.constant dense<0.000000e+00> : vector<2x32xf32>
      %35 = tpu.matmul %33, %34, %cst_27 {dimension_numbers = #tpu.dot_dimension_numbers<[1], [0], [0], [1], [0, 0, 1, 1], [], []>} : vector<2x32xbf16>, vector<32x32xbf16>, vector<2x32xf32> -> vector<2x32xf32>
      %c0_28 = arith.constant 0 : index
      %c0_29 = arith.constant 0 : index
      %36 = vector.load %arg7[%c0_28, %c0_29] : memref<1x32xf32, #tpu.memory_space<vmem>>, vector<1x32xf32>
      %37 = vector.broadcast %36 : vector<1x32xf32> to vector<2x32xf32>
      %38 = arith.addf %35, %37 : vector<2x32xf32>
      %39 = arith.addf %30, %38 : vector<2x32xf32>
      %c0_30 = arith.constant 0 : index
      %c0_31 = arith.constant 0 : index
      %40 = vector.load %arg11[%c0_30, %c0_31] : memref<2x32xf32, #tpu.memory_space<vmem>>, vector<2x32xf32>
      %41 = arith.addf %39, %40 : vector<2x32xf32>
      %42 = arith.truncf %41 : vector<2x32xf32> to vector<2x32xbf16>
      %c0_32 = arith.constant 0 : index
      %c0_33 = arith.constant 0 : index
      %43 = vector.load %arg8[%c0_32, %c0_33] : memref<32x3xbf16, #tpu.memory_space<vmem>>, vector<32x3xbf16>
      %cst_34 = arith.constant dense<0.000000e+00> : vector<2x3xf32>
      %44 = tpu.matmul %42, %43, %cst_34 {dimension_numbers = #tpu.dot_dimension_numbers<[1], [0], [0], [1], [0, 0, 1, 1], [], []>} : vector<2x32xbf16>, vector<32x3xbf16>, vector<2x3xf32> -> vector<2x3xf32>
      %c0_35 = arith.constant 0 : index
      %c0_36 = arith.constant 0 : index
      %45 = vector.load %arg9[%c0_35, %c0_36] : memref<1x3xf32, #tpu.memory_space<vmem>>, vector<1x3xf32>
      %46 = vector.broadcast %45 : vector<1x3xf32> to vector<2x3xf32>
      %47 = arith.addf %44, %46 : vector<2x3xf32>
      %c0_37 = arith.constant 0 : index
      %c0_38 = arith.constant 0 : index
      %48 = vector.load %arg10[%c0_37, %c0_38] : memref<2x3xf32, #tpu.memory_space<vmem>>, vector<2x3xf32>
      tpu.vector_store %arg10[%c0_37, %c0_38], %47 {strides = array<i32>} : memref<2x3xf32, #tpu.memory_space<vmem>>, vector<2x3xf32>,
    } else {
    }
    return
  }
  func.func @transform_0(%arg0: i32) -> (i32, i32) {
    %c0_i32 = arith.constant 0 : i32
    %c0_i32_0 = arith.constant 0 : i32
    return %arg0, %c0_i32 : i32, i32
  }
  func.func @transform_1(%arg0: i32) -> (i32, i32) {
    %c0_i32 = arith.constant 0 : i32
    %c0_i32_0 = arith.constant 0 : i32
    %c0_i32_1 = arith.constant 0 : i32
    return %c0_i32, %c0_i32_0 : i32, i32
  }
  func.func @transform_2(%arg0: i32) -> (i32, i32) {
    %c0_i32 = arith.constant 0 : i32
    %c0_i32_0 = arith.constant 0 : i32
    %c0_i32_1 = arith.constant 0 : i32
    return %c0_i32, %c0_i32_0 : i32, i32
  }
  func.func @transform_3(%arg0: i32) -> (i32, i32, i32) {
    %c0_i32 = arith.constant 0 : i32
    %c0_i32_0 = arith.constant 0 : i32
    %c0_i32_1 = arith.constant 0 : i32
    %c0_i32_2 = arith.constant 0 : i32
    return %c0_i32, %c0_i32_0, %c0_i32_1 : i32, i32, i32
  }
  func.func @transform_4(%arg0: i32) -> (i32, i32, i32) {
    %c0_i32 = arith.constant 0 : i32
    %c0_i32_0 = arith.constant 0 : i32
    %c0_i32_1 = arith.constant 0 : i32
    %c0_i32_2 = arith.constant 0 : i32
    return %c0_i32, %c0_i32_0, %c0_i32_1 : i32, i32, i32
  }
  func.func @transform_5(%arg0: i32) -> (i32, i32) {
    %c0_i32 = arith.constant 0 : i32
    %c0_i32_0 = arith.constant 0 : i32
    %c0_i32_1 = arith.constant 0 : i32
    return %c0_i32, %c0_i32_0 : i32, i32
  }
  func.func @transform_6(%arg0: i32) -> (i32, i32) {
    %c0_i32 = arith.constant 0 : i32
    %c0_i32_0 = arith.constant 0 : i32
    %c0_i32_1 = arith.constant 0 : i32
    return %c0_i32, %c0_i32_0 : i32, i32
  }
  func.func @transform_7(%arg0: i32) -> (i32, i32) {
    %c0_i32 = arith.constant 0 : i32
    %c0_i32_0 = arith.constant 0 : i32
    %c0_i32_1 = arith.constant 0 : i32
    return %c0_i32, %c0_i32_0 : i32, i32
  }
  func.func @transform_8(%arg0: i32) -> (i32, i32) {
    %c0_i32 = arith.constant 0 : i32
    %c0_i32_0 = arith.constant 0 : i32
    %c0_i32_1 = arith.constant 0 : i32
    return %c0_i32, %c0_i32_0 : i32, i32
  }
  func.func @transform_9(%arg0: i32) -> (i32, i32) {
    %c0_i32 = arith.constant 0 : i32
    %c0_i32_0 = arith.constant 0 : i32
    %c0_i32_1 = arith.constant 0 : i32
    return %c0_i32, %c0_i32_0 : i32, i32
  }
}

</mosaic_0001>

<llo_original>
// kernel: bert_lstm_cnn2_forward.3
$region0: #{bert_lstm_cnn2_forward.3}
  #allocation0 [shape = 'u32[]', space=smem, size = 0x4, offset = 0x4, fixed_abs, tag = 'smem constant byte address 0x4 - core index']
  #allocation1 [shape = 'u32[144,128]{1,0:T(1,128)}', space=vmem, size = 0x12000, scoped, tag = 'internal scratch']
  %s0 = inlined_call_operand.hbm [shape: bf16[16,32], index: 0, kind: input, shape index: {}]
  %s1 = inlined_call_operand.hbm [shape: bf16[2,32,32], index: 1, kind: input, shape index: {}]
  %s2 = inlined_call_operand.hbm [shape: f32[2,1,32], index: 2, kind: input, shape index: {}]
  %s3 = inlined_call_operand.hbm [shape: f32[2,16,32], index: 3, kind: output, shape index: {}]
  %s4 = sld [smem:[#allocation0]]
  $region57: #{bert_lstm_cnn2_forward.3} parent=0
    _
  %s6 = ssub.s32 1, %s4
  %s7 = scalar_select 0, %s6, %s4
  $region1: #{bert_lstm_cnn2_forward.3} parent=0
    #allocation2 [shape = 'u8[4096]{0}', space=vmem, size = 0x1000, scoped, tag = 'input window, operand 0, single buffered']
    #allocation3 [shape = 's32[2]{0}', space=sflag, size = 0x8, scoped, tag = 'scoped memory for bert_lstm_cnn2_forward.3']
    #allocation4 [shape = 's32[2]{0}', space=sflag, size = 0x8, scoped, tag = 'scoped memory for bert_lstm_cnn2_forward.3']
    #allocation5 [shape = 'u8[16384]{0}', space=vmem, size = 0x4000, scoped, tag = 'input window, operand 1']
    #allocation6 [shape = 's32[2]{0}', space=sflag, size = 0x8, scoped, tag = 'scoped memory for bert_lstm_cnn2_forward.3']
    #allocation7 [shape = 'u8[1024]{0}', space=vmem, size = 0x400, scoped, tag = 'input window, operand 2']
    #allocation8 [shape = 'u8[16384]{0}', space=vmem, size = 0x4000, scoped, tag = 'output window, operand 0']
    %8 = vsyncpa [#allocation3], 0
    %9 = vsyncpa [#allocation6], 0
    %s10 = scalar_lea.sflag [#allocation6], 1
    %11 = vsyncpa %s10, 0
    %12 = vsyncpa [#allocation4], 0
    %s13 = scalar_lea.sflag [#allocation4], 1
    %14 = vsyncpa %s13, 0
    loop: start=0, step=1, limit=4
    $region2: #{bert_lstm_cnn2_forward.3} parent=1 // loop_pre_header
      _
    $region3: #{bert_lstm_cnn2_forward.3} parent=1 // loop_header
      %s16 = sphi 0, %s20
      %p17 = scmp.ge.s32.totalorder %s16, 4
      %s23 = sphi 0, %s35
      %s24 = sphi 0, %s31
      %s25 = sphi 0, %s23
      %s26 = sphi 0, %s24
      %s27 = sphi 0, %s25
      %s28 = sphi 0, %s26
      %s38 = sphi 0, %s40
      %s41 = sphi 0, %s38
      %s42 = sphi 0, %s41
      %s58 = sphi 0, %s42
      %s64 = sphi 0, %s66
      %s67 = sphi 0, %s64
      %s68 = sphi 0, %s67
      %s84 = sphi 0, %s68
      %s90 = sphi 0, %s92
      %s93 = sphi 0, %s90
      %s94 = sphi 0, %s93
      %s110 = sphi 0, %s94
      %s118 = sphi 0, %s120
      %s121 = sphi 0, %s118
      %s122 = sphi 0, %s121
      %s138 = sphi 0, %s122
    $region4: #{bert_lstm_cnn2_forward.3} parent=1 // loop_header_branch
      %19 = sbr.rel (%p17) target = $region8
    $region5: #{bert_lstm_cnn2_forward.3} parent=1 // loop_body
      %s21 = ssub.s32 %s16, 1
      %s22 = ssub.s32 %s16, 2
      %s29 = sadd.s32 1, %s24
      %p30 = scmp.ge.s32.totalorder %s29, 2
      %s31 = scalar_select %p30, 0, %s29
      %s32 = sadd.s32 1, %s23
      %s33 = scalar_select %p30, %s32, %s23
      %p34 = scmp.ge.s32.totalorder %s33, 1
      %s35 = scalar_select %p34, 0, %s33
      %s36 = ssub.s32 %s23, %s35
      %p37 = scmp.eq.s32.totalorder %s36, 0
      %s39 = sadd.s32 %s38, 1
      %s40 = scalar_select %p37, %s38, %s39
      %p43 = pneg %p37
      %p44 = scmp.eq.s32.totalorder %s16, 1
      %p45 = por %p43, %p44
      %p46 = scmp.ne.s32.totalorder %s38, %s41
      %p47 = scmp.eq.s32.totalorder %s16, 0
      %p48 = por %p46, %p47
      %p49 = scmp.ne.s32.totalorder %s38, %s41
      %p50 = scmp.eq.s32.totalorder %s21, 1
      %p51 = por %p49, %p50
      %p52 = scmp.ne.s32.totalorder %s41, %s42
      %p53 = scmp.eq.s32.totalorder %s21, 0
      %p54 = por %p52, %p53
      %p55 = scmp.ne.s32.totalorder %s41, %s42
      %p56 = scmp.eq.s32.totalorder %s22, 1
      %p57 = por %p55, %p56
      %p59 = scmp.ne.s32.totalorder %s42, %s58
      %p60 = scmp.eq.s32.totalorder %s22, 0
      %p61 = por %p59, %p60
      %s62 = ssub.s32 %s24, %s31
      %p63 = scmp.eq.s32.totalorder %s62, 0
      %s65 = sadd.s32 %s64, 1
      %s66 = scalar_select %p63, %s64, %s65
      %p69 = pneg %p63
      %p70 = scmp.eq.s32.totalorder %s16, 1
      %p71 = por %p69, %p70
      %p72 = scmp.ne.s32.totalorder %s64, %s67
      %p73 = scmp.eq.s32.totalorder %s16, 0
      %p74 = por %p72, %p73
      %p75 = scmp.ne.s32.totalorder %s64, %s67
      %p76 = scmp.eq.s32.totalorder %s21, 1
      %p77 = por %p75, %p76
      %p78 = scmp.ne.s32.totalorder %s67, %s68
      %p79 = scmp.eq.s32.totalorder %s21, 0
      %p80 = por %p78, %p79
      %p81 = scmp.ne.s32.totalorder %s67, %s68
      %p82 = scmp.eq.s32.totalorder %s22, 1
      %p83 = por %p81, %p82
      %p85 = scmp.ne.s32.totalorder %s68, %s84
      %p86 = scmp.eq.s32.totalorder %s22, 0
      %p87 = por %p85, %p86
      %s88 = ssub.s32 %s24, %s31
      %p89 = scmp.eq.s32.totalorder %s88, 0
      %s91 = sadd.s32 %s90, 1
      %s92 = scalar_select %p89, %s90, %s91
      %p95 = pneg %p89
      %p96 = scmp.eq.s32.totalorder %s16, 1
      %p97 = por %p95, %p96
      %p98 = scmp.ne.s32.totalorder %s90, %s93
      %p99 = scmp.eq.s32.totalorder %s16, 0
      %p100 = por %p98, %p99
      %p101 = scmp.ne.s32.totalorder %s90, %s93
      %p102 = scmp.eq.s32.totalorder %s21, 1
      %p103 = por %p101, %p102
      %p104 = scmp.ne.s32.totalorder %s93, %s94
      %p105 = scmp.eq.s32.totalorder %s21, 0
      %p106 = por %p104, %p105
      %p107 = scmp.ne.s32.totalorder %s93, %s94
      %p108 = scmp.eq.s32.totalorder %s22, 1
      %p109 = por %p107, %p108
      %p111 = scmp.ne.s32.totalorder %s94, %s110
      %p112 = scmp.eq.s32.totalorder %s22, 0
      %p113 = por %p111, %p112
      %s114 = ssub.s32 %s24, %s31
      %s115 = ssub.s32 %s23, %s35
      %s116 = sor.u32 %s114, %s115
      %p117 = scmp.eq.s32.totalorder %s116, 0
      %s119 = sadd.s32 %s118, 1
      %s120 = scalar_select %p117, %s118, %s119
      %p123 = pneg %p117
      %p124 = scmp.eq.s32.totalorder %s16, 1
      %p125 = por %p123, %p124
      %p126 = scmp.ne.s32.totalorder %s118, %s121
      %p127 = scmp.eq.s32.totalorder %s16, 0
      %p128 = por %p126, %p127
      %p129 = scmp.ne.s32.totalorder %s118, %s121
      %p130 = scmp.eq.s32.totalorder %s21, 1
      %p131 = por %p129, %p130
      %p132 = scmp.ne.s32.totalorder %s121, %s122
      %p133 = scmp.eq.s32.totalorder %s21, 0
      %p134 = por %p132, %p133
      %p135 = scmp.ne.s32.totalorder %s121, %s122
      %p136 = scmp.eq.s32.totalorder %s22, 1
      %p137 = por %p135, %p136
      %p139 = scmp.ne.s32.totalorder %s122, %s138
      %p140 = scmp.eq.s32.totalorder %s22, 0
      %p141 = por %p139, %p140
      %p142 = scmp.le.s32.totalorder 1, %s16
      %p143 = scmp.lt.s32.totalorder %s16, 3
      %p144 = pnand %p142, %p143
      %p145 = pneg %p144
      // Predicated region
      $region9: #{bert_lstm_cnn2_forward.3} parent=5 // pred_check
        _
      $region10: #{bert_lstm_cnn2_forward.3} parent=5 // pred_check_branch
        %147 = sbr.rel (%p144) target = $region12
      $region11: #{bert_lstm_cnn2_forward.3} parent=5 // pred_region
        %s148 = ssub.s32 %s16, 1
        // Predicated region
        $region13: #{bert_lstm_cnn2_forward.3} parent=11 // pred_check
          %p149 = pneg %p54
        $region14: #{bert_lstm_cnn2_forward.3} parent=11 // pred_check_branch
          %151 = sbr.rel (%p149) target = $region16
        $region15: #{bert_lstm_cnn2_forward.3} parent=11 // pred_region
          %s152 = smul.u32 2, %s25
          %s154 = ssub.s32 128, 128
          %155 = vsyncadd [#allocation3], %s154
          %s156 = smul.addr %s152, 64
          %s157 = scalar_lea.hbm %s0, %s156
          %s158 = sshll.u32 [#allocation2], 4
          %s159 = int_to_ptr.vmem [resolvable:$true] %s158
          %164 = dma.hbm_to_vmem [thread:$0]  %s157, 128, %s159, [#allocation3], 64, 64, 4
        $region16: #{bert_lstm_cnn2_forward.3} parent=11 // pred_fallthru
          _
      $region12: #{bert_lstm_cnn2_forward.3} parent=5 // pred_fallthru
        _
      %p165 = scmp.lt.s32.totalorder %s16, 2
      // Predicated region
      $region17: #{bert_lstm_cnn2_forward.3} parent=5 // pred_check
        %p166 = pneg %p165
      $region18: #{bert_lstm_cnn2_forward.3} parent=5 // pred_check_branch
        %168 = sbr.rel (%p166) target = $region20
      $region19: #{bert_lstm_cnn2_forward.3} parent=5 // pred_region
        // Predicated region
        $region21: #{bert_lstm_cnn2_forward.3} parent=19 // pred_check
          %p169 = pneg %p74
        $region22: #{bert_lstm_cnn2_forward.3} parent=19 // pred_check_branch
          %171 = sbr.rel (%p169) target = $region24
        $region23: #{bert_lstm_cnn2_forward.3} parent=19 // pred_region
          %s172 = sand.u32 %s16, 1
          %s173 = scalar_lea.sflag [#allocation6], %s172
          %s174 = sand.u32 %s64, 1
          %s175 = smul.addr %s174, 16
          %s176 = scalar_lea.vmem [#allocation5], %s175
          %s178 = ssub.s32 256, 256
          %179 = vsyncadd %s173, %s178
          %s180 = smul.addr %s24, 4
          %s181 = smul.addr %s180, 64
          %s182 = scalar_lea.hbm %s1, %s181
          %s183 = sshll.u32 %s176, 4
          %s184 = int_to_ptr.vmem [resolvable:$true] %s183
          %189 = dma.hbm_to_vmem [thread:$0]  %s182, 256, %s184, %s173, 64, 64, 4
        $region24: #{bert_lstm_cnn2_forward.3} parent=19 // pred_fallthru
          _
        // Predicated region
        $region25: #{bert_lstm_cnn2_forward.3} parent=19 // pred_check
          %p190 = pneg %p100
        $region26: #{bert_lstm_cnn2_forward.3} parent=19 // pred_check_branch
          %192 = sbr.rel (%p190) target = $region28
        $region27: #{bert_lstm_cnn2_forward.3} parent=19 // pred_region
          %s193 = sand.u32 %s16, 1
          %s194 = scalar_lea.sflag [#allocation6], %s193
          %s195 = sand.u32 %s90, 1
          %s196 = scalar_lea.vmem [#allocation7], %s195
          %s198 = ssub.s32 16, 16
          %199 = vsyncadd %s194, %s198
          %s200 = smul.addr %s24, 16
          %s201 = scalar_lea.hbm %s2, %s200
          %s203 = sshll.u32 %s196, 4
          %s204 = int_to_ptr.vmem [resolvable:$true] %s203
          %206 = dma.hbm_to_vmem [thread:$0]  %s201, 16, %s204, %s194
        $region28: #{bert_lstm_cnn2_forward.3} parent=19 // pred_fallthru
          _
      $region20: #{bert_lstm_cnn2_forward.3} parent=5 // pred_fallthru
        _
      %p207 = scmp.le.s32.totalorder 1, %s16
      %p208 = scmp.lt.s32.totalorder %s16, 3
      %p209 = pnand %p207, %p208
      %p210 = pneg %p209
      // Predicated region
      $region29: #{bert_lstm_cnn2_forward.3} parent=5 // pred_check
        _
      $region30: #{bert_lstm_cnn2_forward.3} parent=5 // pred_check_branch
        %212 = sbr.rel (%p209) target = $region32
      $region31: #{bert_lstm_cnn2_forward.3} parent=5 // pred_region
        %s213 = ssub.s32 %s16, 1
        // Predicated region
        $region33: #{bert_lstm_cnn2_forward.3} parent=31 // pred_check
          %p214 = pneg %p54
        $region34: #{bert_lstm_cnn2_forward.3} parent=31 // pred_check_branch
          %216 = sbr.rel (%p214) target = $region36
        $region35: #{bert_lstm_cnn2_forward.3} parent=31 // pred_region
          %217 = dma.done [#allocation3], 128
        $region36: #{bert_lstm_cnn2_forward.3} parent=31 // pred_fallthru
          _
        %s218 = sand.u32 %s21, 1
        %s219 = scalar_lea.sflag [#allocation6], %s218
        %s220 = sand.u32 %s67, 1
        %s221 = smul.addr %s220, 16
        %s222 = scalar_lea.vmem [#allocation5], %s221
        // Predicated region
        $region37: #{bert_lstm_cnn2_forward.3} parent=31 // pred_check
          %p223 = pneg %p80
        $region38: #{bert_lstm_cnn2_forward.3} parent=31 // pred_check_branch
          %225 = sbr.rel (%p223) target = $region40
        $region39: #{bert_lstm_cnn2_forward.3} parent=31 // pred_region
          %226 = dma.done %s219, 256
        $region40: #{bert_lstm_cnn2_forward.3} parent=31 // pred_fallthru
          _
        %s227 = sand.u32 %s21, 1
        %s228 = scalar_lea.sflag [#allocation6], %s227
        %s229 = sand.u32 %s93, 1
        %s230 = scalar_lea.vmem [#allocation7], %s229
        // Predicated region
        $region41: #{bert_lstm_cnn2_forward.3} parent=31 // pred_check
          %p231 = pneg %p106
        $region42: #{bert_lstm_cnn2_forward.3} parent=31 // pred_check_branch
          %233 = sbr.rel (%p231) target = $region44
        $region43: #{bert_lstm_cnn2_forward.3} parent=31 // pred_region
          %234 = dma.done %s228, 16
        $region44: #{bert_lstm_cnn2_forward.3} parent=31 // pred_fallthru
          _
        %p235 = pneg %p54
        %p236 = pneg %p51
        %s237 = sand.u32 %s21, 1
        %s238 = scalar_lea.sflag [#allocation6], %s237
        %s239 = sand.u32 %s67, 1
        %s240 = smul.addr %s239, 16
        %s241 = scalar_lea.vmem [#allocation5], %s240
        %p242 = pneg %p80
        %p243 = pneg %p77
        %s244 = sand.u32 %s21, 1
        %s245 = scalar_lea.sflag [#allocation6], %s244
        %s246 = sand.u32 %s93, 1
        %s247 = scalar_lea.vmem [#allocation7], %s246
        %p248 = pneg %p106
        %p249 = pneg %p103
        %p250 = pneg %p134
        %p251 = pneg %p131
        %s252 = sand.u32 %s121, 1
        %s253 = scalar_lea.sflag [#allocation4], %s252
        %s254 = sand.u32 %s121, 1
        %s255 = smul.addr %s254, 16
        %s256 = scalar_lea.vmem [#allocation8], %s255
        %s257 = smul.u32 2, %s25
        %s258 = smul.u32 2, %s25
        %v260 = vld [vmem:[#allocation2] sm:$0xf]
        %v261 = vld [vmem:[#allocation2 + $0x4] sm:$0xf]
        %v262 = vld [vmem:[%s222] sm:$0xf]
        %v263 = vld [vmem:[%s222 + $0x4] sm:$0xf]
        %v264 = vld [vmem:[%s222 + $0x8] sm:$0xf]
        %v265 = vld [vmem:[%s222 + $0xc] sm:$0xf]
        %v266 = vld [vmem:[%s230] sm:$0x1]
        %v268 = vlaneseq
        %v269 = vshrl.u32 %v268, 7
        %v270 = vsub.s32 0, %v269
        %v271 = vrot.slane %v266, %v270
        %v275 = vunpack.c.l.b16 %v260
        %v276 = vunpack.c.l.b16 %v261
        %v277 = vpack.c.b16 %v276, %v275
        %v282 = vunpack.c.l.b16 %v262
        %v283 = vunpack.c.l.b16 %v263
        %v284 = vunpack.c.l.b16 %v264
        %v285 = vunpack.c.l.b16 %v265
        %v286 = vpack.c.b16 %v283, %v282
        %v287 = vpack.c.b16 %v285, %v284
        %vm290 = vcmask 261120
        %v292 = vsel %vm290, %v277, 0
        %294 = vmatprep.subr.bf16.mxu0 0
        %295 = vmatpush1.bf16.msra.mxu0 %v286
        %296 = vmatprep.subr.bf16.mxu0 0
        %297 = vmatpush1.bf16.msra.mxu0 %v287
        %298 = vmatprep.subr.bf16.mxu0 0
        %299 = vmatpush1.bf16.msra.mxu0 0
        %300 = vmatprep.subr.bf16.mxu0 0
        %301 = vmatpush1.bf16.msra.mxu0 0
        %302 = vmatprep.subr.bf16.mxu0 0
        %303 = vmatpush1.bf16.msra.mxu0 0
        %304 = vmatprep.subr.bf16.mxu0 0
        %305 = vmatpush1.bf16.msra.mxu0 0
        %306 = vmatprep.subr.bf16.mxu0 0
        %307 = vmatpush1.bf16.msra.mxu0 0
        %308 = vmatprep.subr.bf16.mxu0 0
        %309 = vmatpush1.bf16.msra.mxu0 0
        %310 = vmatprep.subr.bf16.mxu0 0
        %311 = vmatpush1.bf16.msra.mxu0 0
        %312 = vmatprep.subr.bf16.mxu0 0
        %313 = vmatpush1.bf16.msra.mxu0 0
        %314 = vmatprep.subr.bf16.mxu0 0
        %315 = vmatpush1.bf16.msra.mxu0 0
        %316 = vmatprep.subr.bf16.mxu0 0
        %317 = vmatpush1.bf16.msra.mxu0 0
        %318 = vmatprep.subr.bf16.mxu0 0
        %319 = vmatpush1.bf16.msra.mxu0 0
        %320 = vmatprep.subr.bf16.mxu0 0
        %321 = vmatpush1.bf16.msra.mxu0 0
        %322 = vmatprep.subr.bf16.mxu0 0
        %323 = vmatpush1.bf16.msra.mxu0 0
        %324 = vmatprep.subr.bf16.mxu0 0
        %325 = vmatpush1.bf16.msra.mxu0 0
        %326 = vmatprep.mubr.bf16.mxu0 0
        %327 = vmatmul.mubr.bf16.gmra.mrb[0].mxu0 %v292
        %v328 = vpop.f32.mrb[0].mxu0
        %v329 = vadd.f32 %v271, %v328
        %v330 = vpop.f32.mrb[0].mxu0
        %v331 = vpop.f32.mrb[0].mxu0
        %v332 = vadd.f32 %v271, %v331
        %v333 = vpop.f32.mrb[0].mxu0
        %334 = vdwg.mxu0
        %335 = vst.msk [vmem:[%s256] sm:$0xff] %vm290, %v329
        %336 = vst.msk [vmem:[%s256 + $0x8] sm:$0xff] %vm290, %v332
        %s337 = sand.u32 %s121, 1
        %s338 = scalar_lea.sflag [#allocation4], %s337
        %s339 = sand.u32 %s121, 1
        %s340 = smul.addr %s339, 16
        %s341 = scalar_lea.vmem [#allocation8], %s340
        // Predicated region
        $region45: #{bert_lstm_cnn2_forward.3} parent=31 // pred_check
          %p342 = pneg %p131
        $region46: #{bert_lstm_cnn2_forward.3} parent=31 // pred_check_branch
          %344 = sbr.rel (%p342) target = $region48
        $region47: #{bert_lstm_cnn2_forward.3} parent=31 // pred_region
          %s345 = smul.u32 2, %s25
          %s347 = ssub.s32 256, 256
          %348 = vsyncadd %s338, %s347
          %s349 = smul.addr %s26, 2
          %s350 = sadd.s32 %s345, %s349
          %s351 = smul.addr %s350, 128
          %s352 = scalar_lea.hbm %s3, %s351
          %s353 = sshll.u32 %s341, 4
          %s354 = int_to_ptr.vmem [resolvable:$true] %s353
          %359 = dma.vmem_to_hbm [thread:$0]  %s354, 256, %s352, %s338, 128, 128, 8
        $region48: #{bert_lstm_cnn2_forward.3} parent=31 // pred_fallthru
          _
      $region32: #{bert_lstm_cnn2_forward.3} parent=5 // pred_fallthru
        _
      %p360 = scmp.le.s32.totalorder 2, %s16
      // Predicated region
      $region49: #{bert_lstm_cnn2_forward.3} parent=5 // pred_check
        %p361 = pneg %p360
      $region50: #{bert_lstm_cnn2_forward.3} parent=5 // pred_check_branch
        %363 = sbr.rel (%p361) target = $region52
      $region51: #{bert_lstm_cnn2_forward.3} parent=5 // pred_region
        %s364 = ssub.s32 %s16, 2
        // Predicated region
        $region53: #{bert_lstm_cnn2_forward.3} parent=51 // pred_check
          %p365 = pneg %p137
        $region54: #{bert_lstm_cnn2_forward.3} parent=51 // pred_check_branch
          %367 = sbr.rel (%p365) target = $region56
        $region55: #{bert_lstm_cnn2_forward.3} parent=51 // pred_region
          %s368 = sand.u32 %s122, 1
          %s369 = scalar_lea.sflag [#allocation4], %s368
          %s370 = sand.u32 %s122, 1
          %s371 = smul.addr %s370, 16
          %s372 = scalar_lea.vmem [#allocation8], %s371
          %373 = dma.done %s369, 256
        $region56: #{bert_lstm_cnn2_forward.3} parent=51 // pred_fallthru
          _
      $region52: #{bert_lstm_cnn2_forward.3} parent=5 // pred_fallthru
        _
    $region6: #{bert_lstm_cnn2_forward.3} parent=1 // loop_footer
      %s20 = sadd.s32 1, %s16
    $region7: #{bert_lstm_cnn2_forward.3} parent=1 // loop_footer_branch
      %15 = sbr.rel target = $region3
    $region8: #{bert_lstm_cnn2_forward.3} parent=1 // loop_exit
      _
    %374 = vsyncpa [#allocation3], 1
    %s375 = scalar_lea.sflag [#allocation3], 1
    %376 = vsyncpa %s375, 1
    %377 = vsyncpa [#allocation6], 1
    %s378 = scalar_lea.sflag [#allocation6], 1
    %379 = vsyncpa %s378, 1
    %380 = vsyncpa [#allocation4], 1
    %s381 = scalar_lea.sflag [#allocation4], 1
    %382 = vsyncpa %s381, 1

// kernel: bert_lstm_cnn2_forward.5
$region0: #{bert_lstm_cnn2_forward.5}
  #allocation0 [shape = 'u32[]', space=smem, size = 0x4, offset = 0x4, fixed_abs, tag = 'smem constant byte address 0x4 - core index']
  #allocation1 [shape = 'u32[144,128]{1,0:T(1,128)}', space=vmem, size = 0x12000, scoped, tag = 'internal scratch']
  #allocation2 [shape = 'f32[2,32]{1,0:T(2,128)}', space=vmem, size = 0x400, scoped, tag = 'scratch operand']
  %s0 = inlined_call_operand.hbm [shape: bf16[6,93], index: 0, kind: input, shape index: {}]
  %s1 = inlined_call_operand.hbm [shape: bf16[93,32], index: 1, kind: input, shape index: {}]
  %s2 = inlined_call_operand.hbm [shape: f32[1,32], index: 2, kind: input, shape index: {}]
  %s3 = inlined_call_operand.hbm [shape: f32[2,2,8], index: 3, kind: input, shape index: {}]
  %s4 = inlined_call_operand.hbm [shape: f32[2,2,8], index: 4, kind: input, shape index: {}]
  %s5 = inlined_call_operand.hbm [shape: bf16[32,32], index: 5, kind: input, shape index: {}]
  %s6 = inlined_call_operand.hbm [shape: f32[1,32], index: 6, kind: input, shape index: {}]
  %s7 = inlined_call_operand.hbm [shape: bf16[32,3], index: 7, kind: input, shape index: {}]
  %s8 = inlined_call_operand.hbm [shape: f32[1,3], index: 8, kind: input, shape index: {}]
  %s9 = inlined_call_operand.hbm [shape: f32[2,3], index: 9, kind: output, shape index: {}]
  %s10 = sld [smem:[#allocation0]]
  $region90: #{bert_lstm_cnn2_forward.5} parent=0
    _
  %s12 = ssub.s32 1, %s10
  %s13 = scalar_select 0, %s12, %s10
  $region1: #{bert_lstm_cnn2_forward.5} parent=0
    #allocation3 [shape = 'u8[2048]{0}', space=vmem, size = 0x800, scoped, tag = 'input window, operand 0, single buffered']
    #allocation4 [shape = 's32[1]{0}', space=sflag, size = 0x4, scoped, tag = 'scoped memory for bert_lstm_cnn2_forward.5']
    #allocation5 [shape = 's32[1]{0}', space=sflag, size = 0x4, scoped, tag = 'scoped memory for bert_lstm_cnn2_forward.5']
    #allocation6 [shape = 'u8[24576]{0}', space=vmem, size = 0x6000, scoped, tag = 'input window, operand 1, single buffered']
    #allocation7 [shape = 's32[1]{0}', space=sflag, size = 0x4, scoped, tag = 'scoped memory for bert_lstm_cnn2_forward.5']
    #allocation8 [shape = 'u8[512]{0}', space=vmem, size = 0x400, scoped, tag = 'input window, operand 2, single buffered']
    #allocation9 [shape = 'u8[2048]{0}', space=vmem, size = 0x800, scoped, tag = 'input window, operand 3, single buffered']
    #allocation10 [shape = 's32[1]{0}', space=sflag, size = 0x4, scoped, tag = 'scoped memory for bert_lstm_cnn2_forward.5']
    #allocation11 [shape = 'u8[2048]{0}', space=vmem, size = 0x800, scoped, tag = 'input window, operand 4, single buffered']
    #allocation12 [shape = 'u8[8192]{0}', space=vmem, size = 0x2000, scoped, tag = 'input window, operand 5, single buffered']
    #allocation13 [shape = 's32[1]{0}', space=sflag, size = 0x4, scoped, tag = 'scoped memory for bert_lstm_cnn2_forward.5']
    #allocation14 [shape = 'u8[512]{0}', space=vmem, size = 0x400, scoped, tag = 'input window, operand 6, single buffered']
    #allocation15 [shape = 'u8[8192]{0}', space=vmem, size = 0x2000, scoped, tag = 'input window, operand 7, single buffered']
    #allocation16 [shape = 's32[1]{0}', space=sflag, size = 0x4, scoped, tag = 'scoped memory for bert_lstm_cnn2_forward.5']
    #allocation17 [shape = 'u8[512]{0}', space=vmem, size = 0x400, scoped, tag = 'input window, operand 8, single buffered']
    #allocation18 [shape = 'u8[1024]{0}', space=vmem, size = 0x400, scoped, tag = 'output window, operand 0, single buffered']
    %14 = vsyncpa [#allocation4], 0
    %15 = vsyncpa [#allocation7], 0
    %16 = vsyncpa [#allocation10], 0
    %17 = vsyncpa [#allocation13], 0
    %18 = vsyncpa [#allocation16], 0
    %19 = vsyncpa [#allocation5], 0
    // Predicated region
    $region2: #{bert_lstm_cnn2_forward.5} parent=1 // pred_check
      _
    $region3: #{bert_lstm_cnn2_forward.5} parent=1 // pred_check_branch
      %21 = sbr.rel (0) target = $region5
    $region4: #{bert_lstm_cnn2_forward.5} parent=1 // pred_region
      %s23 = ssub.s32 64, 64
      %24 = vsyncadd [#allocation4], %s23
      %s26 = sshll.u32 [#allocation3], 4
      %s27 = int_to_ptr.vmem [resolvable:$true] %s26
      %29 = dma.hbm_to_vmem [thread:$0]  %s0, 64, %s27, [#allocation4]
    $region5: #{bert_lstm_cnn2_forward.5} parent=1 // pred_fallthru
      _
    // Predicated region
    $region6: #{bert_lstm_cnn2_forward.5} parent=1 // pred_check
      _
    $region7: #{bert_lstm_cnn2_forward.5} parent=1 // pred_check_branch
      %31 = sbr.rel (0) target = $region9
    $region8: #{bert_lstm_cnn2_forward.5} parent=1 // pred_region
      %s33 = ssub.s32 768, 768
      %34 = vsyncadd [#allocation7], %s33
      %s35 = sshll.u32 [#allocation6], 4
      %s36 = int_to_ptr.vmem [resolvable:$true] %s35
      %41 = dma.hbm_to_vmem [thread:$0]  %s1, 768, %s36, [#allocation7], 64, 64, 4
    $region9: #{bert_lstm_cnn2_forward.5} parent=1 // pred_fallthru
      _
    // Predicated region
    $region10: #{bert_lstm_cnn2_forward.5} parent=1 // pred_check
      _
    $region11: #{bert_lstm_cnn2_forward.5} parent=1 // pred_check_branch
      %43 = sbr.rel (0) target = $region13
    $region12: #{bert_lstm_cnn2_forward.5} parent=1 // pred_region
      %s45 = ssub.s32 16, 16
      %46 = vsyncadd [#allocation7], %s45
      %s48 = sshll.u32 [#allocation8], 4
      %s49 = int_to_ptr.vmem [resolvable:$true] %s48
      %51 = dma.hbm_to_vmem [thread:$0]  %s2, 16, %s49, [#allocation7]
    $region13: #{bert_lstm_cnn2_forward.5} parent=1 // pred_fallthru
      _
    // Predicated region
    $region14: #{bert_lstm_cnn2_forward.5} parent=1 // pred_check
      _
    $region15: #{bert_lstm_cnn2_forward.5} parent=1 // pred_check_branch
      %53 = sbr.rel (0) target = $region17
    $region16: #{bert_lstm_cnn2_forward.5} parent=1 // pred_region
      %s55 = ssub.s32 64, 64
      %56 = vsyncadd [#allocation10], %s55
      %s57 = sshll.u32 [#allocation9], 4
      %s58 = int_to_ptr.vmem [resolvable:$true] %s57
      %63 = dma.hbm_to_vmem [thread:$0]  %s3, 64, %s58, [#allocation10], 32, 32, 2
    $region17: #{bert_lstm_cnn2_forward.5} parent=1 // pred_fallthru
      _
    // Predicated region
    $region18: #{bert_lstm_cnn2_forward.5} parent=1 // pred_check
      _
    $region19: #{bert_lstm_cnn2_forward.5} parent=1 // pred_check_branch
      %65 = sbr.rel (0) target = $region21
    $region20: #{bert_lstm_cnn2_forward.5} parent=1 // pred_region
      %s67 = ssub.s32 64, 64
      %68 = vsyncadd [#allocation10], %s67
      %s69 = sshll.u32 [#allocation11], 4
      %s70 = int_to_ptr.vmem [resolvable:$true] %s69
      %75 = dma.hbm_to_vmem [thread:$0]  %s4, 64, %s70, [#allocation10], 32, 32, 2
    $region21: #{bert_lstm_cnn2_forward.5} parent=1 // pred_fallthru
      _
    // Predicated region
    $region22: #{bert_lstm_cnn2_forward.5} parent=1 // pred_check
      _
    $region23: #{bert_lstm_cnn2_forward.5} parent=1 // pred_check_branch
      %77 = sbr.rel (0) target = $region25
    $region24: #{bert_lstm_cnn2_forward.5} parent=1 // pred_region
      %s79 = ssub.s32 256, 256
      %80 = vsyncadd [#allocation13], %s79
      %s81 = sshll.u32 [#allocation12], 4
      %s82 = int_to_ptr.vmem [resolvable:$true] %s81
      %87 = dma.hbm_to_vmem [thread:$0]  %s5, 256, %s82, [#allocation13], 64, 64, 4
    $region25: #{bert_lstm_cnn2_forward.5} parent=1 // pred_fallthru
      _
    // Predicated region
    $region26: #{bert_lstm_cnn2_forward.5} parent=1 // pred_check
      _
    $region27: #{bert_lstm_cnn2_forward.5} parent=1 // pred_check_branch
      %89 = sbr.rel (0) target = $region29
    $region28: #{bert_lstm_cnn2_forward.5} parent=1 // pred_region
      %s91 = ssub.s32 16, 16
      %92 = vsyncadd [#allocation13], %s91
      %s94 = sshll.u32 [#allocation14], 4
      %s95 = int_to_ptr.vmem [resolvable:$true] %s94
      %97 = dma.hbm_to_vmem [thread:$0]  %s6, 16, %s95, [#allocation13]
    $region29: #{bert_lstm_cnn2_forward.5} parent=1 // pred_fallthru
      _
    // Predicated region
    $region30: #{bert_lstm_cnn2_forward.5} parent=1 // pred_check
      _
    $region31: #{bert_lstm_cnn2_forward.5} parent=1 // pred_check_branch
      %99 = sbr.rel (0) target = $region33
    $region32: #{bert_lstm_cnn2_forward.5} parent=1 // pred_region
      %s101 = ssub.s32 256, 256
      %102 = vsyncadd [#allocation16], %s101
      %s103 = sshll.u32 [#allocation15], 4
      %s104 = int_to_ptr.vmem [resolvable:$true] %s103
      %109 = dma.hbm_to_vmem [thread:$0]  %s7, 256, %s104, [#allocation16], 64, 64, 4
    $region33: #{bert_lstm_cnn2_forward.5} parent=1 // pred_fallthru
      _
    // Predicated region
    $region34: #{bert_lstm_cnn2_forward.5} parent=1 // pred_check
      _
    $region35: #{bert_lstm_cnn2_forward.5} parent=1 // pred_check_branch
      %111 = sbr.rel (0) target = $region37
    $region36: #{bert_lstm_cnn2_forward.5} parent=1 // pred_region
      %s113 = ssub.s32 16, 16
      %114 = vsyncadd [#allocation16], %s113
      %s116 = sshll.u32 [#allocation17], 4
      %s117 = int_to_ptr.vmem [resolvable:$true] %s116
      %119 = dma.hbm_to_vmem [thread:$0]  %s8, 16, %s117, [#allocation16]
    $region37: #{bert_lstm_cnn2_forward.5} parent=1 // pred_fallthru
      _
    // Predicated region
    $region38: #{bert_lstm_cnn2_forward.5} parent=1 // pred_check
      _
    $region39: #{bert_lstm_cnn2_forward.5} parent=1 // pred_check_branch
      %121 = sbr.rel (0) target = $region41
    $region40: #{bert_lstm_cnn2_forward.5} parent=1 // pred_region
      %122 = dma.done [#allocation4], 64
    $region41: #{bert_lstm_cnn2_forward.5} parent=1 // pred_fallthru
      _
    // Predicated region
    $region42: #{bert_lstm_cnn2_forward.5} parent=1 // pred_check
      _
    $region43: #{bert_lstm_cnn2_forward.5} parent=1 // pred_check_branch
      %124 = sbr.rel (0) target = $region45
    $region44: #{bert_lstm_cnn2_forward.5} parent=1 // pred_region
      %125 = dma.done [#allocation7], 768
    $region45: #{bert_lstm_cnn2_forward.5} parent=1 // pred_fallthru
      _
    // Predicated region
    $region46: #{bert_lstm_cnn2_forward.5} parent=1 // pred_check
      _
    $region47: #{bert_lstm_cnn2_forward.5} parent=1 // pred_check_branch
      %127 = sbr.rel (0) target = $region49
    $region48: #{bert_lstm_cnn2_forward.5} parent=1 // pred_region
      %128 = dma.done [#allocation7], 16
    $region49: #{bert_lstm_cnn2_forward.5} parent=1 // pred_fallthru
      _
    // Predicated region
    $region50: #{bert_lstm_cnn2_forward.5} parent=1 // pred_check
      _
    $region51: #{bert_lstm_cnn2_forward.5} parent=1 // pred_check_branch
      %130 = sbr.rel (0) target = $region53
    $region52: #{bert_lstm_cnn2_forward.5} parent=1 // pred_region
      %131 = dma.done [#allocation10], 64
    $region53: #{bert_lstm_cnn2_forward.5} parent=1 // pred_fallthru
      _
    // Predicated region
    $region54: #{bert_lstm_cnn2_forward.5} parent=1 // pred_check
      _
    $region55: #{bert_lstm_cnn2_forward.5} parent=1 // pred_check_branch
      %133 = sbr.rel (0) target = $region57
    $region56: #{bert_lstm_cnn2_forward.5} parent=1 // pred_region
      %134 = dma.done [#allocation10], 64
    $region57: #{bert_lstm_cnn2_forward.5} parent=1 // pred_fallthru
      _
    // Predicated region
    $region58: #{bert_lstm_cnn2_forward.5} parent=1 // pred_check
      _
    $region59: #{bert_lstm_cnn2_forward.5} parent=1 // pred_check_branch
      %136 = sbr.rel (0) target = $region61
    $region60: #{bert_lstm_cnn2_forward.5} parent=1 // pred_region
      %137 = dma.done [#allocation13], 256
    $region61: #{bert_lstm_cnn2_forward.5} parent=1 // pred_fallthru
      _
    // Predicated region
    $region62: #{bert_lstm_cnn2_forward.5} parent=1 // pred_check
      _
    $region63: #{bert_lstm_cnn2_forward.5} parent=1 // pred_check_branch
      %139 = sbr.rel (0) target = $region65
    $region64: #{bert_lstm_cnn2_forward.5} parent=1 // pred_region
      %140 = dma.done [#allocation13], 16
    $region65: #{bert_lstm_cnn2_forward.5} parent=1 // pred_fallthru
      _
    // Predicated region
    $region66: #{bert_lstm_cnn2_forward.5} parent=1 // pred_check
      _
    $region67: #{bert_lstm_cnn2_forward.5} parent=1 // pred_check_branch
      %142 = sbr.rel (0) target = $region69
    $region68: #{bert_lstm_cnn2_forward.5} parent=1 // pred_region
      %143 = dma.done [#allocation16], 256
    $region69: #{bert_lstm_cnn2_forward.5} parent=1 // pred_fallthru
      _
    // Predicated region
    $region70: #{bert_lstm_cnn2_forward.5} parent=1 // pred_check
      _
    $region71: #{bert_lstm_cnn2_forward.5} parent=1 // pred_check_branch
      %145 = sbr.rel (0) target = $region73
    $region72: #{bert_lstm_cnn2_forward.5} parent=1 // pred_region
      %146 = dma.done [#allocation16], 16
    $region73: #{bert_lstm_cnn2_forward.5} parent=1 // pred_fallthru
      _
    %p148 = scmp.eq.s32.totalorder 0, 0
    // Predicated region
    $region74: #{bert_lstm_cnn2_forward.5} parent=1 // pred_check
      %p149 = pneg %p148
    $region75: #{bert_lstm_cnn2_forward.5} parent=1 // pred_check_branch
      %151 = sbr.rel (%p149) target = $region77
    $region76: #{bert_lstm_cnn2_forward.5} parent=1 // pred_region
      %vm152 = vcmask 254976
      %153 = vst.msk [vmem:[#allocation2] sm:$0x3] %vm152, 0.0
    $region77: #{bert_lstm_cnn2_forward.5} parent=1 // pred_fallthru
      _
    %v154 = vld [vmem:[#allocation3] sm:$0x7]
    %v155 = vld [vmem:[#allocation6] sm:$0xf]
    %v156 = vld [vmem:[#allocation6 + $0x4] sm:$0xf]
    %v157 = vld [vmem:[#allocation6 + $0x8] sm:$0xf]
    %v158 = vld [vmem:[#allocation6 + $0xc] sm:$0xf]
    %v159 = vld [vmem:[#allocation6 + $0x10] sm:$0xf]
    %v160 = vld [vmem:[#allocation6 + $0x14] sm:$0xf]
    %v161 = vld [vmem:[#allocation6 + $0x18] sm:$0xf]
    %v162 = vld [vmem:[#allocation6 + $0x1c] sm:$0xf]
    %v163 = vld [vmem:[#allocation6 + $0x20] sm:$0xf]
    %v164 = vld [vmem:[#allocation6 + $0x24] sm:$0xf]
    %v165 = vld [vmem:[#allocation6 + $0x28] sm:$0xf]
    %v166 = vld [vmem:[#allocation6 + $0x2c] sm:$0x7]
    %v167 = vld [vmem:[#allocation8] sm:$0x1]
    %v169 = vlaneseq
    %v170 = vshrl.u32 %v169, 7
    %v171 = vsub.s32 0, %v170
    %v172 = vrot.slane %v167, %v171
    %v186 = vunpack.c.l.b16 %v155
    %v187 = vunpack.c.l.b16 %v156
    %v188 = vunpack.c.l.b16 %v157
    %v189 = vunpack.c.l.b16 %v158
    %v190 = vunpack.c.l.b16 %v159
    %v191 = vunpack.c.l.b16 %v160
    %v192 = vunpack.c.l.b16 %v161
    %v193 = vunpack.c.l.b16 %v162
    %v194 = vunpack.c.l.b16 %v163
    %v195 = vunpack.c.l.b16 %v164
    %v196 = vunpack.c.l.b16 %v165
    %v197 = vunpack.c.l.b16 %v166
    %v198 = vpack.c.b16 %v187, %v186
    %v199 = vpack.c.b16 %v189, %v188
    %v200 = vpack.c.b16 %v191, %v190
    %v201 = vpack.c.b16 %v193, %v192
    %v202 = vpack.c.b16 %v195, %v194
    %v203 = vpack.c.b16 %v197, %v196
    %vm209 = vcmask 760832
    %v211 = vsel %vm209, %v154, 0
    %vm213 = vcmask 1045504
    %vm214 = vcmask 1046528
    %v215 = vsel %vm213, 4294967295, 65535
    %v216 = vsel %vm214, %v215, 0
    %v218 = vand.u32 %v203, %v216
    %220 = vmatprep.subr.bf16.mxu0 0
    %221 = vmatpush1.bf16.msra.mxu0 %v198
    %222 = vmatprep.subr.bf16.mxu0 0
    %223 = vmatpush1.bf16.msra.mxu0 %v199
    %224 = vmatprep.subr.bf16.mxu0 0
    %225 = vmatpush1.bf16.msra.mxu0 %v200
    %226 = vmatprep.subr.bf16.mxu0 0
    %227 = vmatpush1.bf16.msra.mxu0 %v201
    %228 = vmatprep.subr.bf16.mxu0 0
    %229 = vmatpush1.bf16.msra.mxu0 %v202
    %230 = vmatprep.subr.bf16.mxu0 0
    %231 = vmatpush1.bf16.msra.mxu0 %v218
    %232 = vmatprep.subr.bf16.mxu0 0
    %233 = vmatpush1.bf16.msra.mxu0 0
    %234 = vmatprep.subr.bf16.mxu0 0
    %235 = vmatpush1.bf16.msra.mxu0 0
    %236 = vmatprep.subr.bf16.mxu0 0
    %237 = vmatpush1.bf16.msra.mxu0 0
    %238 = vmatprep.subr.bf16.mxu0 0
    %239 = vmatpush1.bf16.msra.mxu0 0
    %240 = vmatprep.subr.bf16.mxu0 0
    %241 = vmatpush1.bf16.msra.mxu0 0
    %242 = vmatprep.subr.bf16.mxu0 0
    %243 = vmatpush1.bf16.msra.mxu0 0
    %244 = vmatprep.subr.bf16.mxu0 0
    %245 = vmatpush1.bf16.msra.mxu0 0
    %246 = vmatprep.subr.bf16.mxu0 0
    %247 = vmatpush1.bf16.msra.mxu0 0
    %248 = vmatprep.subr.bf16.mxu0 0
    %249 = vmatpush1.bf16.msra.mxu0 0
    %250 = vmatprep.subr.bf16.mxu0 0
    %251 = vmatpush1.bf16.msra.mxu0 0
    %252 = vmatprep.mubr.bf16.mxu0 0
    %253 = vmatmul.mubr.bf16.gmra.mrb[0].mxu0 %v211
    %v254 = vpop.f32.mrb[0].mxu0
    %v255 = vadd.f32 %v172, %v254
    %v256 = vpop.f32.mrb[0].mxu0
    %v257 = vpop.f32.mrb[0].mxu0
    %v258 = vpop.f32.mrb[0].mxu0
    %259 = vdwg.mxu0
    %v260 = vmax.f32 %v255, 0.0
    %v262 = vrot.slane %v260, 2
    %v264 = vmax.f32 %v260, %v262
    %v265 = vrot.slane %v260, 4
    %v267 = vmax.f32 %v264, %v265
    %v268 = vld [vmem:[#allocation2] sm:$0x3]
    %v269 = vmax.f32 %v268, %v267
    %vm270 = vcmask 254976
    %271 = vst.msk [vmem:[#allocation2] sm:$0x3] %vm270, %v269
    // Predicated region
    $region78: #{bert_lstm_cnn2_forward.5} parent=1 // pred_check
      %p272 = pneg %p148
    $region79: #{bert_lstm_cnn2_forward.5} parent=1 // pred_check_branch
      %274 = sbr.rel (%p272) target = $region81
    $region80: #{bert_lstm_cnn2_forward.5} parent=1 // pred_region
      %v275 = vld [vmem:[#allocation9] sm:$0x3]
      %s276 = scalar_lea.vmem [#allocation9], 2
      %v277 = vld [vmem:[%s276] sm:$0x3]
      %v278 = vld [vmem:[#allocation11] sm:$0x3]
      %s279 = scalar_lea.vmem [#allocation11], 2
      %v280 = vld [vmem:[%s279] sm:$0x3]
      %282 = vrot.lane.b32.xlu0 %v277, 8
      %v283 = vpop.permute.xlu0 %282
      %286 = vrot.lane.b32.xlu0 %v278, 16
      %v287 = vpop.permute.xlu0 %286
      %290 = vrot.lane.b32.xlu0 %v280, 24
      %v291 = vpop.permute.xlu0 %290
      %vm293 = vcmask 64512
      %v294 = vsel %vm293, %v275, %v283
      %vm295 = vcmask 130048
      %v296 = vsel %vm295, %v294, %v287
      %vm297 = vcmask 195584
      %v298 = vsel %vm297, %v296, %v291
      %v299 = vmax.f32 %v298, 0.0
      %v300 = vpack.c.bf16 %v299, %v299
      %v301 = vld [vmem:[#allocation12] sm:$0xf]
      %v302 = vld [vmem:[#allocation12 + $0x4] sm:$0xf]
      %v303 = vld [vmem:[#allocation12 + $0x8] sm:$0xf]
      %v304 = vld [vmem:[#allocation12 + $0xc] sm:$0xf]
      %v305 = vld [vmem:[#allocation14] sm:$0x1]
      %v307 = vlaneseq
      %v308 = vshrl.u32 %v307, 7
      %v309 = vsub.s32 0, %v308
      %v310 = vrot.slane %v305, %v309
      %v316 = vunpack.c.l.b16 %v301
      %v317 = vunpack.c.l.b16 %v302
      %v318 = vunpack.c.l.b16 %v303
      %v319 = vunpack.c.l.b16 %v304
      %v320 = vpack.c.b16 %v317, %v316
      %v321 = vpack.c.b16 %v319, %v318
      %vm324 = vcmask 261120
      %v326 = vsel %vm324, %v300, 0
      %328 = vmatprep.subr.bf16.mxu0 0
      %329 = vmatpush1.bf16.msra.mxu0 %v320
      %330 = vmatprep.subr.bf16.mxu0 0
      %331 = vmatpush1.bf16.msra.mxu0 %v321
      %332 = vmatprep.subr.bf16.mxu0 0
      %333 = vmatpush1.bf16.msra.mxu0 0
      %334 = vmatprep.subr.bf16.mxu0 0
      %335 = vmatpush1.bf16.msra.mxu0 0
      %336 = vmatprep.subr.bf16.mxu0 0
      %337 = vmatpush1.bf16.msra.mxu0 0
      %338 = vmatprep.subr.bf16.mxu0 0
      %339 = vmatpush1.bf16.msra.mxu0 0
      %340 = vmatprep.subr.bf16.mxu0 0
      %341 = vmatpush1.bf16.msra.mxu0 0
      %342 = vmatprep.subr.bf16.mxu0 0
      %343 = vmatpush1.bf16.msra.mxu0 0
      %344 = vmatprep.subr.bf16.mxu0 0
      %345 = vmatpush1.bf16.msra.mxu0 0
      %346 = vmatprep.subr.bf16.mxu0 0
      %347 = vmatpush1.bf16.msra.mxu0 0
      %348 = vmatprep.subr.bf16.mxu0 0
      %349 = vmatpush1.bf16.msra.mxu0 0
      %350 = vmatprep.subr.bf16.mxu0 0
      %351 = vmatpush1.bf16.msra.mxu0 0
      %352 = vmatprep.subr.bf16.mxu0 0
      %353 = vmatpush1.bf16.msra.mxu0 0
      %354 = vmatprep.subr.bf16.mxu0 0
      %355 = vmatpush1.bf16.msra.mxu0 0
      %356 = vmatprep.subr.bf16.mxu0 0
      %357 = vmatpush1.bf16.msra.mxu0 0
      %358 = vmatprep.subr.bf16.mxu0 0
      %359 = vmatpush1.bf16.msra.mxu0 0
      %360 = vmatprep.mubr.bf16.mxu0 0
      %361 = vmatmul.mubr.bf16.gmra.mrb[0].mxu0 %v326
      %v362 = vpop.f32.mrb[0].mxu0
      %v363 = vadd.f32 %v310, %v362
      %v364 = vpop.f32.mrb[0].mxu0
      %v365 = vpop.f32.mrb[0].mxu0
      %v366 = vpop.f32.mrb[0].mxu0
      %367 = vdwg.mxu0
      %v368 = vadd.f32 %v298, %v363
      %v369 = vld [vmem:[#allocation2] sm:$0x3]
      %v370 = vadd.f32 %v368, %v369
      %v371 = vpack.c.bf16 %v370, %v370
      %v372 = vld [vmem:[#allocation15] sm:$0xf]
      %v373 = vld [vmem:[#allocation15 + $0x4] sm:$0xf]
      %v374 = vld [vmem:[#allocation15 + $0x8] sm:$0xf]
      %v375 = vld [vmem:[#allocation15 + $0xc] sm:$0xf]
      %v376 = vld [vmem:[#allocation17] sm:$0x1]
      %v378 = vlaneseq
      %v379 = vshrl.u32 %v378, 7
      %v380 = vsub.s32 0, %v379
      %v381 = vrot.slane %v376, %v380
      %v387 = vunpack.c.l.b16 %v372
      %v388 = vunpack.c.l.b16 %v373
      %v389 = vunpack.c.l.b16 %v374
      %v390 = vunpack.c.l.b16 %v375
      %v391 = vpack.c.b16 %v388, %v387
      %v392 = vpack.c.b16 %v390, %v389
      %v396 = vsel %vm324, %v371, 0
      %398 = vmatprep.subr.bf16.mxu0 0
      %399 = vmatpush1.bf16.msra.mxu0 %v391
      %400 = vmatprep.subr.bf16.mxu0 0
      %401 = vmatpush1.bf16.msra.mxu0 %v392
      %402 = vmatprep.subr.bf16.mxu0 0
      %403 = vmatpush1.bf16.msra.mxu0 0
      %404 = vmatprep.subr.bf16.mxu0 0
      %405 = vmatpush1.bf16.msra.mxu0 0
      %406 = vmatprep.subr.bf16.mxu0 0
      %407 = vmatpush1.bf16.msra.mxu0 0
      %408 = vmatprep.subr.bf16.mxu0 0
      %409 = vmatpush1.bf16.msra.mxu0 0
      %410 = vmatprep.subr.bf16.mxu0 0
      %411 = vmatpush1.bf16.msra.mxu0 0
      %412 = vmatprep.subr.bf16.mxu0 0
      %413 = vmatpush1.bf16.msra.mxu0 0
      %414 = vmatprep.subr.bf16.mxu0 0
      %415 = vmatpush1.bf16.msra.mxu0 0
      %416 = vmatprep.subr.bf16.mxu0 0
      %417 = vmatpush1.bf16.msra.mxu0 0
      %418 = vmatprep.subr.bf16.mxu0 0
      %419 = vmatpush1.bf16.msra.mxu0 0
      %420 = vmatprep.subr.bf16.mxu0 0
      %421 = vmatpush1.bf16.msra.mxu0 0
      %422 = vmatprep.subr.bf16.mxu0 0
      %423 = vmatpush1.bf16.msra.mxu0 0
      %424 = vmatprep.subr.bf16.mxu0 0
      %425 = vmatpush1.bf16.msra.mxu0 0
      %426 = vmatprep.subr.bf16.mxu0 0
      %427 = vmatpush1.bf16.msra.mxu0 0
      %428 = vmatprep.subr.bf16.mxu0 0
      %429 = vmatpush1.bf16.msra.mxu0 0
      %430 = vmatprep.mubr.bf16.mxu0 0
      %431 = vmatmul.mubr.bf16.gmra.mrb[0].mxu0 %v396
      %v432 = vpop.f32.mrb[0].mxu0
      %v433 = vadd.f32 %v381, %v432
      %v434 = vpop.f32.mrb[0].mxu0
      %v435 = vpop.f32.mrb[0].mxu0
      %v436 = vpop.f32.mrb[0].mxu0
      %437 = vdwg.mxu0
      %vm438 = vcmask 17408
      %439 = vst.msk [vmem:[#allocation18] sm:$0x3] %vm438, %v433
    $region81: #{bert_lstm_cnn2_forward.5} parent=1 // pred_fallthru
      _
    // Predicated region
    $region82: #{bert_lstm_cnn2_forward.5} parent=1 // pred_check
      _
    $region83: #{bert_lstm_cnn2_forward.5} parent=1 // pred_check_branch
      %441 = sbr.rel (0) target = $region85
    $region84: #{bert_lstm_cnn2_forward.5} parent=1 // pred_region
      %s443 = ssub.s32 32, 32
      %444 = vsyncadd [#allocation5], %s443
      %s446 = sshll.u32 [#allocation18], 4
      %s447 = int_to_ptr.vmem [resolvable:$true] %s446
      %449 = dma.vmem_to_hbm [thread:$0]  %s447, 32, %s9, [#allocation5]
    $region85: #{bert_lstm_cnn2_forward.5} parent=1 // pred_fallthru
      _
    // Predicated region
    $region86: #{bert_lstm_cnn2_forward.5} parent=1 // pred_check
      _
    $region87: #{bert_lstm_cnn2_forward.5} parent=1 // pred_check_branch
      %451 = sbr.rel (0) target = $region89
    $region88: #{bert_lstm_cnn2_forward.5} parent=1 // pred_region
      %452 = dma.done [#allocation5], 32
    $region89: #{bert_lstm_cnn2_forward.5} parent=1 // pred_fallthru
      _
    %453 = vsyncpa [#allocation4], 1
    %454 = vsyncpa [#allocation7], 1
    %455 = vsyncpa [#allocation10], 1
    %456 = vsyncpa [#allocation13], 1
    %457 = vsyncpa [#allocation16], 1
    %458 = vsyncpa [#allocation5], 1

// kernel: bert_lstm_cnn2_forward.4
$region0: #{bert_lstm_cnn2_forward.4}
  #allocation0 [shape = 'u32[]', space=smem, size = 0x4, offset = 0x4, fixed_abs, tag = 'smem constant byte address 0x4 - core index']
  #allocation1 [shape = 'u32[144,128]{1,0:T(1,128)}', space=vmem, size = 0x12000, scoped, tag = 'internal scratch']
  #allocation2 [shape = 'f32[2,8]{1,0:T(2,128)}', space=vmem, size = 0x400, scoped, tag = 'scratch operand']
  #allocation3 [shape = 'f32[2,8]{1,0:T(2,128)}', space=vmem, size = 0x400, scoped, tag = 'scratch operand']
  #allocation4 [shape = 'f32[2,8]{1,0:T(2,128)}', space=vmem, size = 0x400, scoped, tag = 'scratch operand']
  #allocation5 [shape = 'f32[2,8]{1,0:T(2,128)}', space=vmem, size = 0x400, scoped, tag = 'scratch operand']
  %s0 = inlined_call_operand.hbm [shape: f32[2,8,2,32], index: 0, kind: input, shape index: {}]
  %s1 = inlined_call_operand.hbm [shape: f32[2,8,32], index: 1, kind: input, shape index: {}]
  %s2 = inlined_call_operand.hbm [shape: f32[2,2,8], index: 2, kind: output, shape index: {0}]
  %s3 = inlined_call_operand.hbm [shape: f32[2,2,8], index: 3, kind: output, shape index: {1}]
  %4 = xla_tuple %s2, %s3
  %s5 = sld [smem:[#allocation0]]
  $region65: #{bert_lstm_cnn2_forward.4} parent=0
    _
  %s7 = ssub.s32 1, %s5
  %s8 = scalar_select 0, %s7, %s5
  $region1: #{bert_lstm_cnn2_forward.4} parent=0
    #allocation6 [shape = 'u8[16384]{0}', space=vmem, size = 0x4000, scoped, tag = 'input window, operand 0']
    #allocation7 [shape = 's32[2]{0}', space=sflag, size = 0x8, scoped, tag = 'scoped memory for bert_lstm_cnn2_forward.4']
    #allocation8 [shape = 's32[2]{0}', space=sflag, size = 0x8, scoped, tag = 'scoped memory for bert_lstm_cnn2_forward.4']
    #allocation9 [shape = 'u8[8192]{0}', space=vmem, size = 0x2000, scoped, tag = 'input window, operand 1']
    #allocation10 [shape = 's32[2]{0}', space=sflag, size = 0x8, scoped, tag = 'scoped memory for bert_lstm_cnn2_forward.4']
    #allocation11 [shape = 'u8[2048]{0}', space=vmem, size = 0x800, scoped, tag = 'output window, operand 0']
    #allocation12 [shape = 'u8[2048]{0}', space=vmem, size = 0x800, scoped, tag = 'output window, operand 1']
    #allocation13 [shape = 's32[2]{0}', space=sflag, size = 0x8, scoped, tag = 'scoped memory for bert_lstm_cnn2_forward.4']
    %9 = vsyncpa [#allocation7], 0
    %s10 = scalar_lea.sflag [#allocation7], 1
    %11 = vsyncpa %s10, 0
    %12 = vsyncpa [#allocation10], 0
    %s13 = scalar_lea.sflag [#allocation10], 1
    %14 = vsyncpa %s13, 0
    %15 = vsyncpa [#allocation8], 0
    %s16 = scalar_lea.sflag [#allocation8], 1
    %17 = vsyncpa %s16, 0
    %18 = vsyncpa [#allocation13], 0
    %s19 = scalar_lea.sflag [#allocation13], 1
    %20 = vsyncpa %s19, 0
    loop: start=0, step=1, limit=4
    $region2: #{bert_lstm_cnn2_forward.4} parent=1 // loop_pre_header
      _
    $region3: #{bert_lstm_cnn2_forward.4} parent=1 // loop_header
      %s22 = sphi 0, %s26
      %p23 = scmp.ge.s32.totalorder %s22, 4
      %s29 = sphi 0, %s41
      %s30 = sphi 0, %s37
      %s31 = sphi 0, %s29
      %s32 = sphi 0, %s30
      %s33 = sphi 0, %s31
      %s34 = sphi 0, %s32
      %s54 = sphi 0, %s56
      %s57 = sphi 0, %s54
      %s58 = sphi 0, %s57
      %s74 = sphi 0, %s58
      %s80 = sphi 0, %s82
      %s83 = sphi 0, %s80
      %s84 = sphi 0, %s83
      %s100 = sphi 0, %s84
      %s106 = sphi 0, %s108
      %s109 = sphi 0, %s106
      %s110 = sphi 0, %s109
      %s126 = sphi 0, %s110
      %s132 = sphi 0, %s134
      %s135 = sphi 0, %s132
      %s136 = sphi 0, %s135
      %s152 = sphi 0, %s136
    $region4: #{bert_lstm_cnn2_forward.4} parent=1 // loop_header_branch
      %25 = sbr.rel (%p23) target = $region8
    $region5: #{bert_lstm_cnn2_forward.4} parent=1 // loop_body
      %s27 = ssub.s32 %s22, 1
      %s28 = ssub.s32 %s22, 2
      %s35 = sadd.s32 1, %s30
      %p36 = scmp.ge.s32.totalorder %s35, 1
      %s37 = scalar_select %p36, 0, %s35
      %s38 = sadd.s32 1, %s29
      %s39 = scalar_select %p36, %s38, %s29
      %p40 = scmp.ge.s32.totalorder %s39, 2
      %s41 = scalar_select %p40, 0, %s39
      %s42 = smul.u32 %s30, 2
      %s43 = ssub.s32 0, %s42
      %s44 = smul.u32 %s29, %s43
      %s45 = sadd.s32 %s30, %s44
      %s46 = smul.u32 %s37, 2
      %s47 = ssub.s32 0, %s46
      %s48 = smul.u32 %s41, %s47
      %s49 = sadd.s32 %s37, %s48
      %s50 = ssub.s32 %s29, %s41
      %s51 = ssub.s32 %s45, %s49
      %s52 = sor.u32 %s50, %s51
      %p53 = scmp.eq.s32.totalorder %s52, 0
      %s55 = sadd.s32 %s54, 1
      %s56 = scalar_select %p53, %s54, %s55
      %p59 = pneg %p53
      %p60 = scmp.eq.s32.totalorder %s22, 1
      %p61 = por %p59, %p60
      %p62 = scmp.ne.s32.totalorder %s54, %s57
      %p63 = scmp.eq.s32.totalorder %s22, 0
      %p64 = por %p62, %p63
      %p65 = scmp.ne.s32.totalorder %s54, %s57
      %p66 = scmp.eq.s32.totalorder %s27, 1
      %p67 = por %p65, %p66
      %p68 = scmp.ne.s32.totalorder %s57, %s58
      %p69 = scmp.eq.s32.totalorder %s27, 0
      %p70 = por %p68, %p69
      %p71 = scmp.ne.s32.totalorder %s57, %s58
      %p72 = scmp.eq.s32.totalorder %s28, 1
      %p73 = por %p71, %p72
      %p75 = scmp.ne.s32.totalorder %s58, %s74
      %p76 = scmp.eq.s32.totalorder %s28, 0
      %p77 = por %p75, %p76
      %s78 = ssub.s32 %s29, %s41
      %p79 = scmp.eq.s32.totalorder %s78, 0
      %s81 = sadd.s32 %s80, 1
      %s82 = scalar_select %p79, %s80, %s81
      %p85 = pneg %p79
      %p86 = scmp.eq.s32.totalorder %s22, 1
      %p87 = por %p85, %p86
      %p88 = scmp.ne.s32.totalorder %s80, %s83
      %p89 = scmp.eq.s32.totalorder %s22, 0
      %p90 = por %p88, %p89
      %p91 = scmp.ne.s32.totalorder %s80, %s83
      %p92 = scmp.eq.s32.totalorder %s27, 1
      %p93 = por %p91, %p92
      %p94 = scmp.ne.s32.totalorder %s83, %s84
      %p95 = scmp.eq.s32.totalorder %s27, 0
      %p96 = por %p94, %p95
      %p97 = scmp.ne.s32.totalorder %s83, %s84
      %p98 = scmp.eq.s32.totalorder %s28, 1
      %p99 = por %p97, %p98
      %p101 = scmp.ne.s32.totalorder %s84, %s100
      %p102 = scmp.eq.s32.totalorder %s28, 0
      %p103 = por %p101, %p102
      %s104 = ssub.s32 %s29, %s41
      %p105 = scmp.eq.s32.totalorder %s104, 0
      %s107 = sadd.s32 %s106, 1
      %s108 = scalar_select %p105, %s106, %s107
      %p111 = pneg %p105
      %p112 = scmp.eq.s32.totalorder %s22, 1
      %p113 = por %p111, %p112
      %p114 = scmp.ne.s32.totalorder %s106, %s109
      %p115 = scmp.eq.s32.totalorder %s22, 0
      %p116 = por %p114, %p115
      %p117 = scmp.ne.s32.totalorder %s106, %s109
      %p118 = scmp.eq.s32.totalorder %s27, 1
      %p119 = por %p117, %p118
      %p120 = scmp.ne.s32.totalorder %s109, %s110
      %p121 = scmp.eq.s32.totalorder %s27, 0
      %p122 = por %p120, %p121
      %p123 = scmp.ne.s32.totalorder %s109, %s110
      %p124 = scmp.eq.s32.totalorder %s28, 1
      %p125 = por %p123, %p124
      %p127 = scmp.ne.s32.totalorder %s110, %s126
      %p128 = scmp.eq.s32.totalorder %s28, 0
      %p129 = por %p127, %p128
      %s130 = ssub.s32 %s29, %s41
      %p131 = scmp.eq.s32.totalorder %s130, 0
      %s133 = sadd.s32 %s132, 1
      %s134 = scalar_select %p131, %s132, %s133
      %p137 = pneg %p131
      %p138 = scmp.eq.s32.totalorder %s22, 1
      %p139 = por %p137, %p138
      %p140 = scmp.ne.s32.totalorder %s132, %s135
      %p141 = scmp.eq.s32.totalorder %s22, 0
      %p142 = por %p140, %p141
      %p143 = scmp.ne.s32.totalorder %s132, %s135
      %p144 = scmp.eq.s32.totalorder %s27, 1
      %p145 = por %p143, %p144
      %p146 = scmp.ne.s32.totalorder %s135, %s136
      %p147 = scmp.eq.s32.totalorder %s27, 0
      %p148 = por %p146, %p147
      %p149 = scmp.ne.s32.totalorder %s135, %s136
      %p150 = scmp.eq.s32.totalorder %s28, 1
      %p151 = por %p149, %p150
      %p153 = scmp.ne.s32.totalorder %s136, %s152
      %p154 = scmp.eq.s32.totalorder %s28, 0
      %p155 = por %p153, %p154
      %p156 = scmp.le.s32.totalorder 1, %s22
      %p157 = scmp.lt.s32.totalorder %s22, 3
      %p158 = pnand %p156, %p157
      %p159 = pneg %p158
      // Predicated region
      $region9: #{bert_lstm_cnn2_forward.4} parent=5 // pred_check
        _
      $region10: #{bert_lstm_cnn2_forward.4} parent=5 // pred_check_branch
        %161 = sbr.rel (%p158) target = $region12
      $region11: #{bert_lstm_cnn2_forward.4} parent=5 // pred_region
        %s162 = ssub.s32 %s22, 1
      $region12: #{bert_lstm_cnn2_forward.4} parent=5 // pred_fallthru
        _
      %p163 = scmp.lt.s32.totalorder %s22, 2
      // Predicated region
      $region13: #{bert_lstm_cnn2_forward.4} parent=5 // pred_check
        %p164 = pneg %p163
      $region14: #{bert_lstm_cnn2_forward.4} parent=5 // pred_check_branch
        %166 = sbr.rel (%p164) target = $region16
      $region15: #{bert_lstm_cnn2_forward.4} parent=5 // pred_region
        // Predicated region
        $region17: #{bert_lstm_cnn2_forward.4} parent=15 // pred_check
          %p167 = pneg %p64
        $region18: #{bert_lstm_cnn2_forward.4} parent=15 // pred_check_branch
          %169 = sbr.rel (%p167) target = $region20
        $region19: #{bert_lstm_cnn2_forward.4} parent=15 // pred_region
          %s170 = sand.u32 %s54, 1
          %s171 = scalar_lea.sflag [#allocation7], %s170
          %s172 = sand.u32 %s54, 1
          %s173 = smul.addr %s172, 16
          %s174 = scalar_lea.vmem [#allocation6], %s173
          %s175 = smul.u32 %s30, 2
          %s176 = ssub.s32 0, %s175
          %s177 = smul.u32 %s29, %s176
          %s178 = sadd.s32 %s30, %s177
          %s179 = smul.u32 8, %s178
          %s181 = ssub.s32 256, 256
          %182 = vsyncadd %s171, %s181
          %s183 = smul.addr %s29, 8
          %s184 = sadd.s32 %s179, %s183
          %s185 = smul.addr %s184, 32
          %s186 = scalar_lea.hbm %s0, %s185
          %s187 = sshll.u32 %s174, 4
          %s188 = int_to_ptr.vmem [resolvable:$true] %s187
          %193 = dma.hbm_to_vmem [thread:$0]  %s186, 256, %s188, %s171, 32, 32, 2
        $region20: #{bert_lstm_cnn2_forward.4} parent=15 // pred_fallthru
          _
        // Predicated region
        $region21: #{bert_lstm_cnn2_forward.4} parent=15 // pred_check
          %p194 = pneg %p90
        $region22: #{bert_lstm_cnn2_forward.4} parent=15 // pred_check_branch
          %196 = sbr.rel (%p194) target = $region24
        $region23: #{bert_lstm_cnn2_forward.4} parent=15 // pred_region
          %s197 = sand.u32 %s80, 1
          %s198 = scalar_lea.sflag [#allocation10], %s197
          %s199 = sand.u32 %s80, 1
          %s200 = smul.addr %s199, 8
          %s201 = scalar_lea.vmem [#allocation9], %s200
          %s203 = ssub.s32 128, 128
          %204 = vsyncadd %s198, %s203
          %s205 = smul.addr %s29, 128
          %s206 = scalar_lea.hbm %s1, %s205
          %s208 = sshll.u32 %s201, 4
          %s209 = int_to_ptr.vmem [resolvable:$true] %s208
          %211 = dma.hbm_to_vmem [thread:$0]  %s206, 128, %s209, %s198
        $region24: #{bert_lstm_cnn2_forward.4} parent=15 // pred_fallthru
          _
      $region16: #{bert_lstm_cnn2_forward.4} parent=5 // pred_fallthru
        _
      %p212 = scmp.le.s32.totalorder 1, %s22
      %p213 = scmp.lt.s32.totalorder %s22, 3
      %p214 = pnand %p212, %p213
      %p215 = pneg %p214
      // Predicated region
      $region25: #{bert_lstm_cnn2_forward.4} parent=5 // pred_check
        _
      $region26: #{bert_lstm_cnn2_forward.4} parent=5 // pred_check_branch
        %217 = sbr.rel (%p214) target = $region28
      $region27: #{bert_lstm_cnn2_forward.4} parent=5 // pred_region
        %s218 = ssub.s32 %s22, 1
        %s219 = sand.u32 %s57, 1
        %s220 = scalar_lea.sflag [#allocation7], %s219
        %s221 = sand.u32 %s57, 1
        %s222 = smul.addr %s221, 16
        %s223 = scalar_lea.vmem [#allocation6], %s222
        // Predicated region
        $region29: #{bert_lstm_cnn2_forward.4} parent=27 // pred_check
          %p224 = pneg %p70
        $region30: #{bert_lstm_cnn2_forward.4} parent=27 // pred_check_branch
          %226 = sbr.rel (%p224) target = $region32
        $region31: #{bert_lstm_cnn2_forward.4} parent=27 // pred_region
          %227 = dma.done %s220, 256
        $region32: #{bert_lstm_cnn2_forward.4} parent=27 // pred_fallthru
          _
        %s228 = sand.u32 %s83, 1
        %s229 = scalar_lea.sflag [#allocation10], %s228
        %s230 = sand.u32 %s83, 1
        %s231 = smul.addr %s230, 8
        %s232 = scalar_lea.vmem [#allocation9], %s231
        // Predicated region
        $region33: #{bert_lstm_cnn2_forward.4} parent=27 // pred_check
          %p233 = pneg %p96
        $region34: #{bert_lstm_cnn2_forward.4} parent=27 // pred_check_branch
          %235 = sbr.rel (%p233) target = $region36
        $region35: #{bert_lstm_cnn2_forward.4} parent=27 // pred_region
          %236 = dma.done %s229, 128
        $region36: #{bert_lstm_cnn2_forward.4} parent=27 // pred_fallthru
          _
        %s237 = sand.u32 %s57, 1
        %s238 = scalar_lea.sflag [#allocation7], %s237
        %s239 = sand.u32 %s57, 1
        %s240 = smul.addr %s239, 16
        %s241 = scalar_lea.vmem [#allocation6], %s240
        %p242 = pneg %p70
        %p243 = pneg %p67
        %s244 = sand.u32 %s83, 1
        %s245 = scalar_lea.sflag [#allocation10], %s244
        %s246 = sand.u32 %s83, 1
        %s247 = smul.addr %s246, 8
        %s248 = scalar_lea.vmem [#allocation9], %s247
        %p249 = pneg %p96
        %p250 = pneg %p93
        %p251 = pneg %p122
        %p252 = pneg %p119
        %s253 = sand.u32 %s109, 1
        %s254 = scalar_lea.sflag [#allocation8], %s253
        %s255 = sand.u32 %s109, 1
        %s256 = smul.addr %s255, 2
        %s257 = scalar_lea.vmem [#allocation11], %s256
        %p258 = pneg %p148
        %p259 = pneg %p145
        %s260 = sand.u32 %s135, 1
        %s261 = scalar_lea.sflag [#allocation13], %s260
        %s262 = sand.u32 %s135, 1
        %s263 = smul.addr %s262, 2
        %s264 = scalar_lea.vmem [#allocation12], %s263
        %s265 = smul.u32 %s32, 2
        %s266 = ssub.s32 0, %s265
        %s267 = smul.u32 %s31, %s266
        %s268 = sadd.s32 %s32, %s267
        %s269 = smul.u32 8, %s268
        %p270 = scmp.eq.s32.totalorder %s32, 0
        // Predicated region
        $region37: #{bert_lstm_cnn2_forward.4} parent=27 // pred_check
          %p271 = pneg %p270
        $region38: #{bert_lstm_cnn2_forward.4} parent=27 // pred_check_branch
          %273 = sbr.rel (%p271) target = $region40
        $region39: #{bert_lstm_cnn2_forward.4} parent=27 // pred_region
          %vm274 = vcmask 58368
          %275 = vst.msk [vmem:[#allocation2] sm:$0x3] %vm274, 0.0
          %276 = vst.msk [vmem:[#allocation3] sm:$0x3] %vm274, 0.0
          %277 = vst.msk [vmem:[#allocation4] sm:$0x3] %vm274, -inf
          %278 = vst.msk [vmem:[#allocation5] sm:$0x3] %vm274, 0.0
        $region40: #{bert_lstm_cnn2_forward.4} parent=27 // pred_fallthru
          _
        %v279 = vld [vmem:[%s232] sm:$0xff]
        %v280 = vld [vmem:[#allocation2] sm:$0x3]
        %v281 = vld [vmem:[#allocation3] sm:$0x3]
        %v282 = vld [vmem:[#allocation4] sm:$0x3]
        %v283 = vld [vmem:[#allocation5] sm:$0x3]
        %s284 = smul.u32 %s31, 7
        %s285 = smul.u32 %s284, 2
        %s286 = scalar_lea.vmem %s223, %s285 [#allocation6]
        %v287 = vld [vmem:[%s286] sm:$0x3]
        %vm288 = vcmask 64512
        %v290 = vsel %vm288, %v280, 0
        %292 = vmatprep.subr.mxu0 0.0
        %293 = vmatpush1.msra.mxu0 %v279
        %294 = vmatprep.subr.mxu0 0.0
        %295 = vmatpush1.msra.mxu0 0.0
        %296 = vmatprep.subr.mxu0 0.0
        %297 = vmatpush1.msra.mxu0 0.0
        %298 = vmatprep.subr.mxu0 0.0
        %299 = vmatpush1.msra.mxu0 0.0
        %300 = vmatprep.subr.mxu0 0.0
        %301 = vmatpush1.msra.mxu0 0.0
        %302 = vmatprep.subr.mxu0 0.0
        %303 = vmatpush1.msra.mxu0 0.0
        %304 = vmatprep.subr.mxu0 0.0
        %305 = vmatpush1.msra.mxu0 0.0
        %306 = vmatprep.subr.mxu0 0.0
        %307 = vmatpush1.msra.mxu0 0.0
        %308 = vmatprep.subr.mxu0 0.0
        %309 = vmatpush1.msra.mxu0 0.0
        %310 = vmatprep.subr.mxu0 0.0
        %311 = vmatpush1.msra.mxu0 0.0
        %312 = vmatprep.subr.mxu0 0.0
        %313 = vmatpush1.msra.mxu0 0.0
        %314 = vmatprep.subr.mxu0 0.0
        %315 = vmatpush1.msra.mxu0 0.0
        %316 = vmatprep.subr.mxu0 0.0
        %317 = vmatpush1.msra.mxu0 0.0
        %318 = vmatprep.subr.mxu0 0.0
        %319 = vmatpush1.msra.mxu0 0.0
        %320 = vmatprep.subr.mxu0 0.0
        %321 = vmatpush1.msra.mxu0 0.0
        %322 = vmatprep.subr.mxu0 0.0
        %323 = vmatpush1.msra.mxu0 0.0
        %324 = vmatprep.subr.mxu0 0.0
        %325 = vmatpush1.msra.mxu0 0.0
        %326 = vmatprep.subr.mxu0 0.0
        %327 = vmatpush1.msra.mxu0 0.0
        %328 = vmatprep.subr.mxu0 0.0
        %329 = vmatpush1.msra.mxu0 0.0
        %330 = vmatprep.subr.mxu0 0.0
        %331 = vmatpush1.msra.mxu0 0.0
        %332 = vmatprep.subr.mxu0 0.0
        %333 = vmatpush1.msra.mxu0 0.0
        %334 = vmatprep.subr.mxu0 0.0
        %335 = vmatpush1.msra.mxu0 0.0
        %336 = vmatprep.subr.mxu0 0.0
        %337 = vmatpush1.msra.mxu0 0.0
        %338 = vmatprep.subr.mxu0 0.0
        %339 = vmatpush1.msra.mxu0 0.0
        %340 = vmatprep.subr.mxu0 0.0
        %341 = vmatpush1.msra.mxu0 0.0
        %342 = vmatprep.subr.mxu0 0.0
        %343 = vmatpush1.msra.mxu0 0.0
        %344 = vmatprep.subr.mxu0 0.0
        %345 = vmatpush1.msra.mxu0 0.0
        %346 = vmatprep.subr.mxu0 0.0
        %347 = vmatpush1.msra.mxu0 0.0
        %348 = vmatprep.subr.mxu0 0.0
        %349 = vmatpush1.msra.mxu0 0.0
        %350 = vmatprep.subr.mxu0 0.0
        %351 = vmatpush1.msra.mxu0 0.0
        %352 = vmatprep.subr.mxu0 0.0
        %353 = vmatpush1.msra.mxu0 0.0
        %354 = vmatprep.subr.mxu0 0.0
        %355 = vmatpush1.msra.mxu0 0.0
        %356 = vmatprep.mubr.f32.mxu0 0.0
        %357 = vmatmul.mubr.f32.gmra.mrb[0].mxu0 %v290
        %v358 = vpop.f32.mrb[0].mxu0
        %v359 = vadd.f32 0.0, %v358
        %v360 = vpop.f32.mrb[0].mxu0
        %361 = vdwg.mxu0
        %v362 = vadd.f32 %v287, %v359
        %v363 = vxor.u32 %v362, 2147483648
        %v364 = vmul.f32 %v363, 1.442695
        %v365 = vpow.pop %v364
        %v366 = vadd.f32 %v365, 1.0
        %v367 = vrcp.pop %v366
        %v368 = vmul.f32 1.0, %v367
        %v369 = vtanh.pop %v362
        %371 = vrot.lane.b32.xlu0 %v281, 8
        %v372 = vpop.permute.xlu0 %371
        %v374 = vmul.f32 %v368, %v372
        %376 = vrot.lane.b32.xlu0 %v369, 112
        %v377 = vpop.permute.xlu0 %376
        %v379 = vmul.f32 %v368, %v377
        %381 = vrot.lane.b32.xlu0 %v379, 8
        %v382 = vpop.permute.xlu0 %381
        %v384 = vadd.f32 %v374, %v382
        %v385 = vtanh.pop %v384
        %387 = vrot.lane.b32.xlu0 %v385, 16
        %v388 = vpop.permute.xlu0 %387
        %v390 = vmul.f32 %v368, %v388
        %392 = vrot.lane.b32.xlu0 %v390, 104
        %v393 = vpop.permute.xlu0 %392
        %v395 = vmax.f32 %v282, %v393
        %v396 = vadd.f32 %v283, %v393
        %s397 = smul.u32 %s31, 5
        %s398 = sadd.s32 %s397, 1
        %s399 = smul.u32 %s398, 2
        %s400 = scalar_lea.vmem %s223, %s399 [#allocation6]
        %v401 = vld [vmem:[%s400] sm:$0x3]
        %v402 = vsel %vm288, %v393, 0
        %404 = vmatprep.subr.mxu0 0.0
        %405 = vmatpush1.msra.mxu0 %v279
        %406 = vmatprep.subr.mxu0 0.0
        %407 = vmatpush1.msra.mxu0 0.0
        %408 = vmatprep.subr.mxu0 0.0
        %409 = vmatpush1.msra.mxu0 0.0
        %410 = vmatprep.subr.mxu0 0.0
        %411 = vmatpush1.msra.mxu0 0.0
        %412 = vmatprep.subr.mxu0 0.0
        %413 = vmatpush1.msra.mxu0 0.0
        %414 = vmatprep.subr.mxu0 0.0
        %415 = vmatpush1.msra.mxu0 0.0
        %416 = vmatprep.subr.mxu0 0.0
        %417 = vmatpush1.msra.mxu0 0.0
        %418 = vmatprep.subr.mxu0 0.0
        %419 = vmatpush1.msra.mxu0 0.0
        %420 = vmatprep.subr.mxu0 0.0
        %421 = vmatpush1.msra.mxu0 0.0
        %422 = vmatprep.subr.mxu0 0.0
        %423 = vmatpush1.msra.mxu0 0.0
        %424 = vmatprep.subr.mxu0 0.0
        %425 = vmatpush1.msra.mxu0 0.0
        %426 = vmatprep.subr.mxu0 0.0
        %427 = vmatpush1.msra.mxu0 0.0
        %428 = vmatprep.subr.mxu0 0.0
        %429 = vmatpush1.msra.mxu0 0.0
        %430 = vmatprep.subr.mxu0 0.0
        %431 = vmatpush1.msra.mxu0 0.0
        %432 = vmatprep.subr.mxu0 0.0
        %433 = vmatpush1.msra.mxu0 0.0
        %434 = vmatprep.subr.mxu0 0.0
        %435 = vmatpush1.msra.mxu0 0.0
        %436 = vmatprep.subr.mxu0 0.0
        %437 = vmatpush1.msra.mxu0 0.0
        %438 = vmatprep.subr.mxu0 0.0
        %439 = vmatpush1.msra.mxu0 0.0
        %440 = vmatprep.subr.mxu0 0.0
        %441 = vmatpush1.msra.mxu0 0.0
        %442 = vmatprep.subr.mxu0 0.0
        %443 = vmatpush1.msra.mxu0 0.0
        %444 = vmatprep.subr.mxu0 0.0
        %445 = vmatpush1.msra.mxu0 0.0
        %446 = vmatprep.subr.mxu0 0.0
        %447 = vmatpush1.msra.mxu0 0.0
        %448 = vmatprep.subr.mxu0 0.0
        %449 = vmatpush1.msra.mxu0 0.0
        %450 = vmatprep.subr.mxu0 0.0
        %451 = vmatpush1.msra.mxu0 0.0
        %452 = vmatprep.subr.mxu0 0.0
        %453 = vmatpush1.msra.mxu0 0.0
        %454 = vmatprep.subr.mxu0 0.0
        %455 = vmatpush1.msra.mxu0 0.0
        %456 = vmatprep.subr.mxu0 0.0
        %457 = vmatpush1.msra.mxu0 0.0
        %458 = vmatprep.subr.mxu0 0.0
        %459 = vmatpush1.msra.mxu0 0.0
        %460 = vmatprep.subr.mxu0 0.0
        %461 = vmatpush1.msra.mxu0 0.0
        %462 = vmatprep.subr.mxu0 0.0
        %463 = vmatpush1.msra.mxu0 0.0
        %464 = vmatprep.subr.mxu0 0.0
        %465 = vmatpush1.msra.mxu0 0.0
        %466 = vmatprep.subr.mxu0 0.0
        %467 = vmatpush1.msra.mxu0 0.0
        %468 = vmatprep.mubr.f32.mxu0 0.0
        %469 = vmatmul.mubr.f32.gmra.mrb[0].mxu0 %v402
        %v470 = vpop.f32.mrb[0].mxu0
        %v471 = vadd.f32 0.0, %v470
        %v472 = vpop.f32.mrb[0].mxu0
        %473 = vdwg.mxu0
        %v474 = vadd.f32 %v401, %v471
        %v475 = vxor.u32 %v474, 2147483648
        %v476 = vmul.f32 %v475, 1.442695
        %v477 = vpow.pop %v476
        %v478 = vadd.f32 %v477, 1.0
        %v479 = vrcp.pop %v478
        %v480 = vmul.f32 1.0, %v479
        %v481 = vtanh.pop %v474
        %v482 = vmul.f32 %v480, %v384
        %484 = vrot.lane.b32.xlu0 %v481, 112
        %v485 = vpop.permute.xlu0 %484
        %v487 = vmul.f32 %v480, %v485
        %489 = vrot.lane.b32.xlu0 %v487, 8
        %v490 = vpop.permute.xlu0 %489
        %v492 = vadd.f32 %v482, %v490
        %v493 = vtanh.pop %v492
        %495 = vrot.lane.b32.xlu0 %v493, 16
        %v496 = vpop.permute.xlu0 %495
        %v498 = vmul.f32 %v480, %v496
        %500 = vrot.lane.b32.xlu0 %v498, 104
        %v501 = vpop.permute.xlu0 %500
        %v503 = vmax.f32 %v395, %v501
        %v504 = vadd.f32 %v396, %v501
        %s505 = smul.u32 %s31, 3
        %s506 = sadd.s32 %s505, 2
        %s507 = smul.u32 %s506, 2
        %s508 = scalar_lea.vmem %s223, %s507 [#allocation6]
        %v509 = vld [vmem:[%s508] sm:$0x3]
        %v510 = vsel %vm288, %v501, 0
        %512 = vmatprep.subr.mxu0 0.0
        %513 = vmatpush1.msra.mxu0 %v279
        %514 = vmatprep.subr.mxu0 0.0
        %515 = vmatpush1.msra.mxu0 0.0
        %516 = vmatprep.subr.mxu0 0.0
        %517 = vmatpush1.msra.mxu0 0.0
        %518 = vmatprep.subr.mxu0 0.0
        %519 = vmatpush1.msra.mxu0 0.0
        %520 = vmatprep.subr.mxu0 0.0
        %521 = vmatpush1.msra.mxu0 0.0
        %522 = vmatprep.subr.mxu0 0.0
        %523 = vmatpush1.msra.mxu0 0.0
        %524 = vmatprep.subr.mxu0 0.0
        %525 = vmatpush1.msra.mxu0 0.0
        %526 = vmatprep.subr.mxu0 0.0
        %527 = vmatpush1.msra.mxu0 0.0
        %528 = vmatprep.subr.mxu0 0.0
        %529 = vmatpush1.msra.mxu0 0.0
        %530 = vmatprep.subr.mxu0 0.0
        %531 = vmatpush1.msra.mxu0 0.0
        %532 = vmatprep.subr.mxu0 0.0
        %533 = vmatpush1.msra.mxu0 0.0
        %534 = vmatprep.subr.mxu0 0.0
        %535 = vmatpush1.msra.mxu0 0.0
        %536 = vmatprep.subr.mxu0 0.0
        %537 = vmatpush1.msra.mxu0 0.0
        %538 = vmatprep.subr.mxu0 0.0
        %539 = vmatpush1.msra.mxu0 0.0
        %540 = vmatprep.subr.mxu0 0.0
        %541 = vmatpush1.msra.mxu0 0.0
        %542 = vmatprep.subr.mxu0 0.0
        %543 = vmatpush1.msra.mxu0 0.0
        %544 = vmatprep.subr.mxu0 0.0
        %545 = vmatpush1.msra.mxu0 0.0
        %546 = vmatprep.subr.mxu0 0.0
        %547 = vmatpush1.msra.mxu0 0.0
        %548 = vmatprep.subr.mxu0 0.0
        %549 = vmatpush1.msra.mxu0 0.0
        %550 = vmatprep.subr.mxu0 0.0
        %551 = vmatpush1.msra.mxu0 0.0
        %552 = vmatprep.subr.mxu0 0.0
        %553 = vmatpush1.msra.mxu0 0.0
        %554 = vmatprep.subr.mxu0 0.0
        %555 = vmatpush1.msra.mxu0 0.0
        %556 = vmatprep.subr.mxu0 0.0
        %557 = vmatpush1.msra.mxu0 0.0
        %558 = vmatprep.subr.mxu0 0.0
        %559 = vmatpush1.msra.mxu0 0.0
        %560 = vmatprep.subr.mxu0 0.0
        %561 = vmatpush1.msra.mxu0 0.0
        %562 = vmatprep.subr.mxu0 0.0
        %563 = vmatpush1.msra.mxu0 0.0
        %564 = vmatprep.subr.mxu0 0.0
        %565 = vmatpush1.msra.mxu0 0.0
        %566 = vmatprep.subr.mxu0 0.0
        %567 = vmatpush1.msra.mxu0 0.0
        %568 = vmatprep.subr.mxu0 0.0
        %569 = vmatpush1.msra.mxu0 0.0
        %570 = vmatprep.subr.mxu0 0.0
        %571 = vmatpush1.msra.mxu0 0.0
        %572 = vmatprep.subr.mxu0 0.0
        %573 = vmatpush1.msra.mxu0 0.0
        %574 = vmatprep.subr.mxu0 0.0
        %575 = vmatpush1.msra.mxu0 0.0
        %576 = vmatprep.mubr.f32.mxu0 0.0
        %577 = vmatmul.mubr.f32.gmra.mrb[0].mxu0 %v510
        %v578 = vpop.f32.mrb[0].mxu0
        %v579 = vadd.f32 0.0, %v578
        %v580 = vpop.f32.mrb[0].mxu0
        %581 = vdwg.mxu0
        %v582 = vadd.f32 %v509, %v579
        %v583 = vxor.u32 %v582, 2147483648
        %v584 = vmul.f32 %v583, 1.442695
        %v585 = vpow.pop %v584
        %v586 = vadd.f32 %v585, 1.0
        %v587 = vrcp.pop %v586
        %v588 = vmul.f32 1.0, %v587
        %v589 = vtanh.pop %v582
        %v590 = vmul.f32 %v588, %v492
        %592 = vrot.lane.b32.xlu0 %v589, 112
        %v593 = vpop.permute.xlu0 %592
        %v595 = vmul.f32 %v588, %v593
        %597 = vrot.lane.b32.xlu0 %v595, 8
        %v598 = vpop.permute.xlu0 %597
        %v600 = vadd.f32 %v590, %v598
        %v601 = vtanh.pop %v600
        %603 = vrot.lane.b32.xlu0 %v601, 16
        %v604 = vpop.permute.xlu0 %603
        %v606 = vmul.f32 %v588, %v604
        %608 = vrot.lane.b32.xlu0 %v606, 104
        %v609 = vpop.permute.xlu0 %608
        %v611 = vmax.f32 %v503, %v609
        %v612 = vadd.f32 %v504, %v609
        %s613 = sadd.s32 %s31, 3
        %s614 = smul.u32 %s613, 2
        %s615 = scalar_lea.vmem %s223, %s614 [#allocation6]
        %v616 = vld [vmem:[%s615] sm:$0x3]
        %v617 = vsel %vm288, %v609, 0
        %619 = vmatprep.subr.mxu0 0.0
        %620 = vmatpush1.msra.mxu0 %v279
        %621 = vmatprep.subr.mxu0 0.0
        %622 = vmatpush1.msra.mxu0 0.0
        %623 = vmatprep.subr.mxu0 0.0
        %624 = vmatpush1.msra.mxu0 0.0
        %625 = vmatprep.subr.mxu0 0.0
        %626 = vmatpush1.msra.mxu0 0.0
        %627 = vmatprep.subr.mxu0 0.0
        %628 = vmatpush1.msra.mxu0 0.0
        %629 = vmatprep.subr.mxu0 0.0
        %630 = vmatpush1.msra.mxu0 0.0
        %631 = vmatprep.subr.mxu0 0.0
        %632 = vmatpush1.msra.mxu0 0.0
        %633 = vmatprep.subr.mxu0 0.0
        %634 = vmatpush1.msra.mxu0 0.0
        %635 = vmatprep.subr.mxu0 0.0
        %636 = vmatpush1.msra.mxu0 0.0
        %637 = vmatprep.subr.mxu0 0.0
        %638 = vmatpush1.msra.mxu0 0.0
        %639 = vmatprep.subr.mxu0 0.0
        %640 = vmatpush1.msra.mxu0 0.0
        %641 = vmatprep.subr.mxu0 0.0
        %642 = vmatpush1.msra.mxu0 0.0
        %643 = vmatprep.subr.mxu0 0.0
        %644 = vmatpush1.msra.mxu0 0.0
        %645 = vmatprep.subr.mxu0 0.0
        %646 = vmatpush1.msra.mxu0 0.0
        %647 = vmatprep.subr.mxu0 0.0
        %648 = vmatpush1.msra.mxu0 0.0
        %649 = vmatprep.subr.mxu0 0.0
        %650 = vmatpush1.msra.mxu0 0.0
        %651 = vmatprep.subr.mxu0 0.0
        %652 = vmatpush1.msra.mxu0 0.0
        %653 = vmatprep.subr.mxu0 0.0
        %654 = vmatpush1.msra.mxu0 0.0
        %655 = vmatprep.subr.mxu0 0.0
        %656 = vmatpush1.msra.mxu0 0.0
        %657 = vmatprep.subr.mxu0 0.0
        %658 = vmatpush1.msra.mxu0 0.0
        %659 = vmatprep.subr.mxu0 0.0
        %660 = vmatpush1.msra.mxu0 0.0
        %661 = vmatprep.subr.mxu0 0.0
        %662 = vmatpush1.msra.mxu0 0.0
        %663 = vmatprep.subr.mxu0 0.0
        %664 = vmatpush1.msra.mxu0 0.0
        %665 = vmatprep.subr.mxu0 0.0
        %666 = vmatpush1.msra.mxu0 0.0
        %667 = vmatprep.subr.mxu0 0.0
        %668 = vmatpush1.msra.mxu0 0.0
        %669 = vmatprep.subr.mxu0 0.0
        %670 = vmatpush1.msra.mxu0 0.0
        %671 = vmatprep.subr.mxu0 0.0
        %672 = vmatpush1.msra.mxu0 0.0
        %673 = vmatprep.subr.mxu0 0.0
        %674 = vmatpush1.msra.mxu0 0.0
        %675 = vmatprep.subr.mxu0 0.0
        %676 = vmatpush1.msra.mxu0 0.0
        %677 = vmatprep.subr.mxu0 0.0
        %678 = vmatpush1.msra.mxu0 0.0
        %679 = vmatprep.subr.mxu0 0.0
        %680 = vmatpush1.msra.mxu0 0.0
        %681 = vmatprep.subr.mxu0 0.0
        %682 = vmatpush1.msra.mxu0 0.0
        %683 = vmatprep.mubr.f32.mxu0 0.0
        %684 = vmatmul.mubr.f32.gmra.mrb[0].mxu0 %v617
        %v685 = vpop.f32.mrb[0].mxu0
        %v686 = vadd.f32 0.0, %v685
        %v687 = vpop.f32.mrb[0].mxu0
        %688 = vdwg.mxu0
        %v689 = vadd.f32 %v616, %v686
        %v690 = vxor.u32 %v689, 2147483648
        %v691 = vmul.f32 %v690, 1.442695
        %v692 = vpow.pop %v691
        %v693 = vadd.f32 %v692, 1.0
        %v694 = vrcp.pop %v693
        %v695 = vmul.f32 1.0, %v694
        %v696 = vtanh.pop %v689
        %v697 = vmul.f32 %v695, %v600
        %699 = vrot.lane.b32.xlu0 %v696, 112
        %v700 = vpop.permute.xlu0 %699
        %v702 = vmul.f32 %v695, %v700
        %704 = vrot.lane.b32.xlu0 %v702, 8
        %v705 = vpop.permute.xlu0 %704
        %v707 = vadd.f32 %v697, %v705
        %v708 = vtanh.pop %v707
        %710 = vrot.lane.b32.xlu0 %v708, 16
        %v711 = vpop.permute.xlu0 %710
        %v713 = vmul.f32 %v695, %v711
        %715 = vrot.lane.b32.xlu0 %v713, 104
        %v716 = vpop.permute.xlu0 %715
        %v718 = vmax.f32 %v611, %v716
        %v719 = vadd.f32 %v612, %v716
        %s720 = ssub.s32 4, %s31
        %s721 = smul.u32 %s720, 2
        %s722 = scalar_lea.vmem %s223, %s721 [#allocation6]
        %v723 = vld [vmem:[%s722] sm:$0x3]
        %v724 = vsel %vm288, %v716, 0
        %726 = vmatprep.subr.mxu0 0.0
        %727 = vmatpush1.msra.mxu0 %v279
        %728 = vmatprep.subr.mxu0 0.0
        %729 = vmatpush1.msra.mxu0 0.0
        %730 = vmatprep.subr.mxu0 0.0
        %731 = vmatpush1.msra.mxu0 0.0
        %732 = vmatprep.subr.mxu0 0.0
        %733 = vmatpush1.msra.mxu0 0.0
        %734 = vmatprep.subr.mxu0 0.0
        %735 = vmatpush1.msra.mxu0 0.0
        %736 = vmatprep.subr.mxu0 0.0
        %737 = vmatpush1.msra.mxu0 0.0
        %738 = vmatprep.subr.mxu0 0.0
        %739 = vmatpush1.msra.mxu0 0.0
        %740 = vmatprep.subr.mxu0 0.0
        %741 = vmatpush1.msra.mxu0 0.0
        %742 = vmatprep.subr.mxu0 0.0
        %743 = vmatpush1.msra.mxu0 0.0
        %744 = vmatprep.subr.mxu0 0.0
        %745 = vmatpush1.msra.mxu0 0.0
        %746 = vmatprep.subr.mxu0 0.0
        %747 = vmatpush1.msra.mxu0 0.0
        %748 = vmatprep.subr.mxu0 0.0
        %749 = vmatpush1.msra.mxu0 0.0
        %750 = vmatprep.subr.mxu0 0.0
        %751 = vmatpush1.msra.mxu0 0.0
        %752 = vmatprep.subr.mxu0 0.0
        %753 = vmatpush1.msra.mxu0 0.0
        %754 = vmatprep.subr.mxu0 0.0
        %755 = vmatpush1.msra.mxu0 0.0
        %756 = vmatprep.subr.mxu0 0.0
        %757 = vmatpush1.msra.mxu0 0.0
        %758 = vmatprep.subr.mxu0 0.0
        %759 = vmatpush1.msra.mxu0 0.0
        %760 = vmatprep.subr.mxu0 0.0
        %761 = vmatpush1.msra.mxu0 0.0
        %762 = vmatprep.subr.mxu0 0.0
        %763 = vmatpush1.msra.mxu0 0.0
        %764 = vmatprep.subr.mxu0 0.0
        %765 = vmatpush1.msra.mxu0 0.0
        %766 = vmatprep.subr.mxu0 0.0
        %767 = vmatpush1.msra.mxu0 0.0
        %768 = vmatprep.subr.mxu0 0.0
        %769 = vmatpush1.msra.mxu0 0.0
        %770 = vmatprep.subr.mxu0 0.0
        %771 = vmatpush1.msra.mxu0 0.0
        %772 = vmatprep.subr.mxu0 0.0
        %773 = vmatpush1.msra.mxu0 0.0
        %774 = vmatprep.subr.mxu0 0.0
        %775 = vmatpush1.msra.mxu0 0.0
        %776 = vmatprep.subr.mxu0 0.0
        %777 = vmatpush1.msra.mxu0 0.0
        %778 = vmatprep.subr.mxu0 0.0
        %779 = vmatpush1.msra.mxu0 0.0
        %780 = vmatprep.subr.mxu0 0.0
        %781 = vmatpush1.msra.mxu0 0.0
        %782 = vmatprep.subr.mxu0 0.0
        %783 = vmatpush1.msra.mxu0 0.0
        %784 = vmatprep.subr.mxu0 0.0
        %785 = vmatpush1.msra.mxu0 0.0
        %786 = vmatprep.subr.mxu0 0.0
        %787 = vmatpush1.msra.mxu0 0.0
        %788 = vmatprep.subr.mxu0 0.0
        %789 = vmatpush1.msra.mxu0 0.0
        %790 = vmatprep.mubr.f32.mxu0 0.0
        %791 = vmatmul.mubr.f32.gmra.mrb[0].mxu0 %v724
        %v792 = vpop.f32.mrb[0].mxu0
        %v793 = vadd.f32 0.0, %v792
        %v794 = vpop.f32.mrb[0].mxu0
        %795 = vdwg.mxu0
        %v796 = vadd.f32 %v723, %v793
        %v797 = vxor.u32 %v796, 2147483648
        %v798 = vmul.f32 %v797, 1.442695
        %v799 = vpow.pop %v798
        %v800 = vadd.f32 %v799, 1.0
        %v801 = vrcp.pop %v800
        %v802 = vmul.f32 1.0, %v801
        %v803 = vtanh.pop %v796
        %v804 = vmul.f32 %v802, %v707
        %806 = vrot.lane.b32.xlu0 %v803, 112
        %v807 = vpop.permute.xlu0 %806
        %v809 = vmul.f32 %v802, %v807
        %811 = vrot.lane.b32.xlu0 %v809, 8
        %v812 = vpop.permute.xlu0 %811
        %v814 = vadd.f32 %v804, %v812
        %v815 = vtanh.pop %v814
        %817 = vrot.lane.b32.xlu0 %v815, 16
        %v818 = vpop.permute.xlu0 %817
        %v820 = vmul.f32 %v802, %v818
        %822 = vrot.lane.b32.xlu0 %v820, 104
        %v823 = vpop.permute.xlu0 %822
        %v825 = vmax.f32 %v718, %v823
        %v826 = vadd.f32 %v719, %v823
        %s827 = smul.u32 %s31, 4294967293
        %s828 = sadd.s32 %s827, 5
        %s829 = smul.u32 %s828, 2
        %s830 = scalar_lea.vmem %s223, %s829 [#allocation6]
        %v831 = vld [vmem:[%s830] sm:$0x3]
        %v832 = vsel %vm288, %v823, 0
        %834 = vmatprep.subr.mxu0 0.0
        %835 = vmatpush1.msra.mxu0 %v279
        %836 = vmatprep.subr.mxu0 0.0
        %837 = vmatpush1.msra.mxu0 0.0
        %838 = vmatprep.subr.mxu0 0.0
        %839 = vmatpush1.msra.mxu0 0.0
        %840 = vmatprep.subr.mxu0 0.0
        %841 = vmatpush1.msra.mxu0 0.0
        %842 = vmatprep.subr.mxu0 0.0
        %843 = vmatpush1.msra.mxu0 0.0
        %844 = vmatprep.subr.mxu0 0.0
        %845 = vmatpush1.msra.mxu0 0.0
        %846 = vmatprep.subr.mxu0 0.0
        %847 = vmatpush1.msra.mxu0 0.0
        %848 = vmatprep.subr.mxu0 0.0
        %849 = vmatpush1.msra.mxu0 0.0
        %850 = vmatprep.subr.mxu0 0.0
        %851 = vmatpush1.msra.mxu0 0.0
        %852 = vmatprep.subr.mxu0 0.0
        %853 = vmatpush1.msra.mxu0 0.0
        %854 = vmatprep.subr.mxu0 0.0
        %855 = vmatpush1.msra.mxu0 0.0
        %856 = vmatprep.subr.mxu0 0.0
        %857 = vmatpush1.msra.mxu0 0.0
        %858 = vmatprep.subr.mxu0 0.0
        %859 = vmatpush1.msra.mxu0 0.0
        %860 = vmatprep.subr.mxu0 0.0
        %861 = vmatpush1.msra.mxu0 0.0
        %862 = vmatprep.subr.mxu0 0.0
        %863 = vmatpush1.msra.mxu0 0.0
        %864 = vmatprep.subr.mxu0 0.0
        %865 = vmatpush1.msra.mxu0 0.0
        %866 = vmatprep.subr.mxu0 0.0
        %867 = vmatpush1.msra.mxu0 0.0
        %868 = vmatprep.subr.mxu0 0.0
        %869 = vmatpush1.msra.mxu0 0.0
        %870 = vmatprep.subr.mxu0 0.0
        %871 = vmatpush1.msra.mxu0 0.0
        %872 = vmatprep.subr.mxu0 0.0
        %873 = vmatpush1.msra.mxu0 0.0
        %874 = vmatprep.subr.mxu0 0.0
        %875 = vmatpush1.msra.mxu0 0.0
        %876 = vmatprep.subr.mxu0 0.0
        %877 = vmatpush1.msra.mxu0 0.0
        %878 = vmatprep.subr.mxu0 0.0
        %879 = vmatpush1.msra.mxu0 0.0
        %880 = vmatprep.subr.mxu0 0.0
        %881 = vmatpush1.msra.mxu0 0.0
        %882 = vmatprep.subr.mxu0 0.0
        %883 = vmatpush1.msra.mxu0 0.0
        %884 = vmatprep.subr.mxu0 0.0
        %885 = vmatpush1.msra.mxu0 0.0
        %886 = vmatprep.subr.mxu0 0.0
        %887 = vmatpush1.msra.mxu0 0.0
        %888 = vmatprep.subr.mxu0 0.0
        %889 = vmatpush1.msra.mxu0 0.0
        %890 = vmatprep.subr.mxu0 0.0
        %891 = vmatpush1.msra.mxu0 0.0
        %892 = vmatprep.subr.mxu0 0.0
        %893 = vmatpush1.msra.mxu0 0.0
        %894 = vmatprep.subr.mxu0 0.0
        %895 = vmatpush1.msra.mxu0 0.0
        %896 = vmatprep.subr.mxu0 0.0
        %897 = vmatpush1.msra.mxu0 0.0
        %898 = vmatprep.mubr.f32.mxu0 0.0
        %899 = vmatmul.mubr.f32.gmra.mrb[0].mxu0 %v832
        %v900 = vpop.f32.mrb[0].mxu0
        %v901 = vadd.f32 0.0, %v900
        %v902 = vpop.f32.mrb[0].mxu0
        %903 = vdwg.mxu0
        %v904 = vadd.f32 %v831, %v901
        %v905 = vxor.u32 %v904, 2147483648
        %v906 = vmul.f32 %v905, 1.442695
        %v907 = vpow.pop %v906
        %v908 = vadd.f32 %v907, 1.0
        %v909 = vrcp.pop %v908
        %v910 = vmul.f32 1.0, %v909
        %v911 = vtanh.pop %v904
        %v912 = vmul.f32 %v910, %v814
        %914 = vrot.lane.b32.xlu0 %v911, 112
        %v915 = vpop.permute.xlu0 %914
        %v917 = vmul.f32 %v910, %v915
        %919 = vrot.lane.b32.xlu0 %v917, 8
        %v920 = vpop.permute.xlu0 %919
        %v922 = vadd.f32 %v912, %v920
        %v923 = vtanh.pop %v922
        %925 = vrot.lane.b32.xlu0 %v923, 16
        %v926 = vpop.permute.xlu0 %925
        %v928 = vmul.f32 %v910, %v926
        %930 = vrot.lane.b32.xlu0 %v928, 104
        %v931 = vpop.permute.xlu0 %930
        %v933 = vmax.f32 %v825, %v931
        %v934 = vadd.f32 %v826, %v931
        %s935 = smul.u32 %s31, 4294967291
        %s936 = sadd.s32 %s935, 6
        %s937 = smul.u32 %s936, 2
        %s938 = scalar_lea.vmem %s223, %s937 [#allocation6]
        %v939 = vld [vmem:[%s938] sm:$0x3]
        %v940 = vsel %vm288, %v931, 0
        %942 = vmatprep.subr.mxu0 0.0
        %943 = vmatpush1.msra.mxu0 %v279
        %944 = vmatprep.subr.mxu0 0.0
        %945 = vmatpush1.msra.mxu0 0.0
        %946 = vmatprep.subr.mxu0 0.0
        %947 = vmatpush1.msra.mxu0 0.0
        %948 = vmatprep.subr.mxu0 0.0
        %949 = vmatpush1.msra.mxu0 0.0
        %950 = vmatprep.subr.mxu0 0.0
        %951 = vmatpush1.msra.mxu0 0.0
        %952 = vmatprep.subr.mxu0 0.0
        %953 = vmatpush1.msra.mxu0 0.0
        %954 = vmatprep.subr.mxu0 0.0
        %955 = vmatpush1.msra.mxu0 0.0
        %956 = vmatprep.subr.mxu0 0.0
        %957 = vmatpush1.msra.mxu0 0.0
        %958 = vmatprep.subr.mxu0 0.0
        %959 = vmatpush1.msra.mxu0 0.0
        %960 = vmatprep.subr.mxu0 0.0
        %961 = vmatpush1.msra.mxu0 0.0
        %962 = vmatprep.subr.mxu0 0.0
        %963 = vmatpush1.msra.mxu0 0.0
        %964 = vmatprep.subr.mxu0 0.0
        %965 = vmatpush1.msra.mxu0 0.0
        %966 = vmatprep.subr.mxu0 0.0
        %967 = vmatpush1.msra.mxu0 0.0
        %968 = vmatprep.subr.mxu0 0.0
        %969 = vmatpush1.msra.mxu0 0.0
        %970 = vmatprep.subr.mxu0 0.0
        %971 = vmatpush1.msra.mxu0 0.0
        %972 = vmatprep.subr.mxu0 0.0
        %973 = vmatpush1.msra.mxu0 0.0
        %974 = vmatprep.subr.mxu0 0.0
        %975 = vmatpush1.msra.mxu0 0.0
        %976 = vmatprep.subr.mxu0 0.0
        %977 = vmatpush1.msra.mxu0 0.0
        %978 = vmatprep.subr.mxu0 0.0
        %979 = vmatpush1.msra.mxu0 0.0
        %980 = vmatprep.subr.mxu0 0.0
        %981 = vmatpush1.msra.mxu0 0.0
        %982 = vmatprep.subr.mxu0 0.0
        %983 = vmatpush1.msra.mxu0 0.0
        %984 = vmatprep.subr.mxu0 0.0
        %985 = vmatpush1.msra.mxu0 0.0
        %986 = vmatprep.subr.mxu0 0.0
        %987 = vmatpush1.msra.mxu0 0.0
        %988 = vmatprep.subr.mxu0 0.0
        %989 = vmatpush1.msra.mxu0 0.0
        %990 = vmatprep.subr.mxu0 0.0
        %991 = vmatpush1.msra.mxu0 0.0
        %992 = vmatprep.subr.mxu0 0.0
        %993 = vmatpush1.msra.mxu0 0.0
        %994 = vmatprep.subr.mxu0 0.0
        %995 = vmatpush1.msra.mxu0 0.0
        %996 = vmatprep.subr.mxu0 0.0
        %997 = vmatpush1.msra.mxu0 0.0
        %998 = vmatprep.subr.mxu0 0.0
        %999 = vmatpush1.msra.mxu0 0.0
        %1000 = vmatprep.subr.mxu0 0.0
        %1001 = vmatpush1.msra.mxu0 0.0
        %1002 = vmatprep.subr.mxu0 0.0
        %1003 = vmatpush1.msra.mxu0 0.0
        %1004 = vmatprep.subr.mxu0 0.0
        %1005 = vmatpush1.msra.mxu0 0.0
        %1006 = vmatprep.mubr.f32.mxu0 0.0
        %1007 = vmatmul.mubr.f32.gmra.mrb[0].mxu0 %v940
        %v1008 = vpop.f32.mrb[0].mxu0
        %v1009 = vadd.f32 0.0, %v1008
        %v1010 = vpop.f32.mrb[0].mxu0
        %1011 = vdwg.mxu0
        %v1012 = vadd.f32 %v939, %v1009
        %v1013 = vxor.u32 %v1012, 2147483648
        %v1014 = vmul.f32 %v1013, 1.442695
        %v1015 = vpow.pop %v1014
        %v1016 = vadd.f32 %v1015, 1.0
        %v1017 = vrcp.pop %v1016
        %v1018 = vmul.f32 1.0, %v1017
        %v1019 = vtanh.pop %v1012
        %v1020 = vmul.f32 %v1018, %v922
        %1022 = vrot.lane.b32.xlu0 %v1019, 112
        %v1023 = vpop.permute.xlu0 %1022
        %v1025 = vmul.f32 %v1018, %v1023
        %1027 = vrot.lane.b32.xlu0 %v1025, 8
        %v1028 = vpop.permute.xlu0 %1027
        %v1030 = vadd.f32 %v1020, %v1028
        %v1031 = vtanh.pop %v1030
        %1033 = vrot.lane.b32.xlu0 %v1031, 16
        %v1034 = vpop.permute.xlu0 %1033
        %v1036 = vmul.f32 %v1018, %v1034
        %1038 = vrot.lane.b32.xlu0 %v1036, 104
        %v1039 = vpop.permute.xlu0 %1038
        %v1041 = vmax.f32 %v933, %v1039
        %v1042 = vadd.f32 %v934, %v1039
        %s1043 = smul.u32 %s31, 4294967289
        %s1044 = sadd.s32 %s1043, 7
        %s1045 = smul.u32 %s1044, 2
        %s1046 = scalar_lea.vmem %s223, %s1045 [#allocation6]
        %v1047 = vld [vmem:[%s1046] sm:$0x3]
        %v1048 = vsel %vm288, %v1039, 0
        %1050 = vmatprep.subr.mxu0 0.0
        %1051 = vmatpush1.msra.mxu0 %v279
        %1052 = vmatprep.subr.mxu0 0.0
        %1053 = vmatpush1.msra.mxu0 0.0
        %1054 = vmatprep.subr.mxu0 0.0
        %1055 = vmatpush1.msra.mxu0 0.0
        %1056 = vmatprep.subr.mxu0 0.0
        %1057 = vmatpush1.msra.mxu0 0.0
        %1058 = vmatprep.subr.mxu0 0.0
        %1059 = vmatpush1.msra.mxu0 0.0
        %1060 = vmatprep.subr.mxu0 0.0
        %1061 = vmatpush1.msra.mxu0 0.0
        %1062 = vmatprep.subr.mxu0 0.0
        %1063 = vmatpush1.msra.mxu0 0.0
        %1064 = vmatprep.subr.mxu0 0.0
        %1065 = vmatpush1.msra.mxu0 0.0
        %1066 = vmatprep.subr.mxu0 0.0
        %1067 = vmatpush1.msra.mxu0 0.0
        %1068 = vmatprep.subr.mxu0 0.0
        %1069 = vmatpush1.msra.mxu0 0.0
        %1070 = vmatprep.subr.mxu0 0.0
        %1071 = vmatpush1.msra.mxu0 0.0
        %1072 = vmatprep.subr.mxu0 0.0
        %1073 = vmatpush1.msra.mxu0 0.0
        %1074 = vmatprep.subr.mxu0 0.0
        %1075 = vmatpush1.msra.mxu0 0.0
        %1076 = vmatprep.subr.mxu0 0.0
        %1077 = vmatpush1.msra.mxu0 0.0
        %1078 = vmatprep.subr.mxu0 0.0
        %1079 = vmatpush1.msra.mxu0 0.0
        %1080 = vmatprep.subr.mxu0 0.0
        %1081 = vmatpush1.msra.mxu0 0.0
        %1082 = vmatprep.subr.mxu0 0.0
        %1083 = vmatpush1.msra.mxu0 0.0
        %1084 = vmatprep.subr.mxu0 0.0
        %1085 = vmatpush1.msra.mxu0 0.0
        %1086 = vmatprep.subr.mxu0 0.0
        %1087 = vmatpush1.msra.mxu0 0.0
        %1088 = vmatprep.subr.mxu0 0.0
        %1089 = vmatpush1.msra.mxu0 0.0
        %1090 = vmatprep.subr.mxu0 0.0
        %1091 = vmatpush1.msra.mxu0 0.0
        %1092 = vmatprep.subr.mxu0 0.0
        %1093 = vmatpush1.msra.mxu0 0.0
        %1094 = vmatprep.subr.mxu0 0.0
        %1095 = vmatpush1.msra.mxu0 0.0
        %1096 = vmatprep.subr.mxu0 0.0
        %1097 = vmatpush1.msra.mxu0 0.0
        %1098 = vmatprep.subr.mxu0 0.0
        %1099 = vmatpush1.msra.mxu0 0.0
        %1100 = vmatprep.subr.mxu0 0.0
        %1101 = vmatpush1.msra.mxu0 0.0
        %1102 = vmatprep.subr.mxu0 0.0
        %1103 = vmatpush1.msra.mxu0 0.0
        %1104 = vmatprep.subr.mxu0 0.0
        %1105 = vmatpush1.msra.mxu0 0.0
        %1106 = vmatprep.subr.mxu0 0.0
        %1107 = vmatpush1.msra.mxu0 0.0
        %1108 = vmatprep.subr.mxu0 0.0
        %1109 = vmatpush1.msra.mxu0 0.0
        %1110 = vmatprep.subr.mxu0 0.0
        %1111 = vmatpush1.msra.mxu0 0.0
        %1112 = vmatprep.subr.mxu0 0.0
        %1113 = vmatpush1.msra.mxu0 0.0
        %1114 = vmatprep.mubr.f32.mxu0 0.0
        %1115 = vmatmul.mubr.f32.gmra.mrb[0].mxu0 %v1048
        %v1116 = vpop.f32.mrb[0].mxu0
        %v1117 = vadd.f32 0.0, %v1116
        %v1118 = vpop.f32.mrb[0].mxu0
        %1119 = vdwg.mxu0
        %v1120 = vadd.f32 %v1047, %v1117
        %v1121 = vxor.u32 %v1120, 2147483648
        %v1122 = vmul.f32 %v1121, 1.442695
        %v1123 = vpow.pop %v1122
        %v1124 = vadd.f32 %v1123, 1.0
        %v1125 = vrcp.pop %v1124
        %v1126 = vmul.f32 1.0, %v1125
        %v1127 = vtanh.pop %v1120
        %v1128 = vmul.f32 %v1126, %v1030
        %1130 = vrot.lane.b32.xlu0 %v1127, 112
        %v1131 = vpop.permute.xlu0 %1130
        %v1133 = vmul.f32 %v1126, %v1131
        %1135 = vrot.lane.b32.xlu0 %v1133, 8
        %v1136 = vpop.permute.xlu0 %1135
        %v1138 = vadd.f32 %v1128, %v1136
        %v1139 = vtanh.pop %v1138
        %1141 = vrot.lane.b32.xlu0 %v1139, 16
        %v1142 = vpop.permute.xlu0 %1141
        %v1144 = vmul.f32 %v1126, %v1142
        %1146 = vrot.lane.b32.xlu0 %v1144, 104
        %v1147 = vpop.permute.xlu0 %1146
        %v1149 = vmax.f32 %v1041, %v1147
        %v1150 = vadd.f32 %v1042, %v1147
        %vm1151 = vcmask 58368
        %1152 = vst.msk [vmem:[#allocation2] sm:$0x3] %vm1151, %v1147
        %1154 = vrot.lane.b32.xlu0 %v1138, 120
        %v1155 = vpop.permute.xlu0 %1154
        %1157 = vst.msk [vmem:[#allocation3] sm:$0x3] %vm1151, %v1155
        %1158 = vst.msk [vmem:[#allocation4] sm:$0x3] %vm1151, %v1149
        %1159 = vst.msk [vmem:[#allocation5] sm:$0x3] %vm1151, %v1150
        // Predicated region
        $region41: #{bert_lstm_cnn2_forward.4} parent=27 // pred_check
          %p1160 = pneg %p270
        $region42: #{bert_lstm_cnn2_forward.4} parent=27 // pred_check_branch
          %1162 = sbr.rel (%p1160) target = $region44
        $region43: #{bert_lstm_cnn2_forward.4} parent=27 // pred_region
          %1163 = vst.msk [vmem:[%s257] sm:$0x3] %vm1151, %v1149
          %v1164 = vmul.f32 %v1150, 0.125
          %1165 = vst.msk [vmem:[%s264] sm:$0x3] %vm1151, %v1164
        $region44: #{bert_lstm_cnn2_forward.4} parent=27 // pred_fallthru
          _
        %s1166 = sand.u32 %s109, 1
        %s1167 = scalar_lea.sflag [#allocation8], %s1166
        %s1168 = sand.u32 %s109, 1
        %s1169 = smul.addr %s1168, 2
        %s1170 = scalar_lea.vmem [#allocation11], %s1169
        %s1171 = sand.u32 %s135, 1
        %s1172 = scalar_lea.sflag [#allocation13], %s1171
        %s1173 = sand.u32 %s135, 1
        %s1174 = smul.addr %s1173, 2
        %s1175 = scalar_lea.vmem [#allocation12], %s1174
        // Predicated region
        $region45: #{bert_lstm_cnn2_forward.4} parent=27 // pred_check
          %p1176 = pneg %p119
        $region46: #{bert_lstm_cnn2_forward.4} parent=27 // pred_check_branch
          %1178 = sbr.rel (%p1176) target = $region48
        $region47: #{bert_lstm_cnn2_forward.4} parent=27 // pred_region
          %s1180 = ssub.s32 32, 32
          %1181 = vsyncadd %s1167, %s1180
          %s1182 = smul.addr %s31, 32
          %s1183 = scalar_lea.hbm %s2, %s1182
          %s1185 = sshll.u32 %s1170, 4
          %s1186 = int_to_ptr.vmem [resolvable:$true] %s1185
          %1188 = dma.vmem_to_hbm [thread:$0]  %s1186, 32, %s1183, %s1167
        $region48: #{bert_lstm_cnn2_forward.4} parent=27 // pred_fallthru
          _
        // Predicated region
        $region49: #{bert_lstm_cnn2_forward.4} parent=27 // pred_check
          %p1189 = pneg %p145
        $region50: #{bert_lstm_cnn2_forward.4} parent=27 // pred_check_branch
          %1191 = sbr.rel (%p1189) target = $region52
        $region51: #{bert_lstm_cnn2_forward.4} parent=27 // pred_region
          %s1193 = ssub.s32 32, 32
          %1194 = vsyncadd %s1172, %s1193
          %s1195 = smul.addr %s31, 32
          %s1196 = scalar_lea.hbm %s3, %s1195
          %s1198 = sshll.u32 %s1175, 4
          %s1199 = int_to_ptr.vmem [resolvable:$true] %s1198
          %1201 = dma.vmem_to_hbm [thread:$0]  %s1199, 32, %s1196, %s1172
        $region52: #{bert_lstm_cnn2_forward.4} parent=27 // pred_fallthru
          _
      $region28: #{bert_lstm_cnn2_forward.4} parent=5 // pred_fallthru
        _
      %p1202 = scmp.le.s32.totalorder 2, %s22
      // Predicated region
      $region53: #{bert_lstm_cnn2_forward.4} parent=5 // pred_check
        %p1203 = pneg %p1202
      $region54: #{bert_lstm_cnn2_forward.4} parent=5 // pred_check_branch
        %1205 = sbr.rel (%p1203) target = $region56
      $region55: #{bert_lstm_cnn2_forward.4} parent=5 // pred_region
        %s1206 = ssub.s32 %s22, 2
        // Predicated region
        $region57: #{bert_lstm_cnn2_forward.4} parent=55 // pred_check
          %p1207 = pneg %p125
        $region58: #{bert_lstm_cnn2_forward.4} parent=55 // pred_check_branch
          %1209 = sbr.rel (%p1207) target = $region60
        $region59: #{bert_lstm_cnn2_forward.4} parent=55 // pred_region
          %s1210 = sand.u32 %s110, 1
          %s1211 = scalar_lea.sflag [#allocation8], %s1210
          %s1212 = sand.u32 %s110, 1
          %s1213 = smul.addr %s1212, 2
          %s1214 = scalar_lea.vmem [#allocation11], %s1213
          %1215 = dma.done %s1211, 32
        $region60: #{bert_lstm_cnn2_forward.4} parent=55 // pred_fallthru
          _
        // Predicated region
        $region61: #{bert_lstm_cnn2_forward.4} parent=55 // pred_check
          %p1216 = pneg %p151
        $region62: #{bert_lstm_cnn2_forward.4} parent=55 // pred_check_branch
          %1218 = sbr.rel (%p1216) target = $region64
        $region63: #{bert_lstm_cnn2_forward.4} parent=55 // pred_region
          %s1219 = sand.u32 %s136, 1
          %s1220 = scalar_lea.sflag [#allocation13], %s1219
          %s1221 = sand.u32 %s136, 1
          %s1222 = smul.addr %s1221, 2
          %s1223 = scalar_lea.vmem [#allocation12], %s1222
          %1224 = dma.done %s1220, 32
        $region64: #{bert_lstm_cnn2_forward.4} parent=55 // pred_fallthru
          _
      $region56: #{bert_lstm_cnn2_forward.4} parent=5 // pred_fallthru
        _
    $region6: #{bert_lstm_cnn2_forward.4} parent=1 // loop_footer
      %s26 = sadd.s32 1, %s22
    $region7: #{bert_lstm_cnn2_forward.4} parent=1 // loop_footer_branch
      %21 = sbr.rel target = $region3
    $region8: #{bert_lstm_cnn2_forward.4} parent=1 // loop_exit
      _
    %1225 = vsyncpa [#allocation7], 1
    %s1226 = scalar_lea.sflag [#allocation7], 1
    %1227 = vsyncpa %s1226, 1
    %1228 = vsyncpa [#allocation10], 1
    %s1229 = scalar_lea.sflag [#allocation10], 1
    %1230 = vsyncpa %s1229, 1
    %1231 = vsyncpa [#allocation8], 1
    %s1232 = scalar_lea.sflag [#allocation8], 1
    %1233 = vsyncpa %s1232, 1
    %1234 = vsyncpa [#allocation13], 1
    %s1235 = scalar_lea.sflag [#allocation13], 1
    %1236 = vsyncpa %s1235, 1

</llo_original>
